<compile_context>
chip_gen: v7x
topology: tpu7x:2x2x1
jax: 0.10.0
libtpu: 0.0.40
codegen_flags: <defaults>
</compile_context>

<pallas_src>
import functools

import jax
import jax.numpy as jnp
from jax.experimental import pallas as pl
from jax.experimental.pallas import tpu as pltpu


# ------------------------------- Pallas kernels ------------------------------ #

def _linear_kernel(x_ref, w_ref, b_ref, o_ref):
    o_ref[...] = (
        jnp.dot(x_ref[...], w_ref[...], preferred_element_type=jnp.float32)
        + b_ref[...]
    )


def pallas_linear(x, w_t, b):
    """x: (M, K) f32, w_t: (K, N) f32, b: (1, N) f32 -> (M, N) f32.

    Tiny (B x 26 x 16 here): a single full-block call; per review this could be
    left to XLA entirely, it is kept as one cheap Pallas launch for completeness.
    """
    M, K = x.shape
    _, N = w_t.shape
    return pl.pallas_call(
        _linear_kernel,
        out_shape=jax.ShapeDtypeStruct((M, N), jnp.float32),
        grid=(1,),
        in_specs=[
            pl.BlockSpec((M, K), lambda i: (0, 0)),
            pl.BlockSpec((K, N), lambda i: (0, 0)),
            pl.BlockSpec((1, N), lambda i: (0, 0)),
        ],
        out_specs=pl.BlockSpec((M, N), lambda i: (0, 0)),
    )(x, w_t, b)


def _convt_phase_kernel(p_ref, w_ref, sh_ref, o_ref):
    # bf16 x bf16 -> f32 accumulation on the MXU; BN scale is already folded
    # into w, so only the shift add + ReLU remain in the epilogue.
    y = jnp.dot(p_ref[...], w_ref[...], preferred_element_type=jnp.float32)
    y = jnp.maximum(y + sh_ref[...], 0.0)
    o_ref[...] = y.astype(o_ref.dtype)


def pallas_convt_relu(patches4, w4, shift, tm):
    """patches4: (4, Mp, K4) bf16, w4: (4, K4, Cout) bf16, shift: (1, Cout) f32
    -> (4, Mp, Cout) bf16.  Grid = (phase, M-row tiles)."""
    _, Mp, K4 = patches4.shape
    cout = w4.shape[-1]
    grid = (4, Mp // tm)
    return pl.pallas_call(
        _convt_phase_kernel,
        out_shape=jax.ShapeDtypeStruct((4, Mp, cout), jnp.bfloat16),
        grid=grid,
        in_specs=[
            pl.BlockSpec((None, tm, K4), lambda p, i: (p, i, 0)),
            pl.BlockSpec((None, K4, cout), lambda p, i: (p, 0, 0)),  # VMEM-resident per phase
            pl.BlockSpec((1, cout), lambda p, i: (0, 0)),
        ],
        out_specs=pl.BlockSpec((None, tm, cout), lambda p, i: (p, i, 0)),
        compiler_params=pltpu.CompilerParams(
            dimension_semantics=("parallel", "parallel")),
    )(patches4, w4, shift)


def _convt_final_kernel(pT_ref, w_ref, o_ref):
    # Cout == 1: VPU multiply + K-reduction (M on the lane axis) -> lane-dense
    # (1, tm) store; keeps the degenerate (M,K)x(K,1) matmul off the MXU.
    prod = pT_ref[...].astype(jnp.float32) * w_ref[...].astype(jnp.float32)
    o_ref[...] = jnp.tanh(jnp.sum(prod, axis=0, keepdims=True))


def pallas_convt_final(patchesT4, w4col, tm):
    """patchesT4: (4, K4, Mp) bf16, w4col: (4, K4, 1) bf16 -> (4, 1, Mp) f32."""
    _, K4, Mp = patchesT4.shape
    grid = (4, Mp // tm)
    return pl.pallas_call(
        _convt_final_kernel,
        out_shape=jax.ShapeDtypeStruct((4, 1, Mp), jnp.float32),
        grid=grid,
        in_specs=[
            pl.BlockSpec((None, K4, tm), lambda p, i: (p, 0, i)),
            pl.BlockSpec((None, K4, 1), lambda p, i: (p, 0, 0)),
        ],
        out_specs=pl.BlockSpec((None, 1, tm), lambda p, i: (p, 0, i)),
        compiler_params=pltpu.CompilerParams(
            dimension_semantics=("parallel", "parallel")),
    )(patchesT4, w4col)


# ----------------------- glue: phase decomposition (JAX) --------------------- #
# ConvTranspose2d(k=4, s=2, p=1): output pixel (2m+py, 2n+px) depends on the
# 2x2 input window at offset (py, px) in the 1-padded input, with kernel tap
# (3 - py - 2*dy, 3 - px - 2*dx) for window offset (dy, dx).  Each phase is a
# dense (B*H*W, 4*Cin) x (4*Cin, Cout) matmul; outputs are interleaved back.

def _round_up(n, m):
    return ((n + m - 1) // m) * m


def _conv_row_tile():
    """M-row tile: 512 is VMEM-safe (double-buffered) even on v7x's 64 MiB;
    allow bigger tiles on 128 MiB parts (v5e/v6e)."""
    try:
        if pltpu.get_tpu_info().vmem_capacity_bytes >= (96 << 20):
            return 1024
    except Exception:
        pass
    return 512


def phase_patches(x_nhwc):
    """(B, H, W, C) -> (4, B*H*W, 4*C) bf16 per-phase 2x2 patch matrices."""
    B, H, W, C = x_nhwc.shape
    xp = jnp.pad(x_nhwc.astype(jnp.bfloat16), ((0, 0), (1, 1), (1, 1), (0, 0)))
    phases = []
    for py in (0, 1):
        for px in (0, 1):
            taps = [xp[:, py + dy:py + dy + H, px + dx:px + dx + W, :]
                    for dy in (0, 1) for dx in (0, 1)]
            ph = jnp.stack(taps, axis=3)                  # (B, H, W, 4, C)
            phases.append(ph.reshape(B * H * W, 4 * C))
    return jnp.stack(phases, axis=0)                      # (4, B*H*W, 4*C)


def phase_weight_matrices(w_convt):
    """PyTorch ConvTranspose2d weight (Cin, Cout, 4, 4) -> (4, 4*Cin, Cout):
    one dense matrix per output-parity phase (tap/channel layout matches
    phase_patches row layout: window-tap slowest, channel fastest)."""
    cin, cout = w_convt.shape[0], w_convt.shape[1]
    mats = []
    for py in (0, 1):
        for px in (0, 1):
            taps = [w_convt[:, :, 3 - py - 2 * dy, 3 - px - 2 * dx]
                    for dy in (0, 1) for dx in (0, 1)]    # each (Cin, Cout)
            wm = jnp.stack(taps, axis=0)                  # (4, Cin, Cout)
            mats.append(wm.reshape(4 * cin, cout))
    return jnp.stack(mats, axis=0)                        # (4, 4*Cin, Cout)


def _interleave_phases(y4, B, H, W, cout):
    """(4, B*H*W, Cout) phase outputs -> (B, 2H, 2W, Cout)."""
    y = y4.reshape(2, 2, B, H, W, cout)                   # (py, px, b, m, n, c)
    y = jnp.transpose(y, (2, 3, 0, 4, 1, 5))              # (b, m, py, n, px, c)
    return y.reshape(B, 2 * H, 2 * W, cout)


def convt_relu_layer(x_nhwc, w4, shift, tm_target):
    B, H, W, _ = x_nhwc.shape
    cout = w4.shape[-1]
    M = B * H * W
    p4 = phase_patches(x_nhwc)                            # (4, M, 4*Cin) bf16
    tm = tm_target if M >= tm_target else _round_up(M, 8)
    Mp = _round_up(M, tm)
    if Mp != M:
        p4 = jnp.pad(p4, ((0, 0), (0, Mp - M), (0, 0)))
    y4 = pallas_convt_relu(p4, w4, shift, tm)[:, :M, :]   # (4, M, Cout) bf16
    return _interleave_phases(y4, B, H, W, cout)          # (B, 2H, 2W, Cout)


def convt_final_layer(x_nhwc, w4col, tm_target):
    B, H, W, _ = x_nhwc.shape
    M = B * H * W
    p4t = jnp.transpose(phase_patches(x_nhwc), (0, 2, 1))  # (4, 4*Cin, M)
    tm = tm_target if M >= tm_target else _round_up(M, 128)
    Mp = _round_up(M, tm)
    if Mp != M:
        p4t = jnp.pad(p4t, ((0, 0), (0, 0), (0, Mp - M)))
    y4 = pallas_convt_final(p4t, w4col, tm)[:, 0, :M]      # (4, M) f32
    img = _interleave_phases(y4[..., None], B, H, W, 1)    # (B, 2H, 2W, 1)
    return img[..., 0]


# ------------------------------- model setup -------------------------------- #

KH = KW = 4
STRIDE = 2
PAD = 1


def init_params(key, n_classes, latent_dim, init_size):
    ks = jax.random.split(key, 16)
    conv_channels = [latent_dim, 512, 256, 128, 64, 1]
    lin_out = latent_dim * init_size ** 2
    params = {
        "emb": jax.random.normal(ks[0], (n_classes, n_classes), jnp.float32),
        "lin_w": 0.05 * jax.random.normal(
            ks[1], (lin_out, latent_dim + n_classes), jnp.float32),
        "lin_b": 0.01 * jax.random.normal(ks[2], (lin_out,), jnp.float32),
        "convs": [],
    }
    for li in range(5):
        cin, cout = conv_channels[li], conv_channels[li + 1]
        w = 0.05 * jax.random.normal(ks[3 + li], (cin, cout, KH, KW), jnp.float32)
        layer = {"w": w}
        if li < 4:  # BatchNorm after the first 4 transposed convs
            layer["gamma"] = jnp.ones((cout,), jnp.float32)
            layer["beta"] = jnp.zeros((cout,), jnp.float32)
            layer["mean"] = jnp.zeros((cout,), jnp.float32)
            layer["var"] = jnp.ones((cout,), jnp.float32)
        params["convs"].append(layer)
    return params


def prepare_params(params, eps=1e-5):
    """One-time weight layout: transpose linear weight, build per-phase conv
    matrices, fold BatchNorm (eval) scale into weight columns, cast to bf16."""
    prep = {
        "emb": params["emb"],
        "lin_w_t": jnp.transpose(params["lin_w"]),        # (in, out)
        "lin_b": params["lin_b"].reshape(1, -1),
        "convs": [],
    }
    for layer in params["convs"]:
        w4 = phase_weight_matrices(layer["w"])            # (4, 4*Cin, Cout) f32
        if "gamma" in layer:
            scale = layer["gamma"] / jnp.sqrt(layer["var"] + eps)
            shift = layer["beta"] - layer["mean"] * scale
            w4 = w4 * scale[None, None, :]                # fold BN scale (conv has no bias)
            prep["convs"].append({
                "w4": w4.astype(jnp.bfloat16),
                "shift": shift.reshape(1, -1).astype(jnp.float32),
            })
        else:                                             # final layer (Cout == 1)
            prep["final_w4col"] = w4.astype(jnp.bfloat16)  # (4, 4*Cin, 1)
    return prep


def generator_forward(prep, noise, labels, latent_dim, init_size):
    B = noise.shape[0]
    tm_target = _conv_row_tile()

    # Embedding lookup + concat (gather glue; not the hot path).
    emb = jnp.take(prep["emb"], labels, axis=0)
    gen_input = jnp.concatenate([emb, noise], axis=-1)

    # Linear (Pallas matmul, fused bias).
    out = pallas_linear(gen_input, prep["lin_w_t"], prep["lin_b"])

    # NCHW view -> NHWC for the conv stack.
    x = out.reshape(B, latent_dim, init_size, init_size)
    x = jnp.transpose(x, (0, 2, 3, 1))

    # 4 x (ConvTranspose + BN(eval) + ReLU); Dropout(0.25) is identity in eval.
    for layer in prep["convs"]:
        x = convt_relu_layer(x, layer["w4"], layer["shift"], tm_target)

    # Final ConvTranspose (Cout=1) + Tanh with lane-dense output.
    img = convt_final_layer(x, prep["final_w4col"], tm_target)  # (B, 2H, 2W) f32
    return img[:, None, :, :]                                   # NCHW


# --------------------- pure-JAX f32 reference (validation) ------------------ #

def _ref_convt(x_nchw, w):
    # ConvTranspose2d(k=4,s=2,p=1,bias=False) == zero-insert + pad (k-1-p) +
    # correlate with the spatially flipped kernel, in/out channels swapped.
    k = w.shape[-1]
    rhs = jnp.transpose(w[:, :, ::-1, ::-1], (1, 0, 2, 3))   # (Cout, Cin, kh, kw)
    return jax.lax.conv_general_dilated(
        x_nchw, rhs, window_strides=(1, 1),
        padding=[(k - 1 - PAD, k - 1 - PAD)] * 2,
        lhs_dilation=(STRIDE, STRIDE),
        dimension_numbers=("NCHW", "OIHW", "NCHW"))


def reference_forward(params, noise, labels, latent_dim, init_size, eps=1e-5):
    emb = jnp.take(params["emb"], labels, axis=0)
    gi = jnp.concatenate([emb, noise], axis=-1)
    out = gi @ params["lin_w"].T + params["lin_b"]
    x = out.reshape(-1, latent_dim, init_size, init_size)
    for layer in params["convs"]:
        x = _ref_convt(x, layer["w"])
        if "gamma" in layer:
            scale = layer["gamma"] / jnp.sqrt(layer["var"] + eps)
            shift = layer["beta"] - layer["mean"] * scale
            x = jnp.maximum(x * scale.reshape(1, -1, 1, 1)
                            + shift.reshape(1, -1, 1, 1), 0.0)
        else:
            x = jnp.tanh(x)
    return x


# ----------------------------------- main ------------------------------------ #

if __name__ == "__main__":
    n_classes = 10
    latent_dim = 16
    channels = 1
    img_size = 32          # must be a multiple of 32 (init_size = img_size // 32)
    init_size = img_size // 32
    batch = 2

    key = jax.random.PRNGKey(0)
    k_params, k_noise, k_labels = jax.random.split(key, 3)

    params = init_params(k_params, n_classes, latent_dim, init_size)
    prep = prepare_params(params)   # one-time weight layout / BN fold (not per call)
    noise = jax.random.normal(k_noise, (batch, latent_dim), jnp.float32)
    labels = jax.random.randint(k_labels, (batch,), 0, n_classes, jnp.int32)

    fwd = jax.jit(functools.partial(
        generator_forward, latent_dim=latent_dim, init_size=init_size))
    img = fwd(prep, noise, labels)
    jax.block_until_ready(img)

    assert img.shape == (batch, channels, img_size, img_size), img.shape
    assert bool(jnp.all(jnp.isfinite(img)))
    assert bool(jnp.all(jnp.abs(img) <= 1.0 + 1e-6))  # tanh output range

    # Validate the phase-decomposed Pallas path against a plain-JAX f32 reference
    # (loose tolerance: intermediate activations/weights are bf16 in the kernels).
    ref = jax.jit(functools.partial(
        reference_forward, latent_dim=latent_dim, init_size=init_size))(
        params, noise, labels)
    rel_err = float(jnp.max(jnp.abs(img - ref)) / (jnp.max(jnp.abs(ref)) + 1e-6))
    assert rel_err < 0.15, f"mismatch vs reference: rel_err={rel_err}"

    print("KERNEL_OK")
</pallas_src>

<mosaic_0001>
module attributes {stable_mosaic.version = 11 : i64} {
  func.func @_linear_kernel(%arg0: i32, %arg1: memref<2x26xf32, #tpu.memory_space<vmem>>, %arg2: memref<26x16xf32, #tpu.memory_space<vmem>>, %arg3: memref<1x16xf32, #tpu.memory_space<vmem>>, %arg4: memref<2x16xf32, #tpu.memory_space<vmem>>) attributes {dimension_semantics = [#tpu.dimension_semantics<arbitrary>], iteration_bounds = array<i64: 1>, scalar_prefetch = 0 : i64, scratch_operands = 0 : i64, tpu.core_type = #tpu.core_type<tc>, window_params = [{pipeline_mode = #tpu.pipeline_mode<synchronous>, transform_indices = @transform_0, window_bounds = array<i64: 2, 26>}, {pipeline_mode = #tpu.pipeline_mode<synchronous>, transform_indices = @transform_1, window_bounds = array<i64: 26, 16>}, {pipeline_mode = #tpu.pipeline_mode<synchronous>, transform_indices = @transform_2, window_bounds = array<i64: 1, 16>}, {pipeline_mode = #tpu.pipeline_mode<synchronous>, transform_indices = @transform_3, window_bounds = array<i64: 2, 16>}]} {
    %c0 = arith.constant 0 : index
    %c0_0 = arith.constant 0 : index
    %0 = vector.load %arg1[%c0, %c0_0] : memref<2x26xf32, #tpu.memory_space<vmem>>, vector<2x26xf32>
    %c0_1 = arith.constant 0 : index
    %c0_2 = arith.constant 0 : index
    %1 = vector.load %arg2[%c0_1, %c0_2] : memref<26x16xf32, #tpu.memory_space<vmem>>, vector<26x16xf32>
    %cst = arith.constant dense<0.000000e+00> : vector<2x16xf32>
    %2 = tpu.matmul %0, %1, %cst {dimension_numbers = #tpu.dot_dimension_numbers<[1], [0], [0], [1], [0, 0, 1, 1], [], []>} : vector<2x26xf32>, vector<26x16xf32>, vector<2x16xf32> -> vector<2x16xf32>
    %c0_3 = arith.constant 0 : index
    %c0_4 = arith.constant 0 : index
    %3 = vector.load %arg3[%c0_3, %c0_4] : memref<1x16xf32, #tpu.memory_space<vmem>>, vector<1x16xf32>
    %4 = vector.broadcast %3 : vector<1x16xf32> to vector<2x16xf32>
    %5 = arith.addf %2, %4 : vector<2x16xf32>
    %c0_5 = arith.constant 0 : index
    %c0_6 = arith.constant 0 : index
    %6 = vector.load %arg4[%c0_5, %c0_6] : memref<2x16xf32, #tpu.memory_space<vmem>>, vector<2x16xf32>
    tpu.vector_store %arg4[%c0_5, %c0_6], %5 {strides = array<i32>} : memref<2x16xf32, #tpu.memory_space<vmem>>, vector<2x16xf32>,
    return
  }
  func.func @transform_0(%arg0: i32) -> (i32, i32) {
    %c0_i32 = arith.constant 0 : i32
    %c0_i32_0 = arith.constant 0 : i32
    %c0_i32_1 = arith.constant 0 : i32
    return %c0_i32, %c0_i32_0 : i32, i32
  }
  func.func @transform_1(%arg0: i32) -> (i32, i32) {
    %c0_i32 = arith.constant 0 : i32
    %c0_i32_0 = arith.constant 0 : i32
    %c0_i32_1 = arith.constant 0 : i32
    return %c0_i32, %c0_i32_0 : i32, i32
  }
  func.func @transform_2(%arg0: i32) -> (i32, i32) {
    %c0_i32 = arith.constant 0 : i32
    %c0_i32_0 = arith.constant 0 : i32
    %c0_i32_1 = arith.constant 0 : i32
    return %c0_i32, %c0_i32_0 : i32, i32
  }
  func.func @transform_3(%arg0: i32) -> (i32, i32) {
    %c0_i32 = arith.constant 0 : i32
    %c0_i32_0 = arith.constant 0 : i32
    %c0_i32_1 = arith.constant 0 : i32
    return %c0_i32, %c0_i32_0 : i32, i32
  }
}

module attributes {stable_mosaic.version = 11 : i64} {
  func.func @_convt_phase_kernel(%arg0: i32, %arg1: i32, %arg2: memref<1x8x64xbf16, #tpu.memory_space<vmem>>, %arg3: memref<1x64x512xbf16, #tpu.memory_space<vmem>>, %arg4: memref<1x512xf32, #tpu.memory_space<vmem>>, %arg5: memref<1x8x512xbf16, #tpu.memory_space<vmem>>) attributes {dimension_semantics = [#tpu.dimension_semantics<parallel>, #tpu.dimension_semantics<parallel>], iteration_bounds = array<i64: 4, 1>, scalar_prefetch = 0 : i64, scratch_operands = 0 : i64, tpu.core_type = #tpu.core_type<tc>, window_params = [{transform_indices = @transform_0, window_bounds = array<i64: 1, 8, 64>}, {transform_indices = @transform_1, window_bounds = array<i64: 1, 64, 512>}, {pipeline_mode = #tpu.pipeline_mode<synchronous>, transform_indices = @transform_2, window_bounds = array<i64: 1, 512>}, {transform_indices = @transform_3, window_bounds = array<i64: 1, 8, 512>}]} {
    %c0 = arith.constant 0 : index
    %c0_0 = arith.constant 0 : index
    %c0_1 = arith.constant 0 : index
    %0 = vector.load %arg2[%c0, %c0_0, %c0_1] : memref<1x8x64xbf16, #tpu.memory_space<vmem>>, vector<1x8x64xbf16>
    %1 = vector.shape_cast %0 : vector<1x8x64xbf16> to vector<8x64xbf16>
    %c0_2 = arith.constant 0 : index
    %c0_3 = arith.constant 0 : index
    %c0_4 = arith.constant 0 : index
    %2 = vector.load %arg3[%c0_2, %c0_3, %c0_4] : memref<1x64x512xbf16, #tpu.memory_space<vmem>>, vector<1x64x512xbf16>
    %3 = vector.shape_cast %2 : vector<1x64x512xbf16> to vector<64x512xbf16>
    %cst = arith.constant dense<0.000000e+00> : vector<8x512xf32>
    %4 = tpu.matmul %1, %3, %cst {dimension_numbers = #tpu.dot_dimension_numbers<[1], [0], [0], [1], [0, 0, 1, 1], [], []>} : vector<8x64xbf16>, vector<64x512xbf16>, vector<8x512xf32> -> vector<8x512xf32>
    %c0_5 = arith.constant 0 : index
    %c0_6 = arith.constant 0 : index
    %5 = vector.load %arg4[%c0_5, %c0_6] : memref<1x512xf32, #tpu.memory_space<vmem>>, vector<1x512xf32>
    %6 = vector.broadcast %5 : vector<1x512xf32> to vector<8x512xf32>
    %7 = arith.addf %4, %6 : vector<8x512xf32>
    %cst_7 = arith.constant 0.000000e+00 : f32
    %8 = vector.broadcast %cst_7 : f32 to vector<8x512xf32>
    %9 = arith.maximumf %7, %8 : vector<8x512xf32>
    %10 = arith.truncf %9 : vector<8x512xf32> to vector<8x512xbf16>
    %c0_8 = arith.constant 0 : index
    %c0_9 = arith.constant 0 : index
    %c0_10 = arith.constant 0 : index
    %11 = vector.load %arg5[%c0_8, %c0_9, %c0_10] : memref<1x8x512xbf16, #tpu.memory_space<vmem>>, vector<1x8x512xbf16>
    %12 = vector.shape_cast %11 : vector<1x8x512xbf16> to vector<8x512xbf16>
    %13 = vector.shape_cast %10 : vector<8x512xbf16> to vector<1x8x512xbf16>
    tpu.vector_store %arg5[%c0_8, %c0_9, %c0_10], %13 {strides = array<i32>} : memref<1x8x512xbf16, #tpu.memory_space<vmem>>, vector<1x8x512xbf16>,
    return
  }
  func.func @transform_0(%arg0: i32, %arg1: i32) -> (i32, i32, i32) {
    %c0_i32 = arith.constant 0 : i32
    %c0_i32_0 = arith.constant 0 : i32
    return %arg0, %arg1, %c0_i32 : i32, i32, i32
  }
  func.func @transform_1(%arg0: i32, %arg1: i32) -> (i32, i32, i32) {
    %c0_i32 = arith.constant 0 : i32
    %c0_i32_0 = arith.constant 0 : i32
    %c0_i32_1 = arith.constant 0 : i32
    return %arg0, %c0_i32, %c0_i32_0 : i32, i32, i32
  }
  func.func @transform_2(%arg0: i32, %arg1: i32) -> (i32, i32) {
    %c0_i32 = arith.constant 0 : i32
    %c0_i32_0 = arith.constant 0 : i32
    %c0_i32_1 = arith.constant 0 : i32
    return %c0_i32, %c0_i32_0 : i32, i32
  }
  func.func @transform_3(%arg0: i32, %arg1: i32) -> (i32, i32, i32) {
    %c0_i32 = arith.constant 0 : i32
    %c0_i32_0 = arith.constant 0 : i32
    return %arg0, %arg1, %c0_i32 : i32, i32, i32
  }
}

module attributes {stable_mosaic.version = 11 : i64} {
  func.func @_convt_phase_kernel(%arg0: i32, %arg1: i32, %arg2: memref<1x8x2048xbf16, #tpu.memory_space<vmem>>, %arg3: memref<1x2048x256xbf16, #tpu.memory_space<vmem>>, %arg4: memref<1x256xf32, #tpu.memory_space<vmem>>, %arg5: memref<1x8x256xbf16, #tpu.memory_space<vmem>>) attributes {dimension_semantics = [#tpu.dimension_semantics<parallel>, #tpu.dimension_semantics<parallel>], iteration_bounds = array<i64: 4, 1>, scalar_prefetch = 0 : i64, scratch_operands = 0 : i64, tpu.core_type = #tpu.core_type<tc>, window_params = [{transform_indices = @transform_0, window_bounds = array<i64: 1, 8, 2048>}, {transform_indices = @transform_1, window_bounds = array<i64: 1, 2048, 256>}, {pipeline_mode = #tpu.pipeline_mode<synchronous>, transform_indices = @transform_2, window_bounds = array<i64: 1, 256>}, {transform_indices = @transform_3, window_bounds = array<i64: 1, 8, 256>}]} {
    %c0 = arith.constant 0 : index
    %c0_0 = arith.constant 0 : index
    %c0_1 = arith.constant 0 : index
    %0 = vector.load %arg2[%c0, %c0_0, %c0_1] : memref<1x8x2048xbf16, #tpu.memory_space<vmem>>, vector<1x8x2048xbf16>
    %1 = vector.shape_cast %0 : vector<1x8x2048xbf16> to vector<8x2048xbf16>
    %c0_2 = arith.constant 0 : index
    %c0_3 = arith.constant 0 : index
    %c0_4 = arith.constant 0 : index
    %2 = vector.load %arg3[%c0_2, %c0_3, %c0_4] : memref<1x2048x256xbf16, #tpu.memory_space<vmem>>, vector<1x2048x256xbf16>
    %3 = vector.shape_cast %2 : vector<1x2048x256xbf16> to vector<2048x256xbf16>
    %cst = arith.constant dense<0.000000e+00> : vector<8x256xf32>
    %4 = tpu.matmul %1, %3, %cst {dimension_numbers = #tpu.dot_dimension_numbers<[1], [0], [0], [1], [0, 0, 1, 1], [], []>} : vector<8x2048xbf16>, vector<2048x256xbf16>, vector<8x256xf32> -> vector<8x256xf32>
    %c0_5 = arith.constant 0 : index
    %c0_6 = arith.constant 0 : index
    %5 = vector.load %arg4[%c0_5, %c0_6] : memref<1x256xf32, #tpu.memory_space<vmem>>, vector<1x256xf32>
    %6 = vector.broadcast %5 : vector<1x256xf32> to vector<8x256xf32>
    %7 = arith.addf %4, %6 : vector<8x256xf32>
    %cst_7 = arith.constant 0.000000e+00 : f32
    %8 = vector.broadcast %cst_7 : f32 to vector<8x256xf32>
    %9 = arith.maximumf %7, %8 : vector<8x256xf32>
    %10 = arith.truncf %9 : vector<8x256xf32> to vector<8x256xbf16>
    %c0_8 = arith.constant 0 : index
    %c0_9 = arith.constant 0 : index
    %c0_10 = arith.constant 0 : index
    %11 = vector.load %arg5[%c0_8, %c0_9, %c0_10] : memref<1x8x256xbf16, #tpu.memory_space<vmem>>, vector<1x8x256xbf16>
    %12 = vector.shape_cast %11 : vector<1x8x256xbf16> to vector<8x256xbf16>
    %13 = vector.shape_cast %10 : vector<8x256xbf16> to vector<1x8x256xbf16>
    tpu.vector_store %arg5[%c0_8, %c0_9, %c0_10], %13 {strides = array<i32>} : memref<1x8x256xbf16, #tpu.memory_space<vmem>>, vector<1x8x256xbf16>,
    return
  }
  func.func @transform_0(%arg0: i32, %arg1: i32) -> (i32, i32, i32) {
    %c0_i32 = arith.constant 0 : i32
    %c0_i32_0 = arith.constant 0 : i32
    return %arg0, %arg1, %c0_i32 : i32, i32, i32
  }
  func.func @transform_1(%arg0: i32, %arg1: i32) -> (i32, i32, i32) {
    %c0_i32 = arith.constant 0 : i32
    %c0_i32_0 = arith.constant 0 : i32
    %c0_i32_1 = arith.constant 0 : i32
    return %arg0, %c0_i32, %c0_i32_0 : i32, i32, i32
  }
  func.func @transform_2(%arg0: i32, %arg1: i32) -> (i32, i32) {
    %c0_i32 = arith.constant 0 : i32
    %c0_i32_0 = arith.constant 0 : i32
    %c0_i32_1 = arith.constant 0 : i32
    return %c0_i32, %c0_i32_0 : i32, i32
  }
  func.func @transform_3(%arg0: i32, %arg1: i32) -> (i32, i32, i32) {
    %c0_i32 = arith.constant 0 : i32
    %c0_i32_0 = arith.constant 0 : i32
    return %arg0, %arg1, %c0_i32 : i32, i32, i32
  }
}

module attributes {stable_mosaic.version = 11 : i64} {
  func.func @_convt_phase_kernel(%arg0: i32, %arg1: i32, %arg2: memref<1x32x1024xbf16, #tpu.memory_space<vmem>>, %arg3: memref<1x1024x128xbf16, #tpu.memory_space<vmem>>, %arg4: memref<1x128xf32, #tpu.memory_space<vmem>>, %arg5: memref<1x32x128xbf16, #tpu.memory_space<vmem>>) attributes {dimension_semantics = [#tpu.dimension_semantics<parallel>, #tpu.dimension_semantics<parallel>], iteration_bounds = array<i64: 4, 1>, scalar_prefetch = 0 : i64, scratch_operands = 0 : i64, tpu.core_type = #tpu.core_type<tc>, window_params = [{transform_indices = @transform_0, window_bounds = array<i64: 1, 32, 1024>}, {transform_indices = @transform_1, window_bounds = array<i64: 1, 1024, 128>}, {pipeline_mode = #tpu.pipeline_mode<synchronous>, transform_indices = @transform_2, window_bounds = array<i64: 1, 128>}, {transform_indices = @transform_3, window_bounds = array<i64: 1, 32, 128>}]} {
    %c0 = arith.constant 0 : index
    %c0_0 = arith.constant 0 : index
    %c0_1 = arith.constant 0 : index
    %0 = vector.load %arg2[%c0, %c0_0, %c0_1] : memref<1x32x1024xbf16, #tpu.memory_space<vmem>>, vector<1x32x1024xbf16>
    %1 = vector.shape_cast %0 : vector<1x32x1024xbf16> to vector<32x1024xbf16>
    %c0_2 = arith.constant 0 : index
    %c0_3 = arith.constant 0 : index
    %c0_4 = arith.constant 0 : index
    %2 = vector.load %arg3[%c0_2, %c0_3, %c0_4] : memref<1x1024x128xbf16, #tpu.memory_space<vmem>>, vector<1x1024x128xbf16>
    %3 = vector.shape_cast %2 : vector<1x1024x128xbf16> to vector<1024x128xbf16>
    %cst = arith.constant dense<0.000000e+00> : vector<32x128xf32>
    %4 = tpu.matmul %1, %3, %cst {dimension_numbers = #tpu.dot_dimension_numbers<[1], [0], [0], [1], [0, 0, 1, 1], [], []>} : vector<32x1024xbf16>, vector<1024x128xbf16>, vector<32x128xf32> -> vector<32x128xf32>
    %c0_5 = arith.constant 0 : index
    %c0_6 = arith.constant 0 : index
    %5 = vector.load %arg4[%c0_5, %c0_6] : memref<1x128xf32, #tpu.memory_space<vmem>>, vector<1x128xf32>
    %6 = vector.broadcast %5 : vector<1x128xf32> to vector<32x128xf32>
    %7 = arith.addf %4, %6 : vector<32x128xf32>
    %cst_7 = arith.constant 0.000000e+00 : f32
    %8 = vector.broadcast %cst_7 : f32 to vector<32x128xf32>
    %9 = arith.maximumf %7, %8 : vector<32x128xf32>
    %10 = arith.truncf %9 : vector<32x128xf32> to vector<32x128xbf16>
    %c0_8 = arith.constant 0 : index
    %c0_9 = arith.constant 0 : index
    %c0_10 = arith.constant 0 : index
    %11 = vector.load %arg5[%c0_8, %c0_9, %c0_10] : memref<1x32x128xbf16, #tpu.memory_space<vmem>>, vector<1x32x128xbf16>
    %12 = vector.shape_cast %11 : vector<1x32x128xbf16> to vector<32x128xbf16>
    %13 = vector.shape_cast %10 : vector<32x128xbf16> to vector<1x32x128xbf16>
    tpu.vector_store %arg5[%c0_8, %c0_9, %c0_10], %13 {strides = array<i32>} : memref<1x32x128xbf16, #tpu.memory_space<vmem>>, vector<1x32x128xbf16>,
    return
  }
  func.func @transform_0(%arg0: i32, %arg1: i32) -> (i32, i32, i32) {
    %c0_i32 = arith.constant 0 : i32
    %c0_i32_0 = arith.constant 0 : i32
    return %arg0, %arg1, %c0_i32 : i32, i32, i32
  }
  func.func @transform_1(%arg0: i32, %arg1: i32) -> (i32, i32, i32) {
    %c0_i32 = arith.constant 0 : i32
    %c0_i32_0 = arith.constant 0 : i32
    %c0_i32_1 = arith.constant 0 : i32
    return %arg0, %c0_i32, %c0_i32_0 : i32, i32, i32
  }
  func.func @transform_2(%arg0: i32, %arg1: i32) -> (i32, i32) {
    %c0_i32 = arith.constant 0 : i32
    %c0_i32_0 = arith.constant 0 : i32
    %c0_i32_1 = arith.constant 0 : i32
    return %c0_i32, %c0_i32_0 : i32, i32
  }
  func.func @transform_3(%arg0: i32, %arg1: i32) -> (i32, i32, i32) {
    %c0_i32 = arith.constant 0 : i32
    %c0_i32_0 = arith.constant 0 : i32
    return %arg0, %arg1, %c0_i32 : i32, i32, i32
  }
}

module attributes {stable_mosaic.version = 11 : i64} {
  func.func @_convt_phase_kernel(%arg0: i32, %arg1: i32, %arg2: memref<1x128x512xbf16, #tpu.memory_space<vmem>>, %arg3: memref<1x512x64xbf16, #tpu.memory_space<vmem>>, %arg4: memref<1x64xf32, #tpu.memory_space<vmem>>, %arg5: memref<1x128x64xbf16, #tpu.memory_space<vmem>>) attributes {dimension_semantics = [#tpu.dimension_semantics<parallel>, #tpu.dimension_semantics<parallel>], iteration_bounds = array<i64: 4, 1>, scalar_prefetch = 0 : i64, scratch_operands = 0 : i64, tpu.core_type = #tpu.core_type<tc>, window_params = [{transform_indices = @transform_0, window_bounds = array<i64: 1, 128, 512>}, {transform_indices = @transform_1, window_bounds = array<i64: 1, 512, 64>}, {pipeline_mode = #tpu.pipeline_mode<synchronous>, transform_indices = @transform_2, window_bounds = array<i64: 1, 64>}, {transform_indices = @transform_3, window_bounds = array<i64: 1, 128, 64>}]} {
    %c0 = arith.constant 0 : index
    %c0_0 = arith.constant 0 : index
    %c0_1 = arith.constant 0 : index
    %0 = vector.load %arg2[%c0, %c0_0, %c0_1] : memref<1x128x512xbf16, #tpu.memory_space<vmem>>, vector<1x128x512xbf16>
    %1 = vector.shape_cast %0 : vector<1x128x512xbf16> to vector<128x512xbf16>
    %c0_2 = arith.constant 0 : index
    %c0_3 = arith.constant 0 : index
    %c0_4 = arith.constant 0 : index
    %2 = vector.load %arg3[%c0_2, %c0_3, %c0_4] : memref<1x512x64xbf16, #tpu.memory_space<vmem>>, vector<1x512x64xbf16>
    %3 = vector.shape_cast %2 : vector<1x512x64xbf16> to vector<512x64xbf16>
    %cst = arith.constant dense<0.000000e+00> : vector<128x64xf32>
    %4 = tpu.matmul %1, %3, %cst {dimension_numbers = #tpu.dot_dimension_numbers<[1], [0], [0], [1], [0, 0, 1, 1], [], []>} : vector<128x512xbf16>, vector<512x64xbf16>, vector<128x64xf32> -> vector<128x64xf32>
    %c0_5 = arith.constant 0 : index
    %c0_6 = arith.constant 0 : index
    %5 = vector.load %arg4[%c0_5, %c0_6] : memref<1x64xf32, #tpu.memory_space<vmem>>, vector<1x64xf32>
    %6 = vector.broadcast %5 : vector<1x64xf32> to vector<128x64xf32>
    %7 = arith.addf %4, %6 : vector<128x64xf32>
    %cst_7 = arith.constant 0.000000e+00 : f32
    %8 = vector.broadcast %cst_7 : f32 to vector<128x64xf32>
    %9 = arith.maximumf %7, %8 : vector<128x64xf32>
    %10 = arith.truncf %9 : vector<128x64xf32> to vector<128x64xbf16>
    %c0_8 = arith.constant 0 : index
    %c0_9 = arith.constant 0 : index
    %c0_10 = arith.constant 0 : index
    %11 = vector.load %arg5[%c0_8, %c0_9, %c0_10] : memref<1x128x64xbf16, #tpu.memory_space<vmem>>, vector<1x128x64xbf16>
    %12 = vector.shape_cast %11 : vector<1x128x64xbf16> to vector<128x64xbf16>
    %13 = vector.shape_cast %10 : vector<128x64xbf16> to vector<1x128x64xbf16>
    tpu.vector_store %arg5[%c0_8, %c0_9, %c0_10], %13 {strides = array<i32>} : memref<1x128x64xbf16, #tpu.memory_space<vmem>>, vector<1x128x64xbf16>,
    return
  }
  func.func @transform_0(%arg0: i32, %arg1: i32) -> (i32, i32, i32) {
    %c0_i32 = arith.constant 0 : i32
    %c0_i32_0 = arith.constant 0 : i32
    return %arg0, %arg1, %c0_i32 : i32, i32, i32
  }
  func.func @transform_1(%arg0: i32, %arg1: i32) -> (i32, i32, i32) {
    %c0_i32 = arith.constant 0 : i32
    %c0_i32_0 = arith.constant 0 : i32
    %c0_i32_1 = arith.constant 0 : i32
    return %arg0, %c0_i32, %c0_i32_0 : i32, i32, i32
  }
  func.func @transform_2(%arg0: i32, %arg1: i32) -> (i32, i32) {
    %c0_i32 = arith.constant 0 : i32
    %c0_i32_0 = arith.constant 0 : i32
    %c0_i32_1 = arith.constant 0 : i32
    return %c0_i32, %c0_i32_0 : i32, i32
  }
  func.func @transform_3(%arg0: i32, %arg1: i32) -> (i32, i32, i32) {
    %c0_i32 = arith.constant 0 : i32
    %c0_i32_0 = arith.constant 0 : i32
    return %arg0, %arg1, %c0_i32 : i32, i32, i32
  }
}

module attributes {stable_mosaic.version = 11 : i64} {
  func.func @_convt_final_kernel(%arg0: i32, %arg1: i32, %arg2: memref<1x256x512xbf16, #tpu.memory_space<vmem>>, %arg3: memref<1x256x1xbf16, #tpu.memory_space<vmem>>, %arg4: memref<1x1x512xf32, #tpu.memory_space<vmem>>) attributes {dimension_semantics = [#tpu.dimension_semantics<parallel>, #tpu.dimension_semantics<parallel>], iteration_bounds = array<i64: 4, 1>, scalar_prefetch = 0 : i64, scratch_operands = 0 : i64, tpu.core_type = #tpu.core_type<tc>, window_params = [{transform_indices = @transform_0, window_bounds = array<i64: 1, 256, 512>}, {transform_indices = @transform_1, window_bounds = array<i64: 1, 256, 1>}, {transform_indices = @transform_2, window_bounds = array<i64: 1, 1, 512>}]} {
    %c0 = arith.constant 0 : index
    %c0_0 = arith.constant 0 : index
    %c0_1 = arith.constant 0 : index
    %0 = vector.load %arg2[%c0, %c0_0, %c0_1] : memref<1x256x512xbf16, #tpu.memory_space<vmem>>, vector<1x256x512xbf16>
    %1 = vector.shape_cast %0 : vector<1x256x512xbf16> to vector<256x512xbf16>
    %2 = arith.extf %1 : vector<256x512xbf16> to vector<256x512xf32>
    %c0_2 = arith.constant 0 : index
    %c0_3 = arith.constant 0 : index
    %c0_4 = arith.constant 0 : index
    %3 = vector.load %arg3[%c0_2, %c0_3, %c0_4] : memref<1x256x1xbf16, #tpu.memory_space<vmem>>, vector<1x256x1xbf16>
    %4 = vector.shape_cast %3 : vector<1x256x1xbf16> to vector<256x1xbf16>
    %5 = arith.extf %4 : vector<256x1xbf16> to vector<256x1xf32>
    %6 = vector.broadcast %5 : vector<256x1xf32> to vector<256x512xf32>
    %7 = arith.mulf %2, %6 : vector<256x512xf32>
    %cst = arith.constant dense<0.000000e+00> : vector<512xf32>
    %8 = vector.multi_reduction <add>, %7, %cst [0] : vector<256x512xf32> to vector<512xf32>
    %9 = vector.shape_cast %8 : vector<512xf32> to vector<1x512xf32>
    %10 = math.tanh %9 : vector<1x512xf32>
    %c0_5 = arith.constant 0 : index
    %c0_6 = arith.constant 0 : index
    %c0_7 = arith.constant 0 : index
    %11 = vector.load %arg4[%c0_5, %c0_6, %c0_7] : memref<1x1x512xf32, #tpu.memory_space<vmem>>, vector<1x1x512xf32>
    %12 = vector.shape_cast %11 : vector<1x1x512xf32> to vector<1x512xf32>
    %13 = vector.shape_cast %10 : vector<1x512xf32> to vector<1x1x512xf32>
    tpu.vector_store %arg4[%c0_5, %c0_6, %c0_7], %13 {strides = array<i32>} : memref<1x1x512xf32, #tpu.memory_space<vmem>>, vector<1x1x512xf32>,
    return
  }
  func.func @transform_0(%arg0: i32, %arg1: i32) -> (i32, i32, i32) {
    %c0_i32 = arith.constant 0 : i32
    %c0_i32_0 = arith.constant 0 : i32
    return %arg0, %c0_i32, %arg1 : i32, i32, i32
  }
  func.func @transform_1(%arg0: i32, %arg1: i32) -> (i32, i32, i32) {
    %c0_i32 = arith.constant 0 : i32
    %c0_i32_0 = arith.constant 0 : i32
    %c0_i32_1 = arith.constant 0 : i32
    return %arg0, %c0_i32, %c0_i32_0 : i32, i32, i32
  }
  func.func @transform_2(%arg0: i32, %arg1: i32) -> (i32, i32, i32) {
    %c0_i32 = arith.constant 0 : i32
    %c0_i32_0 = arith.constant 0 : i32
    return %arg0, %c0_i32, %arg1 : i32, i32, i32
  }
}

</mosaic_0001>

<llo_original>
// kernel: generator_forward.6
$region0: #{generator_forward.6}
  #allocation0 [shape = 'u32[]', space=smem, size = 0x4, offset = 0x4, fixed_abs, tag = 'smem constant byte address 0x4 - core index']
  #allocation1 [shape = 'u32[144,128]{1,0:T(1,128)}', space=vmem, size = 0x12000, scoped, tag = 'internal scratch']
  %s0 = inlined_call_operand.vmem [shape: f32[2,26], index: 0, kind: input, shape index: {}]
  %s1 = inlined_call_operand.vmem [shape: f32[26,16], index: 1, kind: input, shape index: {}]
  %s2 = inlined_call_operand.hbm [shape: f32[1,16], index: 2, kind: input, shape index: {}]
  %s3 = inlined_call_operand.vmem [shape: f32[2,16], index: 3, kind: output, shape index: {}]
  %s4 = sld [smem:[#allocation0]]
  $region26: #{generator_forward.6} parent=0
    _
  %s6 = ssub.s32 1, %s4
  %s7 = scalar_select 0, %s6, %s4
  $region1: #{generator_forward.6} parent=0
    #allocation2 [shape = 'u8[512]{0}', space=vmem, size = 0x400, scoped, tag = 'input window, operand 2, single buffered']
    #allocation3 [shape = 's32[1]{0}', space=sflag, size = 0x4, scoped, tag = 'scoped memory for generator_forward.6']
    %8 = vsyncpa [#allocation3], 0
    // Predicated region
    $region2: #{generator_forward.6} parent=1 // pred_check
      _
    $region3: #{generator_forward.6} parent=1 // pred_check_branch
      %10 = sbr.rel (0) target = $region5
    $region4: #{generator_forward.6} parent=1 // pred_region
      _
    $region5: #{generator_forward.6} parent=1 // pred_fallthru
      _
    // Predicated region
    $region6: #{generator_forward.6} parent=1 // pred_check
      _
    $region7: #{generator_forward.6} parent=1 // pred_check_branch
      %12 = sbr.rel (0) target = $region9
    $region8: #{generator_forward.6} parent=1 // pred_region
      _
    $region9: #{generator_forward.6} parent=1 // pred_fallthru
      _
    // Predicated region
    $region10: #{generator_forward.6} parent=1 // pred_check
      _
    $region11: #{generator_forward.6} parent=1 // pred_check_branch
      %14 = sbr.rel (0) target = $region13
    $region12: #{generator_forward.6} parent=1 // pred_region
      %s16 = ssub.s32 16, 16
      %17 = vsyncadd [#allocation3], %s16
      %s19 = sshll.u32 [#allocation2], 4
      %s20 = int_to_ptr.vmem [resolvable:$true] %s19
      %22 = dma.hbm_to_vmem [thread:$0]  %s2, 16, %s20, [#allocation3]
    $region13: #{generator_forward.6} parent=1 // pred_fallthru
      _
    // Predicated region
    $region14: #{generator_forward.6} parent=1 // pred_check
      _
    $region15: #{generator_forward.6} parent=1 // pred_check_branch
      %24 = sbr.rel (0) target = $region17
    $region16: #{generator_forward.6} parent=1 // pred_region
      %25 = dma.done [#allocation3], 16
    $region17: #{generator_forward.6} parent=1 // pred_fallthru
      _
    %v26 = vld [vmem:[%s0] sm:$0x3]
    %v27 = vld [vmem:[%s1] sm:$0xff]
    %v28 = vld [vmem:[%s1 + $0x8] sm:$0xff]
    %v29 = vld [vmem:[%s1 + $0x10] sm:$0xff]
    %v30 = vld [vmem:[%s1 + $0x18] sm:$0x3]
    %v31 = vld [vmem:[#allocation2] sm:$0x1]
    %v33 = vlaneseq
    %v34 = vshrl.u32 %v33, 7
    %v35 = vsub.s32 0, %v34
    %v36 = vrot.slane %v31, %v35
    %vm38 = vcmask 211968
    %v40 = vsel %vm38, %v26, 0
    %vm42 = vcmask 1041408
    %v44 = vsel %vm42, %v30, 0
    %46 = vmatprep.subr.mxu0 0.0
    %47 = vmatpush1.msra.mxu0 %v27
    %48 = vmatprep.subr.mxu0 0.0
    %49 = vmatpush1.msra.mxu0 %v28
    %50 = vmatprep.subr.mxu0 0.0
    %51 = vmatpush1.msra.mxu0 %v29
    %52 = vmatprep.subr.mxu0 0.0
    %53 = vmatpush1.msra.mxu0 %v44
    %54 = vmatprep.subr.mxu0 0.0
    %55 = vmatpush1.msra.mxu0 0.0
    %56 = vmatprep.subr.mxu0 0.0
    %57 = vmatpush1.msra.mxu0 0.0
    %58 = vmatprep.subr.mxu0 0.0
    %59 = vmatpush1.msra.mxu0 0.0
    %60 = vmatprep.subr.mxu0 0.0
    %61 = vmatpush1.msra.mxu0 0.0
    %62 = vmatprep.subr.mxu0 0.0
    %63 = vmatpush1.msra.mxu0 0.0
    %64 = vmatprep.subr.mxu0 0.0
    %65 = vmatpush1.msra.mxu0 0.0
    %66 = vmatprep.subr.mxu0 0.0
    %67 = vmatpush1.msra.mxu0 0.0
    %68 = vmatprep.subr.mxu0 0.0
    %69 = vmatpush1.msra.mxu0 0.0
    %70 = vmatprep.subr.mxu0 0.0
    %71 = vmatpush1.msra.mxu0 0.0
    %72 = vmatprep.subr.mxu0 0.0
    %73 = vmatpush1.msra.mxu0 0.0
    %74 = vmatprep.subr.mxu0 0.0
    %75 = vmatpush1.msra.mxu0 0.0
    %76 = vmatprep.subr.mxu0 0.0
    %77 = vmatpush1.msra.mxu0 0.0
    %78 = vmatprep.subr.mxu0 0.0
    %79 = vmatpush1.msra.mxu0 0.0
    %80 = vmatprep.subr.mxu0 0.0
    %81 = vmatpush1.msra.mxu0 0.0
    %82 = vmatprep.subr.mxu0 0.0
    %83 = vmatpush1.msra.mxu0 0.0
    %84 = vmatprep.subr.mxu0 0.0
    %85 = vmatpush1.msra.mxu0 0.0
    %86 = vmatprep.subr.mxu0 0.0
    %87 = vmatpush1.msra.mxu0 0.0
    %88 = vmatprep.subr.mxu0 0.0
    %89 = vmatpush1.msra.mxu0 0.0
    %90 = vmatprep.subr.mxu0 0.0
    %91 = vmatpush1.msra.mxu0 0.0
    %92 = vmatprep.subr.mxu0 0.0
    %93 = vmatpush1.msra.mxu0 0.0
    %94 = vmatprep.subr.mxu0 0.0
    %95 = vmatpush1.msra.mxu0 0.0
    %96 = vmatprep.subr.mxu0 0.0
    %97 = vmatpush1.msra.mxu0 0.0
    %98 = vmatprep.subr.mxu0 0.0
    %99 = vmatpush1.msra.mxu0 0.0
    %100 = vmatprep.subr.mxu0 0.0
    %101 = vmatpush1.msra.mxu0 0.0
    %102 = vmatprep.subr.mxu0 0.0
    %103 = vmatpush1.msra.mxu0 0.0
    %104 = vmatprep.subr.mxu0 0.0
    %105 = vmatpush1.msra.mxu0 0.0
    %106 = vmatprep.subr.mxu0 0.0
    %107 = vmatpush1.msra.mxu0 0.0
    %108 = vmatprep.subr.mxu0 0.0
    %109 = vmatpush1.msra.mxu0 0.0
    %110 = vmatprep.mubr.f32.mxu0 0.0
    %111 = vmatmul.mubr.f32.gmra.mrb[0].mxu0 %v40
    %v112 = vpop.f32.mrb[0].mxu0
    %v113 = vadd.f32 %v36, %v112
    %v114 = vpop.f32.mrb[0].mxu0
    %115 = vdwg.mxu0
    %vm116 = vcmask 123904
    %117 = vst.msk [vmem:[%s3] sm:$0x3] %vm116, %v113
    // Predicated region
    $region18: #{generator_forward.6} parent=1 // pred_check
      _
    $region19: #{generator_forward.6} parent=1 // pred_check_branch
      %119 = sbr.rel (0) target = $region21
    $region20: #{generator_forward.6} parent=1 // pred_region
      _
    $region21: #{generator_forward.6} parent=1 // pred_fallthru
      _
    // Predicated region
    $region22: #{generator_forward.6} parent=1 // pred_check
      _
    $region23: #{generator_forward.6} parent=1 // pred_check_branch
      %121 = sbr.rel (0) target = $region25
    $region24: #{generator_forward.6} parent=1 // pred_region
      _
    $region25: #{generator_forward.6} parent=1 // pred_fallthru
      _
    %122 = vsyncpa [#allocation3], 1

// kernel: generator_forward.7
$region0: #{generator_forward.7}
  #allocation0 [shape = 'u32[]', space=smem, size = 0x4, offset = 0x4, fixed_abs, tag = 'smem constant byte address 0x4 - core index']
  #allocation1 [shape = 'u32[144,128]{1,0:T(1,128)}', space=vmem, size = 0x12000, scoped, tag = 'internal scratch']
  %s0 = inlined_call_operand.vmem [shape: bf16[4,8,64], index: 0, kind: input, shape index: {}]
  %s1 = inlined_call_operand.hbm [shape: bf16[4,64,512], index: 1, kind: input, shape index: {}]
  %s2 = inlined_call_operand.hbm [shape: f32[1,512], index: 2, kind: input, shape index: {}]
  %s3 = inlined_call_operand.vmem [shape: bf16[4,8,512], index: 3, kind: output, shape index: {}]
  %s4 = sld [smem:[#allocation0]]
  $region53: #{generator_forward.7} parent=0
    _
  %s6 = ssub.s32 1, %s4
  %s7 = scalar_select 0, %s6, %s4
  $region1: #{generator_forward.7} parent=0
    #allocation2 [shape = 'u8[131072]{0}', space=vmem, size = 0x20000, scoped, tag = 'input window, operand 1']
    #allocation3 [shape = 's32[2]{0}', space=sflag, size = 0x8, scoped, tag = 'scoped memory for generator_forward.7']
    #allocation4 [shape = 'u8[2048]{0}', space=vmem, size = 0x800, scoped, tag = 'input window, operand 2, single buffered']
    #allocation5 [shape = 's32[1]{0}', space=sflag, size = 0x4, scoped, tag = 'scoped memory for generator_forward.7']
    %8 = vsyncpa [#allocation3], 0
    %s9 = scalar_lea.sflag [#allocation3], 1
    %10 = vsyncpa %s9, 0
    %11 = vsyncpa [#allocation5], 0
    loop: start=0, step=1, limit=6
    $region2: #{generator_forward.7} parent=1 // loop_pre_header
      _
    $region3: #{generator_forward.7} parent=1 // loop_header
      %s13 = sphi 0, %s17
      %p14 = scmp.ge.s32.totalorder %s13, 6
      %s20 = sphi 0, %s32
      %s21 = sphi 0, %s28
      %s22 = sphi 0, %s20
      %s23 = sphi 0, %s21
      %s24 = sphi 0, %s22
      %s25 = sphi 0, %s23
      %s37 = sphi 0, %s39
      %s40 = sphi 0, %s37
      %s41 = sphi 0, %s40
      %s57 = sphi 0, %s41
      %s63 = sphi 0, %s65
      %s66 = sphi 0, %s63
      %s67 = sphi 0, %s66
      %s83 = sphi 0, %s67
      %s87 = sphi 0, %s87
      %s89 = sphi 0, %s87
      %s90 = sphi 0, %s89
      %s104 = sphi 0, %s90
      %s112 = sphi 0, %s114
      %s115 = sphi 0, %s112
      %s116 = sphi 0, %s115
      %s132 = sphi 0, %s116
    $region4: #{generator_forward.7} parent=1 // loop_header_branch
      %16 = sbr.rel (%p14) target = $region8
    $region5: #{generator_forward.7} parent=1 // loop_body
      %s18 = ssub.s32 %s13, 1
      %s19 = ssub.s32 %s13, 2
      %s26 = sadd.s32 1, %s21
      %p27 = scmp.ge.s32.totalorder %s26, 1
      %s28 = scalar_select %p27, 0, %s26
      %s29 = sadd.s32 1, %s20
      %s30 = scalar_select %p27, %s29, %s20
      %p31 = scmp.ge.s32.totalorder %s30, 4
      %s32 = scalar_select %p31, 0, %s30
      %s33 = ssub.s32 %s20, %s32
      %s34 = ssub.s32 %s21, %s28
      %s35 = sor.u32 %s33, %s34
      %p36 = scmp.eq.s32.totalorder %s35, 0
      %s38 = sadd.s32 %s37, 1
      %s39 = scalar_select %p36, %s37, %s38
      %p42 = pneg %p36
      %p43 = scmp.eq.s32.totalorder %s13, 3
      %p44 = por %p42, %p43
      %p45 = scmp.ne.s32.totalorder %s37, %s40
      %p46 = scmp.eq.s32.totalorder %s13, 0
      %p47 = por %p45, %p46
      %p48 = scmp.ne.s32.totalorder %s37, %s40
      %p49 = scmp.eq.s32.totalorder %s18, 3
      %p50 = por %p48, %p49
      %p51 = scmp.ne.s32.totalorder %s40, %s41
      %p52 = scmp.eq.s32.totalorder %s18, 0
      %p53 = por %p51, %p52
      %p54 = scmp.ne.s32.totalorder %s40, %s41
      %p55 = scmp.eq.s32.totalorder %s19, 3
      %p56 = por %p54, %p55
      %p58 = scmp.ne.s32.totalorder %s41, %s57
      %p59 = scmp.eq.s32.totalorder %s19, 0
      %p60 = por %p58, %p59
      %s61 = ssub.s32 %s20, %s32
      %p62 = scmp.eq.s32.totalorder %s61, 0
      %s64 = sadd.s32 %s63, 1
      %s65 = scalar_select %p62, %s63, %s64
      %p68 = pneg %p62
      %p69 = scmp.eq.s32.totalorder %s13, 3
      %p70 = por %p68, %p69
      %p71 = scmp.ne.s32.totalorder %s63, %s66
      %p72 = scmp.eq.s32.totalorder %s13, 0
      %p73 = por %p71, %p72
      %p74 = scmp.ne.s32.totalorder %s63, %s66
      %p75 = scmp.eq.s32.totalorder %s18, 3
      %p76 = por %p74, %p75
      %p77 = scmp.ne.s32.totalorder %s66, %s67
      %p78 = scmp.eq.s32.totalorder %s18, 0
      %p79 = por %p77, %p78
      %p80 = scmp.ne.s32.totalorder %s66, %s67
      %p81 = scmp.eq.s32.totalorder %s19, 3
      %p82 = por %p80, %p81
      %p84 = scmp.ne.s32.totalorder %s67, %s83
      %p85 = scmp.eq.s32.totalorder %s19, 0
      %p86 = por %p84, %p85
      %s88 = sadd.s32 %s87, 1
      %p91 = scmp.eq.s32.totalorder %s13, 3
      %p92 = scmp.ne.s32.totalorder %s87, %s89
      %p93 = scmp.eq.s32.totalorder %s13, 0
      %p94 = por %p92, %p93
      %p95 = scmp.ne.s32.totalorder %s87, %s89
      %p96 = scmp.eq.s32.totalorder %s18, 3
      %p97 = por %p95, %p96
      %p98 = scmp.ne.s32.totalorder %s89, %s90
      %p99 = scmp.eq.s32.totalorder %s18, 0
      %p100 = por %p98, %p99
      %p101 = scmp.ne.s32.totalorder %s89, %s90
      %p102 = scmp.eq.s32.totalorder %s19, 3
      %p103 = por %p101, %p102
      %p105 = scmp.ne.s32.totalorder %s90, %s104
      %p106 = scmp.eq.s32.totalorder %s19, 0
      %p107 = por %p105, %p106
      %s108 = ssub.s32 %s20, %s32
      %s109 = ssub.s32 %s21, %s28
      %s110 = sor.u32 %s108, %s109
      %p111 = scmp.eq.s32.totalorder %s110, 0
      %s113 = sadd.s32 %s112, 1
      %s114 = scalar_select %p111, %s112, %s113
      %p117 = pneg %p111
      %p118 = scmp.eq.s32.totalorder %s13, 3
      %p119 = por %p117, %p118
      %p120 = scmp.ne.s32.totalorder %s112, %s115
      %p121 = scmp.eq.s32.totalorder %s13, 0
      %p122 = por %p120, %p121
      %p123 = scmp.ne.s32.totalorder %s112, %s115
      %p124 = scmp.eq.s32.totalorder %s18, 3
      %p125 = por %p123, %p124
      %p126 = scmp.ne.s32.totalorder %s115, %s116
      %p127 = scmp.eq.s32.totalorder %s18, 0
      %p128 = por %p126, %p127
      %p129 = scmp.ne.s32.totalorder %s115, %s116
      %p130 = scmp.eq.s32.totalorder %s19, 3
      %p131 = por %p129, %p130
      %p133 = scmp.ne.s32.totalorder %s116, %s132
      %p134 = scmp.eq.s32.totalorder %s19, 0
      %p135 = por %p133, %p134
      %p136 = scmp.le.s32.totalorder 1, %s13
      %p137 = scmp.lt.s32.totalorder %s13, 5
      %p138 = pnand %p136, %p137
      %p139 = pneg %p138
      // Predicated region
      $region9: #{generator_forward.7} parent=5 // pred_check
        _
      $region10: #{generator_forward.7} parent=5 // pred_check_branch
        %141 = sbr.rel (%p138) target = $region12
      $region11: #{generator_forward.7} parent=5 // pred_region
        %s142 = ssub.s32 %s13, 1
        // Predicated region
        $region13: #{generator_forward.7} parent=11 // pred_check
          %p143 = pneg %p100
        $region14: #{generator_forward.7} parent=11 // pred_check_branch
          %145 = sbr.rel (%p143) target = $region16
        $region15: #{generator_forward.7} parent=11 // pred_region
          %s147 = ssub.s32 64, 64
          %148 = vsyncadd [#allocation5], %s147
          %s150 = sshll.u32 [#allocation4], 4
          %s151 = int_to_ptr.vmem [resolvable:$true] %s150
          %153 = dma.hbm_to_vmem [thread:$0]  %s2, 64, %s151, [#allocation5]
        $region16: #{generator_forward.7} parent=11 // pred_fallthru
          _
      $region12: #{generator_forward.7} parent=5 // pred_fallthru
        _
      %p154 = scmp.lt.s32.totalorder %s13, 4
      // Predicated region
      $region17: #{generator_forward.7} parent=5 // pred_check
        %p155 = pneg %p154
      $region18: #{generator_forward.7} parent=5 // pred_check_branch
        %157 = sbr.rel (%p155) target = $region20
      $region19: #{generator_forward.7} parent=5 // pred_region
        // Predicated region
        $region21: #{generator_forward.7} parent=19 // pred_check
          %p158 = pneg %p47
        $region22: #{generator_forward.7} parent=19 // pred_check_branch
          %160 = sbr.rel (%p158) target = $region24
        $region23: #{generator_forward.7} parent=19 // pred_region
          %p161 = scmp.lt.s32.totalorder %s20, 3
          %s162 = scalar_select %p161, %s20, 3
          %p163 = scmp.lt.s32.totalorder %s21, 0
          %s164 = scalar_select %p163, %s21, 0
          %s165 = sadd.s32 %s164, %s162
          %s166 = smul.addr %s165, 4
          %s167 = scalar_lea.vmem %s0, %s166
        $region24: #{generator_forward.7} parent=19 // pred_fallthru
          _
        // Predicated region
        $region25: #{generator_forward.7} parent=19 // pred_check
          %p168 = pneg %p73
        $region26: #{generator_forward.7} parent=19 // pred_check_branch
          %170 = sbr.rel (%p168) target = $region28
        $region27: #{generator_forward.7} parent=19 // pred_region
          %s171 = sand.u32 %s63, 1
          %s172 = scalar_lea.sflag [#allocation3], %s171
          %s173 = sand.u32 %s63, 1
          %s174 = smul.addr %s173, 128
          %s175 = scalar_lea.vmem [#allocation2], %s174
          %s177 = ssub.s32 2048, 2048
          %178 = vsyncadd %s172, %s177
          %s179 = smul.addr %s20, 32
          %s180 = smul.addr %s179, 64
          %s181 = scalar_lea.hbm %s1, %s180
          %s182 = sshll.u32 %s175, 4
          %s183 = int_to_ptr.vmem [resolvable:$true] %s182
          %188 = dma.hbm_to_vmem [thread:$0]  %s181, 2048, %s183, %s172, 256, 256, 16
        $region28: #{generator_forward.7} parent=19 // pred_fallthru
          _
      $region20: #{generator_forward.7} parent=5 // pred_fallthru
        _
      %p189 = scmp.le.s32.totalorder 1, %s13
      %p190 = scmp.lt.s32.totalorder %s13, 5
      %p191 = pnand %p189, %p190
      %p192 = pneg %p191
      // Predicated region
      $region29: #{generator_forward.7} parent=5 // pred_check
        _
      $region30: #{generator_forward.7} parent=5 // pred_check_branch
        %194 = sbr.rel (%p191) target = $region32
      $region31: #{generator_forward.7} parent=5 // pred_region
        %s195 = ssub.s32 %s13, 1
        %s196 = sand.u32 %s66, 1
        %s197 = scalar_lea.sflag [#allocation3], %s196
        %s198 = sand.u32 %s66, 1
        %s199 = smul.addr %s198, 128
        %s200 = scalar_lea.vmem [#allocation2], %s199
        // Predicated region
        $region33: #{generator_forward.7} parent=31 // pred_check
          %p201 = pneg %p79
        $region34: #{generator_forward.7} parent=31 // pred_check_branch
          %203 = sbr.rel (%p201) target = $region36
        $region35: #{generator_forward.7} parent=31 // pred_region
          %204 = dma.done %s197, 2048
        $region36: #{generator_forward.7} parent=31 // pred_fallthru
          _
        // Predicated region
        $region37: #{generator_forward.7} parent=31 // pred_check
          %p205 = pneg %p100
        $region38: #{generator_forward.7} parent=31 // pred_check_branch
          %207 = sbr.rel (%p205) target = $region40
        $region39: #{generator_forward.7} parent=31 // pred_region
          %208 = dma.done [#allocation5], 64
        $region40: #{generator_forward.7} parent=31 // pred_fallthru
          _
        %p209 = scmp.lt.s32.totalorder %s22, 3
        %s210 = scalar_select %p209, %s22, 3
        %p211 = scmp.lt.s32.totalorder %s23, 0
        %s212 = scalar_select %p211, %s23, 0
        %s213 = sadd.s32 %s212, %s210
        %s214 = smul.addr %s213, 4
        %s215 = scalar_lea.vmem %s0, %s214
        %p216 = pneg %p53
        %p217 = pneg %p50
        %s218 = sand.u32 %s66, 1
        %s219 = scalar_lea.sflag [#allocation3], %s218
        %s220 = sand.u32 %s66, 1
        %s221 = smul.addr %s220, 128
        %s222 = scalar_lea.vmem [#allocation2], %s221
        %p223 = pneg %p79
        %p224 = pneg %p76
        %p225 = pneg %p100
        %p226 = pneg %p97
        %p227 = pneg %p128
        %p228 = pneg %p125
        %p229 = scmp.lt.s32.totalorder %s22, 3
        %s230 = scalar_select %p229, %s22, 3
        %p231 = scmp.lt.s32.totalorder %s23, 0
        %s232 = scalar_select %p231, %s23, 0
        %s233 = smul.addr %s232, 4
        %s234 = smul.addr %s230, 4
        %s235 = sadd.s32 %s233, %s234
        %s236 = smul.addr %s235, 4
        %s237 = scalar_lea.vmem %s3, %s236
        %p238 = scmp.lt.s32.totalorder %s22, 3
        %s239 = scalar_select %p238, %s22, 3
        %p240 = scmp.lt.s32.totalorder %s23, 0
        %s241 = scalar_select %p240, %s23, 0
        %s242 = sadd.s32 %s241, %s239
        %s243 = smul.addr %s242, 4
        %s244 = scalar_lea.vmem %s0, %s243
        %p245 = scmp.lt.s32.totalorder %s22, 3
        %s246 = scalar_select %p245, %s22, 3
        %p247 = scmp.lt.s32.totalorder %s23, 0
        %s248 = scalar_select %p247, %s23, 0
        %s249 = smul.addr %s248, 4
        %s250 = smul.addr %s246, 4
        %s251 = sadd.s32 %s249, %s250
        %s252 = smul.addr %s251, 4
        %s253 = scalar_lea.vmem %s3, %s252
        %v255 = vld [vmem:[%s244] sm:$0xf]
        %v256 = vld [vmem:[%s200] sm:$0xff]
        %v257 = vld [vmem:[%s200 + $0x8] sm:$0xff]
        %v258 = vld [vmem:[%s200 + $0x10] sm:$0xff]
        %v259 = vld [vmem:[%s200 + $0x18] sm:$0xff]
        %v260 = vld [vmem:[%s200 + $0x20] sm:$0xff]
        %v261 = vld [vmem:[%s200 + $0x28] sm:$0xff]
        %v262 = vld [vmem:[%s200 + $0x30] sm:$0xff]
        %v263 = vld [vmem:[%s200 + $0x38] sm:$0xff]
        %v264 = vld [vmem:[%s200 + $0x40] sm:$0xff]
        %v265 = vld [vmem:[%s200 + $0x48] sm:$0xff]
        %v266 = vld [vmem:[%s200 + $0x50] sm:$0xff]
        %v267 = vld [vmem:[%s200 + $0x58] sm:$0xff]
        %v268 = vld [vmem:[%s200 + $0x60] sm:$0xff]
        %v269 = vld [vmem:[%s200 + $0x68] sm:$0xff]
        %v270 = vld [vmem:[%s200 + $0x70] sm:$0xff]
        %v271 = vld [vmem:[%s200 + $0x78] sm:$0xff]
        %v272 = vld [vmem:[#allocation4] sm:$0xf]
        %v274 = vlaneseq
        %v275 = vshrl.u32 %v274, 7
        %v276 = vsub.s32 0, %v275
        %v277 = vrot.slane %v272, %v276
        %v278 = vlaneseq
        %v279 = vshrl.u32 %v278, 7
        %v280 = vsub.s32 1, %v279
        %v281 = vrot.slane %v272, %v280
        %v282 = vlaneseq
        %v283 = vshrl.u32 %v282, 7
        %v284 = vsub.s32 2, %v283
        %v285 = vrot.slane %v272, %v284
        %v286 = vlaneseq
        %v287 = vshrl.u32 %v286, 7
        %v288 = vsub.s32 3, %v287
        %v289 = vrot.slane %v272, %v288
        %v310 = vunpack.c.l.b16 %v256
        %v311 = vunpack.c.h.b16 %v256
        %v312 = vunpack.c.l.b16 %v257
        %v313 = vunpack.c.h.b16 %v257
        %v314 = vunpack.c.l.b16 %v258
        %v315 = vunpack.c.h.b16 %v258
        %v316 = vunpack.c.l.b16 %v259
        %v317 = vunpack.c.h.b16 %v259
        %v318 = vunpack.c.l.b16 %v260
        %v319 = vunpack.c.h.b16 %v260
        %v320 = vunpack.c.l.b16 %v261
        %v321 = vunpack.c.h.b16 %v261
        %v322 = vunpack.c.l.b16 %v262
        %v323 = vunpack.c.h.b16 %v262
        %v324 = vunpack.c.l.b16 %v263
        %v325 = vunpack.c.h.b16 %v263
        %v326 = vunpack.c.l.b16 %v264
        %v327 = vunpack.c.h.b16 %v264
        %v328 = vunpack.c.l.b16 %v265
        %v329 = vunpack.c.h.b16 %v265
        %v330 = vunpack.c.l.b16 %v266
        %v331 = vunpack.c.h.b16 %v266
        %v332 = vunpack.c.l.b16 %v267
        %v333 = vunpack.c.h.b16 %v267
        %v334 = vunpack.c.l.b16 %v268
        %v335 = vunpack.c.h.b16 %v268
        %v336 = vunpack.c.l.b16 %v269
        %v337 = vunpack.c.h.b16 %v269
        %v338 = vunpack.c.l.b16 %v270
        %v339 = vunpack.c.h.b16 %v270
        %v340 = vunpack.c.l.b16 %v271
        %v341 = vunpack.c.h.b16 %v271
        %v342 = vpack.c.b16 %v314, %v310
        %v343 = vpack.c.b16 %v315, %v311
        %v344 = vpack.c.b16 %v316, %v312
        %v345 = vpack.c.b16 %v317, %v313
        %v346 = vpack.c.b16 %v322, %v318
        %v347 = vpack.c.b16 %v323, %v319
        %v348 = vpack.c.b16 %v324, %v320
        %v349 = vpack.c.b16 %v325, %v321
        %v350 = vpack.c.b16 %v330, %v326
        %v351 = vpack.c.b16 %v331, %v327
        %v352 = vpack.c.b16 %v332, %v328
        %v353 = vpack.c.b16 %v333, %v329
        %v354 = vpack.c.b16 %v338, %v334
        %v355 = vpack.c.b16 %v339, %v335
        %v356 = vpack.c.b16 %v340, %v336
        %v357 = vpack.c.b16 %v341, %v337
        %vm374 = vcmask 523264
        %v376 = vsel %vm374, %v255, 0
        %378 = vmatprep.subr.bf16.mxu0 %v343
        %379 = vmatpush1.bf16.msra.mxu0 %v342
        %380 = vmatprep.subr.bf16.mxu0 %v347
        %381 = vmatpush1.bf16.msra.mxu0 %v346
        %382 = vmatprep.subr.bf16.mxu0 %v351
        %383 = vmatpush1.bf16.msra.mxu0 %v350
        %384 = vmatprep.subr.bf16.mxu0 %v355
        %385 = vmatpush1.bf16.msra.mxu0 %v354
        %386 = vmatprep.subr.bf16.mxu0 0
        %387 = vmatpush1.bf16.msra.mxu0 0
        %388 = vmatprep.subr.bf16.mxu0 0
        %389 = vmatpush1.bf16.msra.mxu0 0
        %390 = vmatprep.subr.bf16.mxu0 0
        %391 = vmatpush1.bf16.msra.mxu0 0
        %392 = vmatprep.subr.bf16.mxu0 0
        %393 = vmatpush1.bf16.msra.mxu0 0
        %394 = vmatprep.subr.bf16.mxu0 0
        %395 = vmatpush1.bf16.msra.mxu0 0
        %396 = vmatprep.subr.bf16.mxu0 0
        %397 = vmatpush1.bf16.msra.mxu0 0
        %398 = vmatprep.subr.bf16.mxu0 0
        %399 = vmatpush1.bf16.msra.mxu0 0
        %400 = vmatprep.subr.bf16.mxu0 0
        %401 = vmatpush1.bf16.msra.mxu0 0
        %402 = vmatprep.subr.bf16.mxu0 0
        %403 = vmatpush1.bf16.msra.mxu0 0
        %404 = vmatprep.subr.bf16.mxu0 0
        %405 = vmatpush1.bf16.msra.mxu0 0
        %406 = vmatprep.subr.bf16.mxu0 0
        %407 = vmatpush1.bf16.msra.mxu0 0
        %408 = vmatprep.subr.bf16.mxu0 0
        %409 = vmatpush1.bf16.msra.mxu0 0
        %410 = vmatprep.mubr.bf16.mxu0 0
        %411 = vmatmul.mubr.bf16.gmra.mrb[0].mxu0 %v376
        %v412 = vpop.f32.mrb[0].mxu0
        %v413 = vadd.f32 %v277, %v412
        %v414 = vpop.f32.mrb[0].mxu0
        %v415 = vadd.f32 %v281, %v414
        %v416 = vpop.f32.mrb[0].mxu0
        %v417 = vpop.f32.mrb[0].mxu0
        %418 = vdwg.mxu0
        %419 = vmatprep.subr.bf16.mxu0 %v345
        %420 = vmatpush1.bf16.msra.mxu0 %v344
        %421 = vmatprep.subr.bf16.mxu0 %v349
        %422 = vmatpush1.bf16.msra.mxu0 %v348
        %423 = vmatprep.subr.bf16.mxu0 %v353
        %424 = vmatpush1.bf16.msra.mxu0 %v352
        %425 = vmatprep.subr.bf16.mxu0 %v357
        %426 = vmatpush1.bf16.msra.mxu0 %v356
        %427 = vmatprep.subr.bf16.mxu0 0
        %428 = vmatpush1.bf16.msra.mxu0 0
        %429 = vmatprep.subr.bf16.mxu0 0
        %430 = vmatpush1.bf16.msra.mxu0 0
        %431 = vmatprep.subr.bf16.mxu0 0
        %432 = vmatpush1.bf16.msra.mxu0 0
        %433 = vmatprep.subr.bf16.mxu0 0
        %434 = vmatpush1.bf16.msra.mxu0 0
        %435 = vmatprep.subr.bf16.mxu0 0
        %436 = vmatpush1.bf16.msra.mxu0 0
        %437 = vmatprep.subr.bf16.mxu0 0
        %438 = vmatpush1.bf16.msra.mxu0 0
        %439 = vmatprep.subr.bf16.mxu0 0
        %440 = vmatpush1.bf16.msra.mxu0 0
        %441 = vmatprep.subr.bf16.mxu0 0
        %442 = vmatpush1.bf16.msra.mxu0 0
        %443 = vmatprep.subr.bf16.mxu0 0
        %444 = vmatpush1.bf16.msra.mxu0 0
        %445 = vmatprep.subr.bf16.mxu0 0
        %446 = vmatpush1.bf16.msra.mxu0 0
        %447 = vmatprep.subr.bf16.mxu0 0
        %448 = vmatpush1.bf16.msra.mxu0 0
        %449 = vmatprep.subr.bf16.mxu0 0
        %450 = vmatpush1.bf16.msra.mxu0 0
        %451 = vmatprep.mubr.bf16.mxu0 0
        %452 = vmatmul.mubr.bf16.gmra.mrb[0].mxu0 %v376
        %v453 = vpop.f32.mrb[0].mxu0
        %v454 = vadd.f32 %v285, %v453
        %v455 = vpop.f32.mrb[0].mxu0
        %v456 = vadd.f32 %v289, %v455
        %v457 = vpop.f32.mrb[0].mxu0
        %v458 = vpop.f32.mrb[0].mxu0
        %459 = vdwg.mxu0
        %v460 = vmax.f32 %v413, 0.0
        %v461 = vmax.f32 %v415, 0.0
        %v462 = vmax.f32 %v454, 0.0
        %v463 = vmax.f32 %v456, 0.0
        %v464 = vpack.c.bf16 %v460, %v460
        %v465 = vpack.c.bf16 %v461, %v461
        %v466 = vpack.c.bf16 %v462, %v462
        %v467 = vpack.c.bf16 %v463, %v463
        %v472 = vunpack.c.l.b16 %v464
        %v473 = vunpack.c.l.b16 %v465
        %v474 = vunpack.c.l.b16 %v466
        %v475 = vunpack.c.l.b16 %v467
        %v476 = vpack.c.b16 %v473, %v472
        %v477 = vpack.c.b16 %v475, %v474
        %480 = vst [vmem:[%s253] sm:$0xff] %v476
        %481 = vst [vmem:[%s253 + $0x8] sm:$0xff] %v477
        %p482 = scmp.lt.s32.totalorder %s22, 3
        %s483 = scalar_select %p482, %s22, 3
        %p484 = scmp.lt.s32.totalorder %s23, 0
        %s485 = scalar_select %p484, %s23, 0
        %s486 = smul.addr %s485, 4
        %s487 = smul.addr %s483, 4
        %s488 = sadd.s32 %s486, %s487
        %s489 = smul.addr %s488, 4
        %s490 = scalar_lea.vmem %s3, %s489
        // Predicated region
        $region41: #{generator_forward.7} parent=31 // pred_check
          %p491 = pneg %p125
        $region42: #{generator_forward.7} parent=31 // pred_check_branch
          %493 = sbr.rel (%p491) target = $region44
        $region43: #{generator_forward.7} parent=31 // pred_region
          _
        $region44: #{generator_forward.7} parent=31 // pred_fallthru
          _
      $region32: #{generator_forward.7} parent=5 // pred_fallthru
        _
      %p494 = scmp.le.s32.totalorder 2, %s13
      // Predicated region
      $region45: #{generator_forward.7} parent=5 // pred_check
        %p495 = pneg %p494
      $region46: #{generator_forward.7} parent=5 // pred_check_branch
        %497 = sbr.rel (%p495) target = $region48
      $region47: #{generator_forward.7} parent=5 // pred_region
        %s498 = ssub.s32 %s13, 2
        // Predicated region
        $region49: #{generator_forward.7} parent=47 // pred_check
          %p499 = pneg %p131
        $region50: #{generator_forward.7} parent=47 // pred_check_branch
          %501 = sbr.rel (%p499) target = $region52
        $region51: #{generator_forward.7} parent=47 // pred_region
          %p502 = scmp.lt.s32.totalorder %s24, 3
          %s503 = scalar_select %p502, %s24, 3
          %p504 = scmp.lt.s32.totalorder %s25, 0
          %s505 = scalar_select %p504, %s25, 0
          %s506 = smul.addr %s505, 4
          %s507 = smul.addr %s503, 4
          %s508 = sadd.s32 %s506, %s507
          %s509 = smul.addr %s508, 4
          %s510 = scalar_lea.vmem %s3, %s509
        $region52: #{generator_forward.7} parent=47 // pred_fallthru
          _
      $region48: #{generator_forward.7} parent=5 // pred_fallthru
        _
    $region6: #{generator_forward.7} parent=1 // loop_footer
      %s17 = sadd.s32 1, %s13
    $region7: #{generator_forward.7} parent=1 // loop_footer_branch
      %12 = sbr.rel target = $region3
    $region8: #{generator_forward.7} parent=1 // loop_exit
      _
    %511 = vsyncpa [#allocation3], 1
    %s512 = scalar_lea.sflag [#allocation3], 1
    %513 = vsyncpa %s512, 1
    %514 = vsyncpa [#allocation5], 1

// kernel: generator_forward.8
$region0: #{generator_forward.8}
  #allocation0 [shape = 'u32[]', space=smem, size = 0x4, offset = 0x4, fixed_abs, tag = 'smem constant byte address 0x4 - core index']
  #allocation1 [shape = 'u32[144,128]{1,0:T(1,128)}', space=vmem, size = 0x12000, scoped, tag = 'internal scratch']
  %s0 = inlined_call_operand.vmem [shape: bf16[4,8,2048], index: 0, kind: input, shape index: {}]
  %s1 = inlined_call_operand.hbm [shape: bf16[4,2048,256], index: 1, kind: input, shape index: {}]
  %s2 = inlined_call_operand.hbm [shape: f32[1,256], index: 2, kind: input, shape index: {}]
  %s3 = inlined_call_operand.vmem [shape: bf16[4,8,256], index: 3, kind: output, shape index: {}]
  %s4 = sld [smem:[#allocation0]]
  $region53: #{generator_forward.8} parent=0
    _
  %s6 = ssub.s32 1, %s4
  %s7 = scalar_select 0, %s6, %s4
  $region1: #{generator_forward.8} parent=0
    #allocation2 [shape = 'u8[2097152]{0}', space=vmem, size = 0x200000, scoped, tag = 'input window, operand 1']
    #allocation3 [shape = 's32[2]{0}', space=sflag, size = 0x8, scoped, tag = 'scoped memory for generator_forward.8']
    #allocation4 [shape = 'u8[1024]{0}', space=vmem, size = 0x400, scoped, tag = 'input window, operand 2, single buffered']
    #allocation5 [shape = 's32[1]{0}', space=sflag, size = 0x4, scoped, tag = 'scoped memory for generator_forward.8']
    %8 = vsyncpa [#allocation3], 0
    %s9 = scalar_lea.sflag [#allocation3], 1
    %10 = vsyncpa %s9, 0
    %11 = vsyncpa [#allocation5], 0
    loop: start=0, step=1, limit=6
    $region2: #{generator_forward.8} parent=1 // loop_pre_header
      _
    $region3: #{generator_forward.8} parent=1 // loop_header
      %s13 = sphi 0, %s17
      %p14 = scmp.ge.s32.totalorder %s13, 6
      %s20 = sphi 0, %s32
      %s21 = sphi 0, %s28
      %s22 = sphi 0, %s20
      %s23 = sphi 0, %s21
      %s24 = sphi 0, %s22
      %s25 = sphi 0, %s23
      %s37 = sphi 0, %s39
      %s40 = sphi 0, %s37
      %s41 = sphi 0, %s40
      %s57 = sphi 0, %s41
      %s63 = sphi 0, %s65
      %s66 = sphi 0, %s63
      %s67 = sphi 0, %s66
      %s83 = sphi 0, %s67
      %s87 = sphi 0, %s87
      %s89 = sphi 0, %s87
      %s90 = sphi 0, %s89
      %s104 = sphi 0, %s90
      %s112 = sphi 0, %s114
      %s115 = sphi 0, %s112
      %s116 = sphi 0, %s115
      %s132 = sphi 0, %s116
    $region4: #{generator_forward.8} parent=1 // loop_header_branch
      %16 = sbr.rel (%p14) target = $region8
    $region5: #{generator_forward.8} parent=1 // loop_body
      %s18 = ssub.s32 %s13, 1
      %s19 = ssub.s32 %s13, 2
      %s26 = sadd.s32 1, %s21
      %p27 = scmp.ge.s32.totalorder %s26, 1
      %s28 = scalar_select %p27, 0, %s26
      %s29 = sadd.s32 1, %s20
      %s30 = scalar_select %p27, %s29, %s20
      %p31 = scmp.ge.s32.totalorder %s30, 4
      %s32 = scalar_select %p31, 0, %s30
      %s33 = ssub.s32 %s20, %s32
      %s34 = ssub.s32 %s21, %s28
      %s35 = sor.u32 %s33, %s34
      %p36 = scmp.eq.s32.totalorder %s35, 0
      %s38 = sadd.s32 %s37, 1
      %s39 = scalar_select %p36, %s37, %s38
      %p42 = pneg %p36
      %p43 = scmp.eq.s32.totalorder %s13, 3
      %p44 = por %p42, %p43
      %p45 = scmp.ne.s32.totalorder %s37, %s40
      %p46 = scmp.eq.s32.totalorder %s13, 0
      %p47 = por %p45, %p46
      %p48 = scmp.ne.s32.totalorder %s37, %s40
      %p49 = scmp.eq.s32.totalorder %s18, 3
      %p50 = por %p48, %p49
      %p51 = scmp.ne.s32.totalorder %s40, %s41
      %p52 = scmp.eq.s32.totalorder %s18, 0
      %p53 = por %p51, %p52
      %p54 = scmp.ne.s32.totalorder %s40, %s41
      %p55 = scmp.eq.s32.totalorder %s19, 3
      %p56 = por %p54, %p55
      %p58 = scmp.ne.s32.totalorder %s41, %s57
      %p59 = scmp.eq.s32.totalorder %s19, 0
      %p60 = por %p58, %p59
      %s61 = ssub.s32 %s20, %s32
      %p62 = scmp.eq.s32.totalorder %s61, 0
      %s64 = sadd.s32 %s63, 1
      %s65 = scalar_select %p62, %s63, %s64
      %p68 = pneg %p62
      %p69 = scmp.eq.s32.totalorder %s13, 3
      %p70 = por %p68, %p69
      %p71 = scmp.ne.s32.totalorder %s63, %s66
      %p72 = scmp.eq.s32.totalorder %s13, 0
      %p73 = por %p71, %p72
      %p74 = scmp.ne.s32.totalorder %s63, %s66
      %p75 = scmp.eq.s32.totalorder %s18, 3
      %p76 = por %p74, %p75
      %p77 = scmp.ne.s32.totalorder %s66, %s67
      %p78 = scmp.eq.s32.totalorder %s18, 0
      %p79 = por %p77, %p78
      %p80 = scmp.ne.s32.totalorder %s66, %s67
      %p81 = scmp.eq.s32.totalorder %s19, 3
      %p82 = por %p80, %p81
      %p84 = scmp.ne.s32.totalorder %s67, %s83
      %p85 = scmp.eq.s32.totalorder %s19, 0
      %p86 = por %p84, %p85
      %s88 = sadd.s32 %s87, 1
      %p91 = scmp.eq.s32.totalorder %s13, 3
      %p92 = scmp.ne.s32.totalorder %s87, %s89
      %p93 = scmp.eq.s32.totalorder %s13, 0
      %p94 = por %p92, %p93
      %p95 = scmp.ne.s32.totalorder %s87, %s89
      %p96 = scmp.eq.s32.totalorder %s18, 3
      %p97 = por %p95, %p96
      %p98 = scmp.ne.s32.totalorder %s89, %s90
      %p99 = scmp.eq.s32.totalorder %s18, 0
      %p100 = por %p98, %p99
      %p101 = scmp.ne.s32.totalorder %s89, %s90
      %p102 = scmp.eq.s32.totalorder %s19, 3
      %p103 = por %p101, %p102
      %p105 = scmp.ne.s32.totalorder %s90, %s104
      %p106 = scmp.eq.s32.totalorder %s19, 0
      %p107 = por %p105, %p106
      %s108 = ssub.s32 %s20, %s32
      %s109 = ssub.s32 %s21, %s28
      %s110 = sor.u32 %s108, %s109
      %p111 = scmp.eq.s32.totalorder %s110, 0
      %s113 = sadd.s32 %s112, 1
      %s114 = scalar_select %p111, %s112, %s113
      %p117 = pneg %p111
      %p118 = scmp.eq.s32.totalorder %s13, 3
      %p119 = por %p117, %p118
      %p120 = scmp.ne.s32.totalorder %s112, %s115
      %p121 = scmp.eq.s32.totalorder %s13, 0
      %p122 = por %p120, %p121
      %p123 = scmp.ne.s32.totalorder %s112, %s115
      %p124 = scmp.eq.s32.totalorder %s18, 3
      %p125 = por %p123, %p124
      %p126 = scmp.ne.s32.totalorder %s115, %s116
      %p127 = scmp.eq.s32.totalorder %s18, 0
      %p128 = por %p126, %p127
      %p129 = scmp.ne.s32.totalorder %s115, %s116
      %p130 = scmp.eq.s32.totalorder %s19, 3
      %p131 = por %p129, %p130
      %p133 = scmp.ne.s32.totalorder %s116, %s132
      %p134 = scmp.eq.s32.totalorder %s19, 0
      %p135 = por %p133, %p134
      %p136 = scmp.le.s32.totalorder 1, %s13
      %p137 = scmp.lt.s32.totalorder %s13, 5
      %p138 = pnand %p136, %p137
      %p139 = pneg %p138
      // Predicated region
      $region9: #{generator_forward.8} parent=5 // pred_check
        _
      $region10: #{generator_forward.8} parent=5 // pred_check_branch
        %141 = sbr.rel (%p138) target = $region12
      $region11: #{generator_forward.8} parent=5 // pred_region
        %s142 = ssub.s32 %s13, 1
        // Predicated region
        $region13: #{generator_forward.8} parent=11 // pred_check
          %p143 = pneg %p100
        $region14: #{generator_forward.8} parent=11 // pred_check_branch
          %145 = sbr.rel (%p143) target = $region16
        $region15: #{generator_forward.8} parent=11 // pred_region
          %s147 = ssub.s32 32, 32
          %148 = vsyncadd [#allocation5], %s147
          %s150 = sshll.u32 [#allocation4], 4
          %s151 = int_to_ptr.vmem [resolvable:$true] %s150
          %153 = dma.hbm_to_vmem [thread:$0]  %s2, 32, %s151, [#allocation5]
        $region16: #{generator_forward.8} parent=11 // pred_fallthru
          _
      $region12: #{generator_forward.8} parent=5 // pred_fallthru
        _
      %p154 = scmp.lt.s32.totalorder %s13, 4
      // Predicated region
      $region17: #{generator_forward.8} parent=5 // pred_check
        %p155 = pneg %p154
      $region18: #{generator_forward.8} parent=5 // pred_check_branch
        %157 = sbr.rel (%p155) target = $region20
      $region19: #{generator_forward.8} parent=5 // pred_region
        // Predicated region
        $region21: #{generator_forward.8} parent=19 // pred_check
          %p158 = pneg %p47
        $region22: #{generator_forward.8} parent=19 // pred_check_branch
          %160 = sbr.rel (%p158) target = $region24
        $region23: #{generator_forward.8} parent=19 // pred_region
          %p161 = scmp.lt.s32.totalorder %s20, 3
          %s162 = scalar_select %p161, %s20, 3
          %p163 = scmp.lt.s32.totalorder %s21, 0
          %s164 = scalar_select %p163, %s21, 0
          %s165 = smul.addr %s164, 16
          %s166 = smul.addr %s162, 16
          %s167 = sadd.s32 %s165, %s166
          %s168 = smul.addr %s167, 4
          %s169 = scalar_lea.vmem %s0, %s168
        $region24: #{generator_forward.8} parent=19 // pred_fallthru
          _
        // Predicated region
        $region25: #{generator_forward.8} parent=19 // pred_check
          %p170 = pneg %p73
        $region26: #{generator_forward.8} parent=19 // pred_check_branch
          %172 = sbr.rel (%p170) target = $region28
        $region27: #{generator_forward.8} parent=19 // pred_region
          %s173 = sand.u32 %s63, 1
          %s174 = scalar_lea.sflag [#allocation3], %s173
          %s175 = sand.u32 %s63, 1
          %s176 = smul.addr %s175, 2048
          %s177 = scalar_lea.vmem [#allocation2], %s176
          %s179 = ssub.s32 32768, 32768
          %180 = vsyncadd %s174, %s179
          %s181 = smul.addr %s20, 512
          %s182 = smul.addr %s181, 64
          %s183 = scalar_lea.hbm %s1, %s182
          %s184 = sshll.u32 %s177, 4
          %s185 = int_to_ptr.vmem [resolvable:$true] %s184
          %190 = dma.hbm_to_vmem [thread:$0]  %s183, 32768, %s185, %s174, 128, 128, 8
        $region28: #{generator_forward.8} parent=19 // pred_fallthru
          _
      $region20: #{generator_forward.8} parent=5 // pred_fallthru
        _
      %p191 = scmp.le.s32.totalorder 1, %s13
      %p192 = scmp.lt.s32.totalorder %s13, 5
      %p193 = pnand %p191, %p192
      %p194 = pneg %p193
      // Predicated region
      $region29: #{generator_forward.8} parent=5 // pred_check
        _
      $region30: #{generator_forward.8} parent=5 // pred_check_branch
        %196 = sbr.rel (%p193) target = $region32
      $region31: #{generator_forward.8} parent=5 // pred_region
        %s197 = ssub.s32 %s13, 1
        %s198 = sand.u32 %s66, 1
        %s199 = scalar_lea.sflag [#allocation3], %s198
        %s200 = sand.u32 %s66, 1
        %s201 = smul.addr %s200, 2048
        %s202 = scalar_lea.vmem [#allocation2], %s201
        // Predicated region
        $region33: #{generator_forward.8} parent=31 // pred_check
          %p203 = pneg %p79
        $region34: #{generator_forward.8} parent=31 // pred_check_branch
          %205 = sbr.rel (%p203) target = $region36
        $region35: #{generator_forward.8} parent=31 // pred_region
          %206 = dma.done %s199, 32768
        $region36: #{generator_forward.8} parent=31 // pred_fallthru
          _
        // Predicated region
        $region37: #{generator_forward.8} parent=31 // pred_check
          %p207 = pneg %p100
        $region38: #{generator_forward.8} parent=31 // pred_check_branch
          %209 = sbr.rel (%p207) target = $region40
        $region39: #{generator_forward.8} parent=31 // pred_region
          %210 = dma.done [#allocation5], 32
        $region40: #{generator_forward.8} parent=31 // pred_fallthru
          _
        %p211 = scmp.lt.s32.totalorder %s22, 3
        %s212 = scalar_select %p211, %s22, 3
        %p213 = scmp.lt.s32.totalorder %s23, 0
        %s214 = scalar_select %p213, %s23, 0
        %s215 = smul.addr %s214, 16
        %s216 = smul.addr %s212, 16
        %s217 = sadd.s32 %s215, %s216
        %s218 = smul.addr %s217, 4
        %s219 = scalar_lea.vmem %s0, %s218
        %p220 = pneg %p53
        %p221 = pneg %p50
        %s222 = sand.u32 %s66, 1
        %s223 = scalar_lea.sflag [#allocation3], %s222
        %s224 = sand.u32 %s66, 1
        %s225 = smul.addr %s224, 2048
        %s226 = scalar_lea.vmem [#allocation2], %s225
        %p227 = pneg %p79
        %p228 = pneg %p76
        %p229 = pneg %p100
        %p230 = pneg %p97
        %p231 = pneg %p128
        %p232 = pneg %p125
        %p233 = scmp.lt.s32.totalorder %s22, 3
        %s234 = scalar_select %p233, %s22, 3
        %p235 = scmp.lt.s32.totalorder %s23, 0
        %s236 = scalar_select %p235, %s23, 0
        %s237 = smul.addr %s236, 2
        %s238 = smul.addr %s234, 2
        %s239 = sadd.s32 %s237, %s238
        %s240 = smul.addr %s239, 4
        %s241 = scalar_lea.vmem %s3, %s240
        %p242 = scmp.lt.s32.totalorder %s22, 3
        %s243 = scalar_select %p242, %s22, 3
        %p244 = scmp.lt.s32.totalorder %s23, 0
        %s245 = scalar_select %p244, %s23, 0
        %s246 = smul.addr %s245, 16
        %s247 = smul.addr %s243, 16
        %s248 = sadd.s32 %s246, %s247
        %s249 = smul.addr %s248, 4
        %s250 = scalar_lea.vmem %s0, %s249
        %p251 = scmp.lt.s32.totalorder %s22, 3
        %s252 = scalar_select %p251, %s22, 3
        %p253 = scmp.lt.s32.totalorder %s23, 0
        %s254 = scalar_select %p253, %s23, 0
        %s255 = smul.addr %s254, 2
        %s256 = smul.addr %s252, 2
        %s257 = sadd.s32 %s255, %s256
        %s258 = smul.addr %s257, 4
        %s259 = scalar_lea.vmem %s3, %s258
        %v260 = vld [vmem:[%s250] sm:$0xff]
        %v261 = vld [vmem:[%s250 + $0x8] sm:$0xff]
        %v262 = vld [vmem:[%s250 + $0x10] sm:$0xff]
        %v263 = vld [vmem:[%s250 + $0x18] sm:$0xff]
        %v264 = vld [vmem:[%s250 + $0x20] sm:$0xff]
        %v265 = vld [vmem:[%s250 + $0x28] sm:$0xff]
        %v266 = vld [vmem:[%s250 + $0x30] sm:$0xff]
        %v267 = vld [vmem:[%s250 + $0x38] sm:$0xff]
        %v268 = vld [vmem:[%s202] sm:$0xff]
        %v269 = vld [vmem:[%s202 + $0x8] sm:$0xff]
        %v270 = vld [vmem:[%s202 + $0x10] sm:$0xff]
        %v271 = vld [vmem:[%s202 + $0x18] sm:$0xff]
        %v272 = vld [vmem:[%s202 + $0x20] sm:$0xff]
        %v273 = vld [vmem:[%s202 + $0x28] sm:$0xff]
        %v274 = vld [vmem:[%s202 + $0x30] sm:$0xff]
        %v275 = vld [vmem:[%s202 + $0x38] sm:$0xff]
        %v276 = vld [vmem:[%s202 + $0x40] sm:$0xff]
        %v277 = vld [vmem:[%s202 + $0x48] sm:$0xff]
        %v278 = vld [vmem:[%s202 + $0x50] sm:$0xff]
        %v279 = vld [vmem:[%s202 + $0x58] sm:$0xff]
        %v280 = vld [vmem:[%s202 + $0x60] sm:$0xff]
        %v281 = vld [vmem:[%s202 + $0x68] sm:$0xff]
        %v282 = vld [vmem:[%s202 + $0x70] sm:$0xff]
        %v283 = vld [vmem:[%s202 + $0x78] sm:$0xff]
        %v284 = vld [vmem:[%s202 + $0x80] sm:$0xff]
        %v285 = vld [vmem:[%s202 + $0x88] sm:$0xff]
        %v286 = vld [vmem:[%s202 + $0x90] sm:$0xff]
        %v287 = vld [vmem:[%s202 + $0x98] sm:$0xff]
        %v288 = vld [vmem:[%s202 + $0xa0] sm:$0xff]
        %v289 = vld [vmem:[%s202 + $0xa8] sm:$0xff]
        %v290 = vld [vmem:[%s202 + $0xb0] sm:$0xff]
        %v291 = vld [vmem:[%s202 + $0xb8] sm:$0xff]
        %v292 = vld [vmem:[%s202 + $0xc0] sm:$0xff]
        %v293 = vld [vmem:[%s202 + $0xc8] sm:$0xff]
        %v294 = vld [vmem:[%s202 + $0xd0] sm:$0xff]
        %v295 = vld [vmem:[%s202 + $0xd8] sm:$0xff]
        %v296 = vld [vmem:[%s202 + $0xe0] sm:$0xff]
        %v297 = vld [vmem:[%s202 + $0xe8] sm:$0xff]
        %v298 = vld [vmem:[%s202 + $0xf0] sm:$0xff]
        %v299 = vld [vmem:[%s202 + $0xf8] sm:$0xff]
        %v300 = vld [vmem:[%s202 + $0x100] sm:$0xff]
        %v301 = vld [vmem:[%s202 + $0x108] sm:$0xff]
        %v302 = vld [vmem:[%s202 + $0x110] sm:$0xff]
        %v303 = vld [vmem:[%s202 + $0x118] sm:$0xff]
        %v304 = vld [vmem:[%s202 + $0x120] sm:$0xff]
        %v305 = vld [vmem:[%s202 + $0x128] sm:$0xff]
        %v306 = vld [vmem:[%s202 + $0x130] sm:$0xff]
        %v307 = vld [vmem:[%s202 + $0x138] sm:$0xff]
        %v308 = vld [vmem:[%s202 + $0x140] sm:$0xff]
        %v309 = vld [vmem:[%s202 + $0x148] sm:$0xff]
        %v310 = vld [vmem:[%s202 + $0x150] sm:$0xff]
        %v311 = vld [vmem:[%s202 + $0x158] sm:$0xff]
        %v312 = vld [vmem:[%s202 + $0x160] sm:$0xff]
        %v313 = vld [vmem:[%s202 + $0x168] sm:$0xff]
        %v314 = vld [vmem:[%s202 + $0x170] sm:$0xff]
        %v315 = vld [vmem:[%s202 + $0x178] sm:$0xff]
        %v316 = vld [vmem:[%s202 + $0x180] sm:$0xff]
        %v317 = vld [vmem:[%s202 + $0x188] sm:$0xff]
        %v318 = vld [vmem:[%s202 + $0x190] sm:$0xff]
        %v319 = vld [vmem:[%s202 + $0x198] sm:$0xff]
        %v320 = vld [vmem:[%s202 + $0x1a0] sm:$0xff]
        %v321 = vld [vmem:[%s202 + $0x1a8] sm:$0xff]
        %v322 = vld [vmem:[%s202 + $0x1b0] sm:$0xff]
        %v323 = vld [vmem:[%s202 + $0x1b8] sm:$0xff]
        %v324 = vld [vmem:[%s202 + $0x1c0] sm:$0xff]
        %v325 = vld [vmem:[%s202 + $0x1c8] sm:$0xff]
        %v326 = vld [vmem:[%s202 + $0x1d0] sm:$0xff]
        %v327 = vld [vmem:[%s202 + $0x1d8] sm:$0xff]
        %v328 = vld [vmem:[%s202 + $0x1e0] sm:$0xff]
        %v329 = vld [vmem:[%s202 + $0x1e8] sm:$0xff]
        %v330 = vld [vmem:[%s202 + $0x1f0] sm:$0xff]
        %v331 = vld [vmem:[%s202 + $0x1f8] sm:$0xff]
        %v332 = vld [vmem:[%s202 + $0x200] sm:$0xff]
        %v333 = vld [vmem:[%s202 + $0x208] sm:$0xff]
        %v334 = vld [vmem:[%s202 + $0x210] sm:$0xff]
        %v335 = vld [vmem:[%s202 + $0x218] sm:$0xff]
        %v336 = vld [vmem:[%s202 + $0x220] sm:$0xff]
        %v337 = vld [vmem:[%s202 + $0x228] sm:$0xff]
        %v338 = vld [vmem:[%s202 + $0x230] sm:$0xff]
        %v339 = vld [vmem:[%s202 + $0x238] sm:$0xff]
        %v340 = vld [vmem:[%s202 + $0x240] sm:$0xff]
        %v341 = vld [vmem:[%s202 + $0x248] sm:$0xff]
        %v342 = vld [vmem:[%s202 + $0x250] sm:$0xff]
        %v343 = vld [vmem:[%s202 + $0x258] sm:$0xff]
        %v344 = vld [vmem:[%s202 + $0x260] sm:$0xff]
        %v345 = vld [vmem:[%s202 + $0x268] sm:$0xff]
        %v346 = vld [vmem:[%s202 + $0x270] sm:$0xff]
        %v347 = vld [vmem:[%s202 + $0x278] sm:$0xff]
        %v348 = vld [vmem:[%s202 + $0x280] sm:$0xff]
        %v349 = vld [vmem:[%s202 + $0x288] sm:$0xff]
        %v350 = vld [vmem:[%s202 + $0x290] sm:$0xff]
        %v351 = vld [vmem:[%s202 + $0x298] sm:$0xff]
        %v352 = vld [vmem:[%s202 + $0x2a0] sm:$0xff]
        %v353 = vld [vmem:[%s202 + $0x2a8] sm:$0xff]
        %v354 = vld [vmem:[%s202 + $0x2b0] sm:$0xff]
        %v355 = vld [vmem:[%s202 + $0x2b8] sm:$0xff]
        %v356 = vld [vmem:[%s202 + $0x2c0] sm:$0xff]
        %v357 = vld [vmem:[%s202 + $0x2c8] sm:$0xff]
        %v358 = vld [vmem:[%s202 + $0x2d0] sm:$0xff]
        %v359 = vld [vmem:[%s202 + $0x2d8] sm:$0xff]
        %v360 = vld [vmem:[%s202 + $0x2e0] sm:$0xff]
        %v361 = vld [vmem:[%s202 + $0x2e8] sm:$0xff]
        %v362 = vld [vmem:[%s202 + $0x2f0] sm:$0xff]
        %v363 = vld [vmem:[%s202 + $0x2f8] sm:$0xff]
        %v364 = vld [vmem:[%s202 + $0x300] sm:$0xff]
        %v365 = vld [vmem:[%s202 + $0x308] sm:$0xff]
        %v366 = vld [vmem:[%s202 + $0x310] sm:$0xff]
        %v367 = vld [vmem:[%s202 + $0x318] sm:$0xff]
        %v368 = vld [vmem:[%s202 + $0x320] sm:$0xff]
        %v369 = vld [vmem:[%s202 + $0x328] sm:$0xff]
        %v370 = vld [vmem:[%s202 + $0x330] sm:$0xff]
        %v371 = vld [vmem:[%s202 + $0x338] sm:$0xff]
        %v372 = vld [vmem:[%s202 + $0x340] sm:$0xff]
        %v373 = vld [vmem:[%s202 + $0x348] sm:$0xff]
        %v374 = vld [vmem:[%s202 + $0x350] sm:$0xff]
        %v375 = vld [vmem:[%s202 + $0x358] sm:$0xff]
        %v376 = vld [vmem:[%s202 + $0x360] sm:$0xff]
        %v377 = vld [vmem:[%s202 + $0x368] sm:$0xff]
        %v378 = vld [vmem:[%s202 + $0x370] sm:$0xff]
        %v379 = vld [vmem:[%s202 + $0x378] sm:$0xff]
        %v380 = vld [vmem:[%s202 + $0x380] sm:$0xff]
        %v381 = vld [vmem:[%s202 + $0x388] sm:$0xff]
        %v382 = vld [vmem:[%s202 + $0x390] sm:$0xff]
        %v383 = vld [vmem:[%s202 + $0x398] sm:$0xff]
        %v384 = vld [vmem:[%s202 + $0x3a0] sm:$0xff]
        %v385 = vld [vmem:[%s202 + $0x3a8] sm:$0xff]
        %v386 = vld [vmem:[%s202 + $0x3b0] sm:$0xff]
        %v387 = vld [vmem:[%s202 + $0x3b8] sm:$0xff]
        %v388 = vld [vmem:[%s202 + $0x3c0] sm:$0xff]
        %v389 = vld [vmem:[%s202 + $0x3c8] sm:$0xff]
        %v390 = vld [vmem:[%s202 + $0x3d0] sm:$0xff]
        %v391 = vld [vmem:[%s202 + $0x3d8] sm:$0xff]
        %v392 = vld [vmem:[%s202 + $0x3e0] sm:$0xff]
        %v393 = vld [vmem:[%s202 + $0x3e8] sm:$0xff]
        %v394 = vld [vmem:[%s202 + $0x3f0] sm:$0xff]
        %v395 = vld [vmem:[%s202 + $0x3f8] sm:$0xff]
        %v396 = vld [vmem:[%s202 + $0x400] sm:$0xff]
        %v397 = vld [vmem:[%s202 + $0x408] sm:$0xff]
        %v398 = vld [vmem:[%s202 + $0x410] sm:$0xff]
        %v399 = vld [vmem:[%s202 + $0x418] sm:$0xff]
        %v400 = vld [vmem:[%s202 + $0x420] sm:$0xff]
        %v401 = vld [vmem:[%s202 + $0x428] sm:$0xff]
        %v402 = vld [vmem:[%s202 + $0x430] sm:$0xff]
        %v403 = vld [vmem:[%s202 + $0x438] sm:$0xff]
        %v404 = vld [vmem:[%s202 + $0x440] sm:$0xff]
        %v405 = vld [vmem:[%s202 + $0x448] sm:$0xff]
        %v406 = vld [vmem:[%s202 + $0x450] sm:$0xff]
        %v407 = vld [vmem:[%s202 + $0x458] sm:$0xff]
        %v408 = vld [vmem:[%s202 + $0x460] sm:$0xff]
        %v409 = vld [vmem:[%s202 + $0x468] sm:$0xff]
        %v410 = vld [vmem:[%s202 + $0x470] sm:$0xff]
        %v411 = vld [vmem:[%s202 + $0x478] sm:$0xff]
        %v412 = vld [vmem:[%s202 + $0x480] sm:$0xff]
        %v413 = vld [vmem:[%s202 + $0x488] sm:$0xff]
        %v414 = vld [vmem:[%s202 + $0x490] sm:$0xff]
        %v415 = vld [vmem:[%s202 + $0x498] sm:$0xff]
        %v416 = vld [vmem:[%s202 + $0x4a0] sm:$0xff]
        %v417 = vld [vmem:[%s202 + $0x4a8] sm:$0xff]
        %v418 = vld [vmem:[%s202 + $0x4b0] sm:$0xff]
        %v419 = vld [vmem:[%s202 + $0x4b8] sm:$0xff]
        %v420 = vld [vmem:[%s202 + $0x4c0] sm:$0xff]
        %v421 = vld [vmem:[%s202 + $0x4c8] sm:$0xff]
        %v422 = vld [vmem:[%s202 + $0x4d0] sm:$0xff]
        %v423 = vld [vmem:[%s202 + $0x4d8] sm:$0xff]
        %v424 = vld [vmem:[%s202 + $0x4e0] sm:$0xff]
        %v425 = vld [vmem:[%s202 + $0x4e8] sm:$0xff]
        %v426 = vld [vmem:[%s202 + $0x4f0] sm:$0xff]
        %v427 = vld [vmem:[%s202 + $0x4f8] sm:$0xff]
        %v428 = vld [vmem:[%s202 + $0x500] sm:$0xff]
        %v429 = vld [vmem:[%s202 + $0x508] sm:$0xff]
        %v430 = vld [vmem:[%s202 + $0x510] sm:$0xff]
        %v431 = vld [vmem:[%s202 + $0x518] sm:$0xff]
        %v432 = vld [vmem:[%s202 + $0x520] sm:$0xff]
        %v433 = vld [vmem:[%s202 + $0x528] sm:$0xff]
        %v434 = vld [vmem:[%s202 + $0x530] sm:$0xff]
        %v435 = vld [vmem:[%s202 + $0x538] sm:$0xff]
        %v436 = vld [vmem:[%s202 + $0x540] sm:$0xff]
        %v437 = vld [vmem:[%s202 + $0x548] sm:$0xff]
        %v438 = vld [vmem:[%s202 + $0x550] sm:$0xff]
        %v439 = vld [vmem:[%s202 + $0x558] sm:$0xff]
        %v440 = vld [vmem:[%s202 + $0x560] sm:$0xff]
        %v441 = vld [vmem:[%s202 + $0x568] sm:$0xff]
        %v442 = vld [vmem:[%s202 + $0x570] sm:$0xff]
        %v443 = vld [vmem:[%s202 + $0x578] sm:$0xff]
        %v444 = vld [vmem:[%s202 + $0x580] sm:$0xff]
        %v445 = vld [vmem:[%s202 + $0x588] sm:$0xff]
        %v446 = vld [vmem:[%s202 + $0x590] sm:$0xff]
        %v447 = vld [vmem:[%s202 + $0x598] sm:$0xff]
        %v448 = vld [vmem:[%s202 + $0x5a0] sm:$0xff]
        %v449 = vld [vmem:[%s202 + $0x5a8] sm:$0xff]
        %v450 = vld [vmem:[%s202 + $0x5b0] sm:$0xff]
        %v451 = vld [vmem:[%s202 + $0x5b8] sm:$0xff]
        %v452 = vld [vmem:[%s202 + $0x5c0] sm:$0xff]
        %v453 = vld [vmem:[%s202 + $0x5c8] sm:$0xff]
        %v454 = vld [vmem:[%s202 + $0x5d0] sm:$0xff]
        %v455 = vld [vmem:[%s202 + $0x5d8] sm:$0xff]
        %v456 = vld [vmem:[%s202 + $0x5e0] sm:$0xff]
        %v457 = vld [vmem:[%s202 + $0x5e8] sm:$0xff]
        %v458 = vld [vmem:[%s202 + $0x5f0] sm:$0xff]
        %v459 = vld [vmem:[%s202 + $0x5f8] sm:$0xff]
        %v460 = vld [vmem:[%s202 + $0x600] sm:$0xff]
        %v461 = vld [vmem:[%s202 + $0x608] sm:$0xff]
        %v462 = vld [vmem:[%s202 + $0x610] sm:$0xff]
        %v463 = vld [vmem:[%s202 + $0x618] sm:$0xff]
        %v464 = vld [vmem:[%s202 + $0x620] sm:$0xff]
        %v465 = vld [vmem:[%s202 + $0x628] sm:$0xff]
        %v466 = vld [vmem:[%s202 + $0x630] sm:$0xff]
        %v467 = vld [vmem:[%s202 + $0x638] sm:$0xff]
        %v468 = vld [vmem:[%s202 + $0x640] sm:$0xff]
        %v469 = vld [vmem:[%s202 + $0x648] sm:$0xff]
        %v470 = vld [vmem:[%s202 + $0x650] sm:$0xff]
        %v471 = vld [vmem:[%s202 + $0x658] sm:$0xff]
        %v472 = vld [vmem:[%s202 + $0x660] sm:$0xff]
        %v473 = vld [vmem:[%s202 + $0x668] sm:$0xff]
        %v474 = vld [vmem:[%s202 + $0x670] sm:$0xff]
        %v475 = vld [vmem:[%s202 + $0x678] sm:$0xff]
        %v476 = vld [vmem:[%s202 + $0x680] sm:$0xff]
        %v477 = vld [vmem:[%s202 + $0x688] sm:$0xff]
        %v478 = vld [vmem:[%s202 + $0x690] sm:$0xff]
        %v479 = vld [vmem:[%s202 + $0x698] sm:$0xff]
        %v480 = vld [vmem:[%s202 + $0x6a0] sm:$0xff]
        %v481 = vld [vmem:[%s202 + $0x6a8] sm:$0xff]
        %v482 = vld [vmem:[%s202 + $0x6b0] sm:$0xff]
        %v483 = vld [vmem:[%s202 + $0x6b8] sm:$0xff]
        %v484 = vld [vmem:[%s202 + $0x6c0] sm:$0xff]
        %v485 = vld [vmem:[%s202 + $0x6c8] sm:$0xff]
        %v486 = vld [vmem:[%s202 + $0x6d0] sm:$0xff]
        %v487 = vld [vmem:[%s202 + $0x6d8] sm:$0xff]
        %v488 = vld [vmem:[%s202 + $0x6e0] sm:$0xff]
        %v489 = vld [vmem:[%s202 + $0x6e8] sm:$0xff]
        %v490 = vld [vmem:[%s202 + $0x6f0] sm:$0xff]
        %v491 = vld [vmem:[%s202 + $0x6f8] sm:$0xff]
        %v492 = vld [vmem:[%s202 + $0x700] sm:$0xff]
        %v493 = vld [vmem:[%s202 + $0x708] sm:$0xff]
        %v494 = vld [vmem:[%s202 + $0x710] sm:$0xff]
        %v495 = vld [vmem:[%s202 + $0x718] sm:$0xff]
        %v496 = vld [vmem:[%s202 + $0x720] sm:$0xff]
        %v497 = vld [vmem:[%s202 + $0x728] sm:$0xff]
        %v498 = vld [vmem:[%s202 + $0x730] sm:$0xff]
        %v499 = vld [vmem:[%s202 + $0x738] sm:$0xff]
        %v500 = vld [vmem:[%s202 + $0x740] sm:$0xff]
        %v501 = vld [vmem:[%s202 + $0x748] sm:$0xff]
        %v502 = vld [vmem:[%s202 + $0x750] sm:$0xff]
        %v503 = vld [vmem:[%s202 + $0x758] sm:$0xff]
        %v504 = vld [vmem:[%s202 + $0x760] sm:$0xff]
        %v505 = vld [vmem:[%s202 + $0x768] sm:$0xff]
        %v506 = vld [vmem:[%s202 + $0x770] sm:$0xff]
        %v507 = vld [vmem:[%s202 + $0x778] sm:$0xff]
        %v508 = vld [vmem:[%s202 + $0x780] sm:$0xff]
        %v509 = vld [vmem:[%s202 + $0x788] sm:$0xff]
        %v510 = vld [vmem:[%s202 + $0x790] sm:$0xff]
        %v511 = vld [vmem:[%s202 + $0x798] sm:$0xff]
        %v512 = vld [vmem:[%s202 + $0x7a0] sm:$0xff]
        %v513 = vld [vmem:[%s202 + $0x7a8] sm:$0xff]
        %v514 = vld [vmem:[%s202 + $0x7b0] sm:$0xff]
        %v515 = vld [vmem:[%s202 + $0x7b8] sm:$0xff]
        %v516 = vld [vmem:[%s202 + $0x7c0] sm:$0xff]
        %v517 = vld [vmem:[%s202 + $0x7c8] sm:$0xff]
        %v518 = vld [vmem:[%s202 + $0x7d0] sm:$0xff]
        %v519 = vld [vmem:[%s202 + $0x7d8] sm:$0xff]
        %v520 = vld [vmem:[%s202 + $0x7e0] sm:$0xff]
        %v521 = vld [vmem:[%s202 + $0x7e8] sm:$0xff]
        %v522 = vld [vmem:[%s202 + $0x7f0] sm:$0xff]
        %v523 = vld [vmem:[%s202 + $0x7f8] sm:$0xff]
        %v524 = vld [vmem:[#allocation4] sm:$0x3]
        %v526 = vlaneseq
        %v527 = vshrl.u32 %v526, 7
        %v528 = vsub.s32 0, %v527
        %v529 = vrot.slane %v524, %v528
        %v530 = vlaneseq
        %v531 = vshrl.u32 %v530, 7
        %v532 = vsub.s32 1, %v531
        %v533 = vrot.slane %v524, %v532
        %v544 = vunpack.c.l.b16 %v260
        %v545 = vunpack.c.h.b16 %v260
        %v546 = vunpack.c.l.b16 %v261
        %v547 = vunpack.c.h.b16 %v261
        %v548 = vunpack.c.l.b16 %v262
        %v549 = vunpack.c.h.b16 %v262
        %v550 = vunpack.c.l.b16 %v263
        %v551 = vunpack.c.h.b16 %v263
        %v552 = vunpack.c.l.b16 %v264
        %v553 = vunpack.c.h.b16 %v264
        %v554 = vunpack.c.l.b16 %v265
        %v555 = vunpack.c.h.b16 %v265
        %v556 = vunpack.c.l.b16 %v266
        %v557 = vunpack.c.h.b16 %v266
        %v558 = vunpack.c.l.b16 %v267
        %v559 = vunpack.c.h.b16 %v267
        %v560 = vpack.c.b16 %v544, %v544
        %v561 = vpack.c.b16 %v545, %v545
        %v562 = vpack.c.b16 %v546, %v546
        %v563 = vpack.c.b16 %v547, %v547
        %v564 = vpack.c.b16 %v548, %v548
        %v565 = vpack.c.b16 %v549, %v549
        %v566 = vpack.c.b16 %v550, %v550
        %v567 = vpack.c.b16 %v551, %v551
        %v568 = vpack.c.b16 %v552, %v552
        %v569 = vpack.c.b16 %v553, %v553
        %v570 = vpack.c.b16 %v554, %v554
        %v571 = vpack.c.b16 %v555, %v555
        %v572 = vpack.c.b16 %v556, %v556
        %v573 = vpack.c.b16 %v557, %v557
        %v574 = vpack.c.b16 %v558, %v558
        %v575 = vpack.c.b16 %v559, %v559
        %v848 = vunpack.c.l.b16 %v268
        %v849 = vunpack.c.h.b16 %v268
        %v850 = vunpack.c.l.b16 %v269
        %v851 = vunpack.c.h.b16 %v269
        %v852 = vunpack.c.l.b16 %v270
        %v853 = vunpack.c.h.b16 %v270
        %v854 = vunpack.c.l.b16 %v271
        %v855 = vunpack.c.h.b16 %v271
        %v856 = vunpack.c.l.b16 %v272
        %v857 = vunpack.c.h.b16 %v272
        %v858 = vunpack.c.l.b16 %v273
        %v859 = vunpack.c.h.b16 %v273
        %v860 = vunpack.c.l.b16 %v274
        %v861 = vunpack.c.h.b16 %v274
        %v862 = vunpack.c.l.b16 %v275
        %v863 = vunpack.c.h.b16 %v275
        %v864 = vunpack.c.l.b16 %v276
        %v865 = vunpack.c.h.b16 %v276
        %v866 = vunpack.c.l.b16 %v277
        %v867 = vunpack.c.h.b16 %v277
        %v868 = vunpack.c.l.b16 %v278
        %v869 = vunpack.c.h.b16 %v278
        %v870 = vunpack.c.l.b16 %v279
        %v871 = vunpack.c.h.b16 %v279
        %v872 = vunpack.c.l.b16 %v280
        %v873 = vunpack.c.h.b16 %v280
        %v874 = vunpack.c.l.b16 %v281
        %v875 = vunpack.c.h.b16 %v281
        %v876 = vunpack.c.l.b16 %v282
        %v877 = vunpack.c.h.b16 %v282
        %v878 = vunpack.c.l.b16 %v283
        %v879 = vunpack.c.h.b16 %v283
        %v880 = vunpack.c.l.b16 %v284
        %v881 = vunpack.c.h.b16 %v284
        %v882 = vunpack.c.l.b16 %v285
        %v883 = vunpack.c.h.b16 %v285
        %v884 = vunpack.c.l.b16 %v286
        %v885 = vunpack.c.h.b16 %v286
        %v886 = vunpack.c.l.b16 %v287
        %v887 = vunpack.c.h.b16 %v287
        %v888 = vunpack.c.l.b16 %v288
        %v889 = vunpack.c.h.b16 %v288
        %v890 = vunpack.c.l.b16 %v289
        %v891 = vunpack.c.h.b16 %v289
        %v892 = vunpack.c.l.b16 %v290
        %v893 = vunpack.c.h.b16 %v290
        %v894 = vunpack.c.l.b16 %v291
        %v895 = vunpack.c.h.b16 %v291
        %v896 = vunpack.c.l.b16 %v292
        %v897 = vunpack.c.h.b16 %v292
        %v898 = vunpack.c.l.b16 %v293
        %v899 = vunpack.c.h.b16 %v293
        %v900 = vunpack.c.l.b16 %v294
        %v901 = vunpack.c.h.b16 %v294
        %v902 = vunpack.c.l.b16 %v295
        %v903 = vunpack.c.h.b16 %v295
        %v904 = vunpack.c.l.b16 %v296
        %v905 = vunpack.c.h.b16 %v296
        %v906 = vunpack.c.l.b16 %v297
        %v907 = vunpack.c.h.b16 %v297
        %v908 = vunpack.c.l.b16 %v298
        %v909 = vunpack.c.h.b16 %v298
        %v910 = vunpack.c.l.b16 %v299
        %v911 = vunpack.c.h.b16 %v299
        %v912 = vunpack.c.l.b16 %v300
        %v913 = vunpack.c.h.b16 %v300
        %v914 = vunpack.c.l.b16 %v301
        %v915 = vunpack.c.h.b16 %v301
        %v916 = vunpack.c.l.b16 %v302
        %v917 = vunpack.c.h.b16 %v302
        %v918 = vunpack.c.l.b16 %v303
        %v919 = vunpack.c.h.b16 %v303
        %v920 = vunpack.c.l.b16 %v304
        %v921 = vunpack.c.h.b16 %v304
        %v922 = vunpack.c.l.b16 %v305
        %v923 = vunpack.c.h.b16 %v305
        %v924 = vunpack.c.l.b16 %v306
        %v925 = vunpack.c.h.b16 %v306
        %v926 = vunpack.c.l.b16 %v307
        %v927 = vunpack.c.h.b16 %v307
        %v928 = vunpack.c.l.b16 %v308
        %v929 = vunpack.c.h.b16 %v308
        %v930 = vunpack.c.l.b16 %v309
        %v931 = vunpack.c.h.b16 %v309
        %v932 = vunpack.c.l.b16 %v310
        %v933 = vunpack.c.h.b16 %v310
        %v934 = vunpack.c.l.b16 %v311
        %v935 = vunpack.c.h.b16 %v311
        %v936 = vunpack.c.l.b16 %v312
        %v937 = vunpack.c.h.b16 %v312
        %v938 = vunpack.c.l.b16 %v313
        %v939 = vunpack.c.h.b16 %v313
        %v940 = vunpack.c.l.b16 %v314
        %v941 = vunpack.c.h.b16 %v314
        %v942 = vunpack.c.l.b16 %v315
        %v943 = vunpack.c.h.b16 %v315
        %v944 = vunpack.c.l.b16 %v316
        %v945 = vunpack.c.h.b16 %v316
        %v946 = vunpack.c.l.b16 %v317
        %v947 = vunpack.c.h.b16 %v317
        %v948 = vunpack.c.l.b16 %v318
        %v949 = vunpack.c.h.b16 %v318
        %v950 = vunpack.c.l.b16 %v319
        %v951 = vunpack.c.h.b16 %v319
        %v952 = vunpack.c.l.b16 %v320
        %v953 = vunpack.c.h.b16 %v320
        %v954 = vunpack.c.l.b16 %v321
        %v955 = vunpack.c.h.b16 %v321
        %v956 = vunpack.c.l.b16 %v322
        %v957 = vunpack.c.h.b16 %v322
        %v958 = vunpack.c.l.b16 %v323
        %v959 = vunpack.c.h.b16 %v323
        %v960 = vunpack.c.l.b16 %v324
        %v961 = vunpack.c.h.b16 %v324
        %v962 = vunpack.c.l.b16 %v325
        %v963 = vunpack.c.h.b16 %v325
        %v964 = vunpack.c.l.b16 %v326
        %v965 = vunpack.c.h.b16 %v326
        %v966 = vunpack.c.l.b16 %v327
        %v967 = vunpack.c.h.b16 %v327
        %v968 = vunpack.c.l.b16 %v328
        %v969 = vunpack.c.h.b16 %v328
        %v970 = vunpack.c.l.b16 %v329
        %v971 = vunpack.c.h.b16 %v329
        %v972 = vunpack.c.l.b16 %v330
        %v973 = vunpack.c.h.b16 %v330
        %v974 = vunpack.c.l.b16 %v331
        %v975 = vunpack.c.h.b16 %v331
        %v976 = vunpack.c.l.b16 %v332
        %v977 = vunpack.c.h.b16 %v332
        %v978 = vunpack.c.l.b16 %v333
        %v979 = vunpack.c.h.b16 %v333
        %v980 = vunpack.c.l.b16 %v334
        %v981 = vunpack.c.h.b16 %v334
        %v982 = vunpack.c.l.b16 %v335
        %v983 = vunpack.c.h.b16 %v335
        %v984 = vunpack.c.l.b16 %v336
        %v985 = vunpack.c.h.b16 %v336
        %v986 = vunpack.c.l.b16 %v337
        %v987 = vunpack.c.h.b16 %v337
        %v988 = vunpack.c.l.b16 %v338
        %v989 = vunpack.c.h.b16 %v338
        %v990 = vunpack.c.l.b16 %v339
        %v991 = vunpack.c.h.b16 %v339
        %v992 = vunpack.c.l.b16 %v340
        %v993 = vunpack.c.h.b16 %v340
        %v994 = vunpack.c.l.b16 %v341
        %v995 = vunpack.c.h.b16 %v341
        %v996 = vunpack.c.l.b16 %v342
        %v997 = vunpack.c.h.b16 %v342
        %v998 = vunpack.c.l.b16 %v343
        %v999 = vunpack.c.h.b16 %v343
        %v1000 = vunpack.c.l.b16 %v344
        %v1001 = vunpack.c.h.b16 %v344
        %v1002 = vunpack.c.l.b16 %v345
        %v1003 = vunpack.c.h.b16 %v345
        %v1004 = vunpack.c.l.b16 %v346
        %v1005 = vunpack.c.h.b16 %v346
        %v1006 = vunpack.c.l.b16 %v347
        %v1007 = vunpack.c.h.b16 %v347
        %v1008 = vunpack.c.l.b16 %v348
        %v1009 = vunpack.c.h.b16 %v348
        %v1010 = vunpack.c.l.b16 %v349
        %v1011 = vunpack.c.h.b16 %v349
        %v1012 = vunpack.c.l.b16 %v350
        %v1013 = vunpack.c.h.b16 %v350
        %v1014 = vunpack.c.l.b16 %v351
        %v1015 = vunpack.c.h.b16 %v351
        %v1016 = vunpack.c.l.b16 %v352
        %v1017 = vunpack.c.h.b16 %v352
        %v1018 = vunpack.c.l.b16 %v353
        %v1019 = vunpack.c.h.b16 %v353
        %v1020 = vunpack.c.l.b16 %v354
        %v1021 = vunpack.c.h.b16 %v354
        %v1022 = vunpack.c.l.b16 %v355
        %v1023 = vunpack.c.h.b16 %v355
        %v1024 = vunpack.c.l.b16 %v356
        %v1025 = vunpack.c.h.b16 %v356
        %v1026 = vunpack.c.l.b16 %v357
        %v1027 = vunpack.c.h.b16 %v357
        %v1028 = vunpack.c.l.b16 %v358
        %v1029 = vunpack.c.h.b16 %v358
        %v1030 = vunpack.c.l.b16 %v359
        %v1031 = vunpack.c.h.b16 %v359
        %v1032 = vunpack.c.l.b16 %v360
        %v1033 = vunpack.c.h.b16 %v360
        %v1034 = vunpack.c.l.b16 %v361
        %v1035 = vunpack.c.h.b16 %v361
        %v1036 = vunpack.c.l.b16 %v362
        %v1037 = vunpack.c.h.b16 %v362
        %v1038 = vunpack.c.l.b16 %v363
        %v1039 = vunpack.c.h.b16 %v363
        %v1040 = vunpack.c.l.b16 %v364
        %v1041 = vunpack.c.h.b16 %v364
        %v1042 = vunpack.c.l.b16 %v365
        %v1043 = vunpack.c.h.b16 %v365
        %v1044 = vunpack.c.l.b16 %v366
        %v1045 = vunpack.c.h.b16 %v366
        %v1046 = vunpack.c.l.b16 %v367
        %v1047 = vunpack.c.h.b16 %v367
        %v1048 = vunpack.c.l.b16 %v368
        %v1049 = vunpack.c.h.b16 %v368
        %v1050 = vunpack.c.l.b16 %v369
        %v1051 = vunpack.c.h.b16 %v369
        %v1052 = vunpack.c.l.b16 %v370
        %v1053 = vunpack.c.h.b16 %v370
        %v1054 = vunpack.c.l.b16 %v371
        %v1055 = vunpack.c.h.b16 %v371
        %v1056 = vunpack.c.l.b16 %v372
        %v1057 = vunpack.c.h.b16 %v372
        %v1058 = vunpack.c.l.b16 %v373
        %v1059 = vunpack.c.h.b16 %v373
        %v1060 = vunpack.c.l.b16 %v374
        %v1061 = vunpack.c.h.b16 %v374
        %v1062 = vunpack.c.l.b16 %v375
        %v1063 = vunpack.c.h.b16 %v375
        %v1064 = vunpack.c.l.b16 %v376
        %v1065 = vunpack.c.h.b16 %v376
        %v1066 = vunpack.c.l.b16 %v377
        %v1067 = vunpack.c.h.b16 %v377
        %v1068 = vunpack.c.l.b16 %v378
        %v1069 = vunpack.c.h.b16 %v378
        %v1070 = vunpack.c.l.b16 %v379
        %v1071 = vunpack.c.h.b16 %v379
        %v1072 = vunpack.c.l.b16 %v380
        %v1073 = vunpack.c.h.b16 %v380
        %v1074 = vunpack.c.l.b16 %v381
        %v1075 = vunpack.c.h.b16 %v381
        %v1076 = vunpack.c.l.b16 %v382
        %v1077 = vunpack.c.h.b16 %v382
        %v1078 = vunpack.c.l.b16 %v383
        %v1079 = vunpack.c.h.b16 %v383
        %v1080 = vunpack.c.l.b16 %v384
        %v1081 = vunpack.c.h.b16 %v384
        %v1082 = vunpack.c.l.b16 %v385
        %v1083 = vunpack.c.h.b16 %v385
        %v1084 = vunpack.c.l.b16 %v386
        %v1085 = vunpack.c.h.b16 %v386
        %v1086 = vunpack.c.l.b16 %v387
        %v1087 = vunpack.c.h.b16 %v387
        %v1088 = vunpack.c.l.b16 %v388
        %v1089 = vunpack.c.h.b16 %v388
        %v1090 = vunpack.c.l.b16 %v389
        %v1091 = vunpack.c.h.b16 %v389
        %v1092 = vunpack.c.l.b16 %v390
        %v1093 = vunpack.c.h.b16 %v390
        %v1094 = vunpack.c.l.b16 %v391
        %v1095 = vunpack.c.h.b16 %v391
        %v1096 = vunpack.c.l.b16 %v392
        %v1097 = vunpack.c.h.b16 %v392
        %v1098 = vunpack.c.l.b16 %v393
        %v1099 = vunpack.c.h.b16 %v393
        %v1100 = vunpack.c.l.b16 %v394
        %v1101 = vunpack.c.h.b16 %v394
        %v1102 = vunpack.c.l.b16 %v395
        %v1103 = vunpack.c.h.b16 %v395
        %v1104 = vunpack.c.l.b16 %v396
        %v1105 = vunpack.c.h.b16 %v396
        %v1106 = vunpack.c.l.b16 %v397
        %v1107 = vunpack.c.h.b16 %v397
        %v1108 = vunpack.c.l.b16 %v398
        %v1109 = vunpack.c.h.b16 %v398
        %v1110 = vunpack.c.l.b16 %v399
        %v1111 = vunpack.c.h.b16 %v399
        %v1112 = vunpack.c.l.b16 %v400
        %v1113 = vunpack.c.h.b16 %v400
        %v1114 = vunpack.c.l.b16 %v401
        %v1115 = vunpack.c.h.b16 %v401
        %v1116 = vunpack.c.l.b16 %v402
        %v1117 = vunpack.c.h.b16 %v402
        %v1118 = vunpack.c.l.b16 %v403
        %v1119 = vunpack.c.h.b16 %v403
        %v1120 = vunpack.c.l.b16 %v404
        %v1121 = vunpack.c.h.b16 %v404
        %v1122 = vunpack.c.l.b16 %v405
        %v1123 = vunpack.c.h.b16 %v405
        %v1124 = vunpack.c.l.b16 %v406
        %v1125 = vunpack.c.h.b16 %v406
        %v1126 = vunpack.c.l.b16 %v407
        %v1127 = vunpack.c.h.b16 %v407
        %v1128 = vunpack.c.l.b16 %v408
        %v1129 = vunpack.c.h.b16 %v408
        %v1130 = vunpack.c.l.b16 %v409
        %v1131 = vunpack.c.h.b16 %v409
        %v1132 = vunpack.c.l.b16 %v410
        %v1133 = vunpack.c.h.b16 %v410
        %v1134 = vunpack.c.l.b16 %v411
        %v1135 = vunpack.c.h.b16 %v411
        %v1136 = vunpack.c.l.b16 %v412
        %v1137 = vunpack.c.h.b16 %v412
        %v1138 = vunpack.c.l.b16 %v413
        %v1139 = vunpack.c.h.b16 %v413
        %v1140 = vunpack.c.l.b16 %v414
        %v1141 = vunpack.c.h.b16 %v414
        %v1142 = vunpack.c.l.b16 %v415
        %v1143 = vunpack.c.h.b16 %v415
        %v1144 = vunpack.c.l.b16 %v416
        %v1145 = vunpack.c.h.b16 %v416
        %v1146 = vunpack.c.l.b16 %v417
        %v1147 = vunpack.c.h.b16 %v417
        %v1148 = vunpack.c.l.b16 %v418
        %v1149 = vunpack.c.h.b16 %v418
        %v1150 = vunpack.c.l.b16 %v419
        %v1151 = vunpack.c.h.b16 %v419
        %v1152 = vunpack.c.l.b16 %v420
        %v1153 = vunpack.c.h.b16 %v420
        %v1154 = vunpack.c.l.b16 %v421
        %v1155 = vunpack.c.h.b16 %v421
        %v1156 = vunpack.c.l.b16 %v422
        %v1157 = vunpack.c.h.b16 %v422
        %v1158 = vunpack.c.l.b16 %v423
        %v1159 = vunpack.c.h.b16 %v423
        %v1160 = vunpack.c.l.b16 %v424
        %v1161 = vunpack.c.h.b16 %v424
        %v1162 = vunpack.c.l.b16 %v425
        %v1163 = vunpack.c.h.b16 %v425
        %v1164 = vunpack.c.l.b16 %v426
        %v1165 = vunpack.c.h.b16 %v426
        %v1166 = vunpack.c.l.b16 %v427
        %v1167 = vunpack.c.h.b16 %v427
        %v1168 = vunpack.c.l.b16 %v428
        %v1169 = vunpack.c.h.b16 %v428
        %v1170 = vunpack.c.l.b16 %v429
        %v1171 = vunpack.c.h.b16 %v429
        %v1172 = vunpack.c.l.b16 %v430
        %v1173 = vunpack.c.h.b16 %v430
        %v1174 = vunpack.c.l.b16 %v431
        %v1175 = vunpack.c.h.b16 %v431
        %v1176 = vunpack.c.l.b16 %v432
        %v1177 = vunpack.c.h.b16 %v432
        %v1178 = vunpack.c.l.b16 %v433
        %v1179 = vunpack.c.h.b16 %v433
        %v1180 = vunpack.c.l.b16 %v434
        %v1181 = vunpack.c.h.b16 %v434
        %v1182 = vunpack.c.l.b16 %v435
        %v1183 = vunpack.c.h.b16 %v435
        %v1184 = vunpack.c.l.b16 %v436
        %v1185 = vunpack.c.h.b16 %v436
        %v1186 = vunpack.c.l.b16 %v437
        %v1187 = vunpack.c.h.b16 %v437
        %v1188 = vunpack.c.l.b16 %v438
        %v1189 = vunpack.c.h.b16 %v438
        %v1190 = vunpack.c.l.b16 %v439
        %v1191 = vunpack.c.h.b16 %v439
        %v1192 = vunpack.c.l.b16 %v440
        %v1193 = vunpack.c.h.b16 %v440
        %v1194 = vunpack.c.l.b16 %v441
        %v1195 = vunpack.c.h.b16 %v441
        %v1196 = vunpack.c.l.b16 %v442
        %v1197 = vunpack.c.h.b16 %v442
        %v1198 = vunpack.c.l.b16 %v443
        %v1199 = vunpack.c.h.b16 %v443
        %v1200 = vunpack.c.l.b16 %v444
        %v1201 = vunpack.c.h.b16 %v444
        %v1202 = vunpack.c.l.b16 %v445
        %v1203 = vunpack.c.h.b16 %v445
        %v1204 = vunpack.c.l.b16 %v446
        %v1205 = vunpack.c.h.b16 %v446
        %v1206 = vunpack.c.l.b16 %v447
        %v1207 = vunpack.c.h.b16 %v447
        %v1208 = vunpack.c.l.b16 %v448
        %v1209 = vunpack.c.h.b16 %v448
        %v1210 = vunpack.c.l.b16 %v449
        %v1211 = vunpack.c.h.b16 %v449
        %v1212 = vunpack.c.l.b16 %v450
        %v1213 = vunpack.c.h.b16 %v450
        %v1214 = vunpack.c.l.b16 %v451
        %v1215 = vunpack.c.h.b16 %v451
        %v1216 = vunpack.c.l.b16 %v452
        %v1217 = vunpack.c.h.b16 %v452
        %v1218 = vunpack.c.l.b16 %v453
        %v1219 = vunpack.c.h.b16 %v453
        %v1220 = vunpack.c.l.b16 %v454
        %v1221 = vunpack.c.h.b16 %v454
        %v1222 = vunpack.c.l.b16 %v455
        %v1223 = vunpack.c.h.b16 %v455
        %v1224 = vunpack.c.l.b16 %v456
        %v1225 = vunpack.c.h.b16 %v456
        %v1226 = vunpack.c.l.b16 %v457
        %v1227 = vunpack.c.h.b16 %v457
        %v1228 = vunpack.c.l.b16 %v458
        %v1229 = vunpack.c.h.b16 %v458
        %v1230 = vunpack.c.l.b16 %v459
        %v1231 = vunpack.c.h.b16 %v459
        %v1232 = vunpack.c.l.b16 %v460
        %v1233 = vunpack.c.h.b16 %v460
        %v1234 = vunpack.c.l.b16 %v461
        %v1235 = vunpack.c.h.b16 %v461
        %v1236 = vunpack.c.l.b16 %v462
        %v1237 = vunpack.c.h.b16 %v462
        %v1238 = vunpack.c.l.b16 %v463
        %v1239 = vunpack.c.h.b16 %v463
        %v1240 = vunpack.c.l.b16 %v464
        %v1241 = vunpack.c.h.b16 %v464
        %v1242 = vunpack.c.l.b16 %v465
        %v1243 = vunpack.c.h.b16 %v465
        %v1244 = vunpack.c.l.b16 %v466
        %v1245 = vunpack.c.h.b16 %v466
        %v1246 = vunpack.c.l.b16 %v467
        %v1247 = vunpack.c.h.b16 %v467
        %v1248 = vunpack.c.l.b16 %v468
        %v1249 = vunpack.c.h.b16 %v468
        %v1250 = vunpack.c.l.b16 %v469
        %v1251 = vunpack.c.h.b16 %v469
        %v1252 = vunpack.c.l.b16 %v470
        %v1253 = vunpack.c.h.b16 %v470
        %v1254 = vunpack.c.l.b16 %v471
        %v1255 = vunpack.c.h.b16 %v471
        %v1256 = vunpack.c.l.b16 %v472
        %v1257 = vunpack.c.h.b16 %v472
        %v1258 = vunpack.c.l.b16 %v473
        %v1259 = vunpack.c.h.b16 %v473
        %v1260 = vunpack.c.l.b16 %v474
        %v1261 = vunpack.c.h.b16 %v474
        %v1262 = vunpack.c.l.b16 %v475
        %v1263 = vunpack.c.h.b16 %v475
        %v1264 = vunpack.c.l.b16 %v476
        %v1265 = vunpack.c.h.b16 %v476
        %v1266 = vunpack.c.l.b16 %v477
        %v1267 = vunpack.c.h.b16 %v477
        %v1268 = vunpack.c.l.b16 %v478
        %v1269 = vunpack.c.h.b16 %v478
        %v1270 = vunpack.c.l.b16 %v479
        %v1271 = vunpack.c.h.b16 %v479
        %v1272 = vunpack.c.l.b16 %v480
        %v1273 = vunpack.c.h.b16 %v480
        %v1274 = vunpack.c.l.b16 %v481
        %v1275 = vunpack.c.h.b16 %v481
        %v1276 = vunpack.c.l.b16 %v482
        %v1277 = vunpack.c.h.b16 %v482
        %v1278 = vunpack.c.l.b16 %v483
        %v1279 = vunpack.c.h.b16 %v483
        %v1280 = vunpack.c.l.b16 %v484
        %v1281 = vunpack.c.h.b16 %v484
        %v1282 = vunpack.c.l.b16 %v485
        %v1283 = vunpack.c.h.b16 %v485
        %v1284 = vunpack.c.l.b16 %v486
        %v1285 = vunpack.c.h.b16 %v486
        %v1286 = vunpack.c.l.b16 %v487
        %v1287 = vunpack.c.h.b16 %v487
        %v1288 = vunpack.c.l.b16 %v488
        %v1289 = vunpack.c.h.b16 %v488
        %v1290 = vunpack.c.l.b16 %v489
        %v1291 = vunpack.c.h.b16 %v489
        %v1292 = vunpack.c.l.b16 %v490
        %v1293 = vunpack.c.h.b16 %v490
        %v1294 = vunpack.c.l.b16 %v491
        %v1295 = vunpack.c.h.b16 %v491
        %v1296 = vunpack.c.l.b16 %v492
        %v1297 = vunpack.c.h.b16 %v492
        %v1298 = vunpack.c.l.b16 %v493
        %v1299 = vunpack.c.h.b16 %v493
        %v1300 = vunpack.c.l.b16 %v494
        %v1301 = vunpack.c.h.b16 %v494
        %v1302 = vunpack.c.l.b16 %v495
        %v1303 = vunpack.c.h.b16 %v495
        %v1304 = vunpack.c.l.b16 %v496
        %v1305 = vunpack.c.h.b16 %v496
        %v1306 = vunpack.c.l.b16 %v497
        %v1307 = vunpack.c.h.b16 %v497
        %v1308 = vunpack.c.l.b16 %v498
        %v1309 = vunpack.c.h.b16 %v498
        %v1310 = vunpack.c.l.b16 %v499
        %v1311 = vunpack.c.h.b16 %v499
        %v1312 = vunpack.c.l.b16 %v500
        %v1313 = vunpack.c.h.b16 %v500
        %v1314 = vunpack.c.l.b16 %v501
        %v1315 = vunpack.c.h.b16 %v501
        %v1316 = vunpack.c.l.b16 %v502
        %v1317 = vunpack.c.h.b16 %v502
        %v1318 = vunpack.c.l.b16 %v503
        %v1319 = vunpack.c.h.b16 %v503
        %v1320 = vunpack.c.l.b16 %v504
        %v1321 = vunpack.c.h.b16 %v504
        %v1322 = vunpack.c.l.b16 %v505
        %v1323 = vunpack.c.h.b16 %v505
        %v1324 = vunpack.c.l.b16 %v506
        %v1325 = vunpack.c.h.b16 %v506
        %v1326 = vunpack.c.l.b16 %v507
        %v1327 = vunpack.c.h.b16 %v507
        %v1328 = vunpack.c.l.b16 %v508
        %v1329 = vunpack.c.h.b16 %v508
        %v1330 = vunpack.c.l.b16 %v509
        %v1331 = vunpack.c.h.b16 %v509
        %v1332 = vunpack.c.l.b16 %v510
        %v1333 = vunpack.c.h.b16 %v510
        %v1334 = vunpack.c.l.b16 %v511
        %v1335 = vunpack.c.h.b16 %v511
        %v1336 = vunpack.c.l.b16 %v512
        %v1337 = vunpack.c.h.b16 %v512
        %v1338 = vunpack.c.l.b16 %v513
        %v1339 = vunpack.c.h.b16 %v513
        %v1340 = vunpack.c.l.b16 %v514
        %v1341 = vunpack.c.h.b16 %v514
        %v1342 = vunpack.c.l.b16 %v515
        %v1343 = vunpack.c.h.b16 %v515
        %v1344 = vunpack.c.l.b16 %v516
        %v1345 = vunpack.c.h.b16 %v516
        %v1346 = vunpack.c.l.b16 %v517
        %v1347 = vunpack.c.h.b16 %v517
        %v1348 = vunpack.c.l.b16 %v518
        %v1349 = vunpack.c.h.b16 %v518
        %v1350 = vunpack.c.l.b16 %v519
        %v1351 = vunpack.c.h.b16 %v519
        %v1352 = vunpack.c.l.b16 %v520
        %v1353 = vunpack.c.h.b16 %v520
        %v1354 = vunpack.c.l.b16 %v521
        %v1355 = vunpack.c.h.b16 %v521
        %v1356 = vunpack.c.l.b16 %v522
        %v1357 = vunpack.c.h.b16 %v522
        %v1358 = vunpack.c.l.b16 %v523
        %v1359 = vunpack.c.h.b16 %v523
        %v1360 = vpack.c.b16 %v850, %v848
        %v1361 = vpack.c.b16 %v851, %v849
        %v1362 = vpack.c.b16 %v854, %v852
        %v1363 = vpack.c.b16 %v855, %v853
        %v1364 = vpack.c.b16 %v858, %v856
        %v1365 = vpack.c.b16 %v859, %v857
        %v1366 = vpack.c.b16 %v862, %v860
        %v1367 = vpack.c.b16 %v863, %v861
        %v1368 = vpack.c.b16 %v866, %v864
        %v1369 = vpack.c.b16 %v867, %v865
        %v1370 = vpack.c.b16 %v870, %v868
        %v1371 = vpack.c.b16 %v871, %v869
        %v1372 = vpack.c.b16 %v874, %v872
        %v1373 = vpack.c.b16 %v875, %v873
        %v1374 = vpack.c.b16 %v878, %v876
        %v1375 = vpack.c.b16 %v879, %v877
        %v1376 = vpack.c.b16 %v882, %v880
        %v1377 = vpack.c.b16 %v883, %v881
        %v1378 = vpack.c.b16 %v886, %v884
        %v1379 = vpack.c.b16 %v887, %v885
        %v1380 = vpack.c.b16 %v890, %v888
        %v1381 = vpack.c.b16 %v891, %v889
        %v1382 = vpack.c.b16 %v894, %v892
        %v1383 = vpack.c.b16 %v895, %v893
        %v1384 = vpack.c.b16 %v898, %v896
        %v1385 = vpack.c.b16 %v899, %v897
        %v1386 = vpack.c.b16 %v902, %v900
        %v1387 = vpack.c.b16 %v903, %v901
        %v1388 = vpack.c.b16 %v906, %v904
        %v1389 = vpack.c.b16 %v907, %v905
        %v1390 = vpack.c.b16 %v910, %v908
        %v1391 = vpack.c.b16 %v911, %v909
        %v1392 = vpack.c.b16 %v914, %v912
        %v1393 = vpack.c.b16 %v915, %v913
        %v1394 = vpack.c.b16 %v918, %v916
        %v1395 = vpack.c.b16 %v919, %v917
        %v1396 = vpack.c.b16 %v922, %v920
        %v1397 = vpack.c.b16 %v923, %v921
        %v1398 = vpack.c.b16 %v926, %v924
        %v1399 = vpack.c.b16 %v927, %v925
        %v1400 = vpack.c.b16 %v930, %v928
        %v1401 = vpack.c.b16 %v931, %v929
        %v1402 = vpack.c.b16 %v934, %v932
        %v1403 = vpack.c.b16 %v935, %v933
        %v1404 = vpack.c.b16 %v938, %v936
        %v1405 = vpack.c.b16 %v939, %v937
        %v1406 = vpack.c.b16 %v942, %v940
        %v1407 = vpack.c.b16 %v943, %v941
        %v1408 = vpack.c.b16 %v946, %v944
        %v1409 = vpack.c.b16 %v947, %v945
        %v1410 = vpack.c.b16 %v950, %v948
        %v1411 = vpack.c.b16 %v951, %v949
        %v1412 = vpack.c.b16 %v954, %v952
        %v1413 = vpack.c.b16 %v955, %v953
        %v1414 = vpack.c.b16 %v958, %v956
        %v1415 = vpack.c.b16 %v959, %v957
        %v1416 = vpack.c.b16 %v962, %v960
        %v1417 = vpack.c.b16 %v963, %v961
        %v1418 = vpack.c.b16 %v966, %v964
        %v1419 = vpack.c.b16 %v967, %v965
        %v1420 = vpack.c.b16 %v970, %v968
        %v1421 = vpack.c.b16 %v971, %v969
        %v1422 = vpack.c.b16 %v974, %v972
        %v1423 = vpack.c.b16 %v975, %v973
        %v1424 = vpack.c.b16 %v978, %v976
        %v1425 = vpack.c.b16 %v979, %v977
        %v1426 = vpack.c.b16 %v982, %v980
        %v1427 = vpack.c.b16 %v983, %v981
        %v1428 = vpack.c.b16 %v986, %v984
        %v1429 = vpack.c.b16 %v987, %v985
        %v1430 = vpack.c.b16 %v990, %v988
        %v1431 = vpack.c.b16 %v991, %v989
        %v1432 = vpack.c.b16 %v994, %v992
        %v1433 = vpack.c.b16 %v995, %v993
        %v1434 = vpack.c.b16 %v998, %v996
        %v1435 = vpack.c.b16 %v999, %v997
        %v1436 = vpack.c.b16 %v1002, %v1000
        %v1437 = vpack.c.b16 %v1003, %v1001
        %v1438 = vpack.c.b16 %v1006, %v1004
        %v1439 = vpack.c.b16 %v1007, %v1005
        %v1440 = vpack.c.b16 %v1010, %v1008
        %v1441 = vpack.c.b16 %v1011, %v1009
        %v1442 = vpack.c.b16 %v1014, %v1012
        %v1443 = vpack.c.b16 %v1015, %v1013
        %v1444 = vpack.c.b16 %v1018, %v1016
        %v1445 = vpack.c.b16 %v1019, %v1017
        %v1446 = vpack.c.b16 %v1022, %v1020
        %v1447 = vpack.c.b16 %v1023, %v1021
        %v1448 = vpack.c.b16 %v1026, %v1024
        %v1449 = vpack.c.b16 %v1027, %v1025
        %v1450 = vpack.c.b16 %v1030, %v1028
        %v1451 = vpack.c.b16 %v1031, %v1029
        %v1452 = vpack.c.b16 %v1034, %v1032
        %v1453 = vpack.c.b16 %v1035, %v1033
        %v1454 = vpack.c.b16 %v1038, %v1036
        %v1455 = vpack.c.b16 %v1039, %v1037
        %v1456 = vpack.c.b16 %v1042, %v1040
        %v1457 = vpack.c.b16 %v1043, %v1041
        %v1458 = vpack.c.b16 %v1046, %v1044
        %v1459 = vpack.c.b16 %v1047, %v1045
        %v1460 = vpack.c.b16 %v1050, %v1048
        %v1461 = vpack.c.b16 %v1051, %v1049
        %v1462 = vpack.c.b16 %v1054, %v1052
        %v1463 = vpack.c.b16 %v1055, %v1053
        %v1464 = vpack.c.b16 %v1058, %v1056
        %v1465 = vpack.c.b16 %v1059, %v1057
        %v1466 = vpack.c.b16 %v1062, %v1060
        %v1467 = vpack.c.b16 %v1063, %v1061
        %v1468 = vpack.c.b16 %v1066, %v1064
        %v1469 = vpack.c.b16 %v1067, %v1065
        %v1470 = vpack.c.b16 %v1070, %v1068
        %v1471 = vpack.c.b16 %v1071, %v1069
        %v1472 = vpack.c.b16 %v1074, %v1072
        %v1473 = vpack.c.b16 %v1075, %v1073
        %v1474 = vpack.c.b16 %v1078, %v1076
        %v1475 = vpack.c.b16 %v1079, %v1077
        %v1476 = vpack.c.b16 %v1082, %v1080
        %v1477 = vpack.c.b16 %v1083, %v1081
        %v1478 = vpack.c.b16 %v1086, %v1084
        %v1479 = vpack.c.b16 %v1087, %v1085
        %v1480 = vpack.c.b16 %v1090, %v1088
        %v1481 = vpack.c.b16 %v1091, %v1089
        %v1482 = vpack.c.b16 %v1094, %v1092
        %v1483 = vpack.c.b16 %v1095, %v1093
        %v1484 = vpack.c.b16 %v1098, %v1096
        %v1485 = vpack.c.b16 %v1099, %v1097
        %v1486 = vpack.c.b16 %v1102, %v1100
        %v1487 = vpack.c.b16 %v1103, %v1101
        %v1488 = vpack.c.b16 %v1106, %v1104
        %v1489 = vpack.c.b16 %v1107, %v1105
        %v1490 = vpack.c.b16 %v1110, %v1108
        %v1491 = vpack.c.b16 %v1111, %v1109
        %v1492 = vpack.c.b16 %v1114, %v1112
        %v1493 = vpack.c.b16 %v1115, %v1113
        %v1494 = vpack.c.b16 %v1118, %v1116
        %v1495 = vpack.c.b16 %v1119, %v1117
        %v1496 = vpack.c.b16 %v1122, %v1120
        %v1497 = vpack.c.b16 %v1123, %v1121
        %v1498 = vpack.c.b16 %v1126, %v1124
        %v1499 = vpack.c.b16 %v1127, %v1125
        %v1500 = vpack.c.b16 %v1130, %v1128
        %v1501 = vpack.c.b16 %v1131, %v1129
        %v1502 = vpack.c.b16 %v1134, %v1132
        %v1503 = vpack.c.b16 %v1135, %v1133
        %v1504 = vpack.c.b16 %v1138, %v1136
        %v1505 = vpack.c.b16 %v1139, %v1137
        %v1506 = vpack.c.b16 %v1142, %v1140
        %v1507 = vpack.c.b16 %v1143, %v1141
        %v1508 = vpack.c.b16 %v1146, %v1144
        %v1509 = vpack.c.b16 %v1147, %v1145
        %v1510 = vpack.c.b16 %v1150, %v1148
        %v1511 = vpack.c.b16 %v1151, %v1149
        %v1512 = vpack.c.b16 %v1154, %v1152
        %v1513 = vpack.c.b16 %v1155, %v1153
        %v1514 = vpack.c.b16 %v1158, %v1156
        %v1515 = vpack.c.b16 %v1159, %v1157
        %v1516 = vpack.c.b16 %v1162, %v1160
        %v1517 = vpack.c.b16 %v1163, %v1161
        %v1518 = vpack.c.b16 %v1166, %v1164
        %v1519 = vpack.c.b16 %v1167, %v1165
        %v1520 = vpack.c.b16 %v1170, %v1168
        %v1521 = vpack.c.b16 %v1171, %v1169
        %v1522 = vpack.c.b16 %v1174, %v1172
        %v1523 = vpack.c.b16 %v1175, %v1173
        %v1524 = vpack.c.b16 %v1178, %v1176
        %v1525 = vpack.c.b16 %v1179, %v1177
        %v1526 = vpack.c.b16 %v1182, %v1180
        %v1527 = vpack.c.b16 %v1183, %v1181
        %v1528 = vpack.c.b16 %v1186, %v1184
        %v1529 = vpack.c.b16 %v1187, %v1185
        %v1530 = vpack.c.b16 %v1190, %v1188
        %v1531 = vpack.c.b16 %v1191, %v1189
        %v1532 = vpack.c.b16 %v1194, %v1192
        %v1533 = vpack.c.b16 %v1195, %v1193
        %v1534 = vpack.c.b16 %v1198, %v1196
        %v1535 = vpack.c.b16 %v1199, %v1197
        %v1536 = vpack.c.b16 %v1202, %v1200
        %v1537 = vpack.c.b16 %v1203, %v1201
        %v1538 = vpack.c.b16 %v1206, %v1204
        %v1539 = vpack.c.b16 %v1207, %v1205
        %v1540 = vpack.c.b16 %v1210, %v1208
        %v1541 = vpack.c.b16 %v1211, %v1209
        %v1542 = vpack.c.b16 %v1214, %v1212
        %v1543 = vpack.c.b16 %v1215, %v1213
        %v1544 = vpack.c.b16 %v1218, %v1216
        %v1545 = vpack.c.b16 %v1219, %v1217
        %v1546 = vpack.c.b16 %v1222, %v1220
        %v1547 = vpack.c.b16 %v1223, %v1221
        %v1548 = vpack.c.b16 %v1226, %v1224
        %v1549 = vpack.c.b16 %v1227, %v1225
        %v1550 = vpack.c.b16 %v1230, %v1228
        %v1551 = vpack.c.b16 %v1231, %v1229
        %v1552 = vpack.c.b16 %v1234, %v1232
        %v1553 = vpack.c.b16 %v1235, %v1233
        %v1554 = vpack.c.b16 %v1238, %v1236
        %v1555 = vpack.c.b16 %v1239, %v1237
        %v1556 = vpack.c.b16 %v1242, %v1240
        %v1557 = vpack.c.b16 %v1243, %v1241
        %v1558 = vpack.c.b16 %v1246, %v1244
        %v1559 = vpack.c.b16 %v1247, %v1245
        %v1560 = vpack.c.b16 %v1250, %v1248
        %v1561 = vpack.c.b16 %v1251, %v1249
        %v1562 = vpack.c.b16 %v1254, %v1252
        %v1563 = vpack.c.b16 %v1255, %v1253
        %v1564 = vpack.c.b16 %v1258, %v1256
        %v1565 = vpack.c.b16 %v1259, %v1257
        %v1566 = vpack.c.b16 %v1262, %v1260
        %v1567 = vpack.c.b16 %v1263, %v1261
        %v1568 = vpack.c.b16 %v1266, %v1264
        %v1569 = vpack.c.b16 %v1267, %v1265
        %v1570 = vpack.c.b16 %v1270, %v1268
        %v1571 = vpack.c.b16 %v1271, %v1269
        %v1572 = vpack.c.b16 %v1274, %v1272
        %v1573 = vpack.c.b16 %v1275, %v1273
        %v1574 = vpack.c.b16 %v1278, %v1276
        %v1575 = vpack.c.b16 %v1279, %v1277
        %v1576 = vpack.c.b16 %v1282, %v1280
        %v1577 = vpack.c.b16 %v1283, %v1281
        %v1578 = vpack.c.b16 %v1286, %v1284
        %v1579 = vpack.c.b16 %v1287, %v1285
        %v1580 = vpack.c.b16 %v1290, %v1288
        %v1581 = vpack.c.b16 %v1291, %v1289
        %v1582 = vpack.c.b16 %v1294, %v1292
        %v1583 = vpack.c.b16 %v1295, %v1293
        %v1584 = vpack.c.b16 %v1298, %v1296
        %v1585 = vpack.c.b16 %v1299, %v1297
        %v1586 = vpack.c.b16 %v1302, %v1300
        %v1587 = vpack.c.b16 %v1303, %v1301
        %v1588 = vpack.c.b16 %v1306, %v1304
        %v1589 = vpack.c.b16 %v1307, %v1305
        %v1590 = vpack.c.b16 %v1310, %v1308
        %v1591 = vpack.c.b16 %v1311, %v1309
        %v1592 = vpack.c.b16 %v1314, %v1312
        %v1593 = vpack.c.b16 %v1315, %v1313
        %v1594 = vpack.c.b16 %v1318, %v1316
        %v1595 = vpack.c.b16 %v1319, %v1317
        %v1596 = vpack.c.b16 %v1322, %v1320
        %v1597 = vpack.c.b16 %v1323, %v1321
        %v1598 = vpack.c.b16 %v1326, %v1324
        %v1599 = vpack.c.b16 %v1327, %v1325
        %v1600 = vpack.c.b16 %v1330, %v1328
        %v1601 = vpack.c.b16 %v1331, %v1329
        %v1602 = vpack.c.b16 %v1334, %v1332
        %v1603 = vpack.c.b16 %v1335, %v1333
        %v1604 = vpack.c.b16 %v1338, %v1336
        %v1605 = vpack.c.b16 %v1339, %v1337
        %v1606 = vpack.c.b16 %v1342, %v1340
        %v1607 = vpack.c.b16 %v1343, %v1341
        %v1608 = vpack.c.b16 %v1346, %v1344
        %v1609 = vpack.c.b16 %v1347, %v1345
        %v1610 = vpack.c.b16 %v1350, %v1348
        %v1611 = vpack.c.b16 %v1351, %v1349
        %v1612 = vpack.c.b16 %v1354, %v1352
        %v1613 = vpack.c.b16 %v1355, %v1353
        %v1614 = vpack.c.b16 %v1358, %v1356
        %v1615 = vpack.c.b16 %v1359, %v1357
        %1872 = vmatprep.subr.bf16.mxu0 %v1361
        %1873 = vmatpush1.bf16.msra.mxu0 %v1360
        %1874 = vmatprep.subr.bf16.mxu0 %v1363
        %1875 = vmatpush1.bf16.msra.mxu0 %v1362
        %1876 = vmatprep.subr.bf16.mxu0 %v1365
        %1877 = vmatpush1.bf16.msra.mxu0 %v1364
        %1878 = vmatprep.subr.bf16.mxu0 %v1367
        %1879 = vmatpush1.bf16.msra.mxu0 %v1366
        %1880 = vmatprep.subr.bf16.mxu0 %v1369
        %1881 = vmatpush1.bf16.msra.mxu0 %v1368
        %1882 = vmatprep.subr.bf16.mxu0 %v1371
        %1883 = vmatpush1.bf16.msra.mxu0 %v1370
        %1884 = vmatprep.subr.bf16.mxu0 %v1373
        %1885 = vmatpush1.bf16.msra.mxu0 %v1372
        %1886 = vmatprep.subr.bf16.mxu0 %v1375
        %1887 = vmatpush1.bf16.msra.mxu0 %v1374
        %1888 = vmatprep.subr.bf16.mxu0 %v1377
        %1889 = vmatpush1.bf16.msra.mxu0 %v1376
        %1890 = vmatprep.subr.bf16.mxu0 %v1379
        %1891 = vmatpush1.bf16.msra.mxu0 %v1378
        %1892 = vmatprep.subr.bf16.mxu0 %v1381
        %1893 = vmatpush1.bf16.msra.mxu0 %v1380
        %1894 = vmatprep.subr.bf16.mxu0 %v1383
        %1895 = vmatpush1.bf16.msra.mxu0 %v1382
        %1896 = vmatprep.subr.bf16.mxu0 %v1385
        %1897 = vmatpush1.bf16.msra.mxu0 %v1384
        %1898 = vmatprep.subr.bf16.mxu0 %v1387
        %1899 = vmatpush1.bf16.msra.mxu0 %v1386
        %1900 = vmatprep.subr.bf16.mxu0 %v1389
        %1901 = vmatpush1.bf16.msra.mxu0 %v1388
        %1902 = vmatprep.subr.bf16.mxu0 %v1391
        %1903 = vmatpush1.bf16.msra.mxu0 %v1390
        %1904 = vmatprep.mubr.bf16.mxu0 %v561
        %1905 = vmatmul.mubr.bf16.gmra.mrb[0].mxu0 %v560
        %v1906 = vpop.f32.mrb[0].mxu0
        %v1907 = vadd.f32 %v529, %v1906
        %v1908 = vpop.f32.mrb[0].mxu0
        %v1909 = vadd.f32 %v533, %v1908
        %v1910 = vpop.f32.mrb[0].mxu0
        %v1911 = vpop.f32.mrb[0].mxu0
        %1912 = vdwg.mxu0
        %1913 = vmatprep.subr.bf16.mxu0 %v1393
        %1914 = vmatpush1.bf16.msra.mxu0 %v1392
        %1915 = vmatprep.subr.bf16.mxu0 %v1395
        %1916 = vmatpush1.bf16.msra.mxu0 %v1394
        %1917 = vmatprep.subr.bf16.mxu0 %v1397
        %1918 = vmatpush1.bf16.msra.mxu0 %v1396
        %1919 = vmatprep.subr.bf16.mxu0 %v1399
        %1920 = vmatpush1.bf16.msra.mxu0 %v1398
        %1921 = vmatprep.subr.bf16.mxu0 %v1401
        %1922 = vmatpush1.bf16.msra.mxu0 %v1400
        %1923 = vmatprep.subr.bf16.mxu0 %v1403
        %1924 = vmatpush1.bf16.msra.mxu0 %v1402
        %1925 = vmatprep.subr.bf16.mxu0 %v1405
        %1926 = vmatpush1.bf16.msra.mxu0 %v1404
        %1927 = vmatprep.subr.bf16.mxu0 %v1407
        %1928 = vmatpush1.bf16.msra.mxu0 %v1406
        %1929 = vmatprep.subr.bf16.mxu0 %v1409
        %1930 = vmatpush1.bf16.msra.mxu0 %v1408
        %1931 = vmatprep.subr.bf16.mxu0 %v1411
        %1932 = vmatpush1.bf16.msra.mxu0 %v1410
        %1933 = vmatprep.subr.bf16.mxu0 %v1413
        %1934 = vmatpush1.bf16.msra.mxu0 %v1412
        %1935 = vmatprep.subr.bf16.mxu0 %v1415
        %1936 = vmatpush1.bf16.msra.mxu0 %v1414
        %1937 = vmatprep.subr.bf16.mxu0 %v1417
        %1938 = vmatpush1.bf16.msra.mxu0 %v1416
        %1939 = vmatprep.subr.bf16.mxu0 %v1419
        %1940 = vmatpush1.bf16.msra.mxu0 %v1418
        %1941 = vmatprep.subr.bf16.mxu0 %v1421
        %1942 = vmatpush1.bf16.msra.mxu0 %v1420
        %1943 = vmatprep.subr.bf16.mxu0 %v1423
        %1944 = vmatpush1.bf16.msra.mxu0 %v1422
        %1945 = vmatprep.mubr.bf16.mxu0 %v563
        %1946 = vmatmul.mubr.bf16.gmra.mrb[0].mxu0 %v562
        %v1947 = vpop.f32.mrb[0].mxu0
        %v1948 = vadd.f32 %v1907, %v1947
        %v1949 = vpop.f32.mrb[0].mxu0
        %v1950 = vadd.f32 %v1909, %v1949
        %v1951 = vpop.f32.mrb[0].mxu0
        %v1952 = vpop.f32.mrb[0].mxu0
        %1953 = vdwg.mxu0
        %1954 = vmatprep.subr.bf16.mxu0 %v1425
        %1955 = vmatpush1.bf16.msra.mxu0 %v1424
        %1956 = vmatprep.subr.bf16.mxu0 %v1427
        %1957 = vmatpush1.bf16.msra.mxu0 %v1426
        %1958 = vmatprep.subr.bf16.mxu0 %v1429
        %1959 = vmatpush1.bf16.msra.mxu0 %v1428
        %1960 = vmatprep.subr.bf16.mxu0 %v1431
        %1961 = vmatpush1.bf16.msra.mxu0 %v1430
        %1962 = vmatprep.subr.bf16.mxu0 %v1433
        %1963 = vmatpush1.bf16.msra.mxu0 %v1432
        %1964 = vmatprep.subr.bf16.mxu0 %v1435
        %1965 = vmatpush1.bf16.msra.mxu0 %v1434
        %1966 = vmatprep.subr.bf16.mxu0 %v1437
        %1967 = vmatpush1.bf16.msra.mxu0 %v1436
        %1968 = vmatprep.subr.bf16.mxu0 %v1439
        %1969 = vmatpush1.bf16.msra.mxu0 %v1438
        %1970 = vmatprep.subr.bf16.mxu0 %v1441
        %1971 = vmatpush1.bf16.msra.mxu0 %v1440
        %1972 = vmatprep.subr.bf16.mxu0 %v1443
        %1973 = vmatpush1.bf16.msra.mxu0 %v1442
        %1974 = vmatprep.subr.bf16.mxu0 %v1445
        %1975 = vmatpush1.bf16.msra.mxu0 %v1444
        %1976 = vmatprep.subr.bf16.mxu0 %v1447
        %1977 = vmatpush1.bf16.msra.mxu0 %v1446
        %1978 = vmatprep.subr.bf16.mxu0 %v1449
        %1979 = vmatpush1.bf16.msra.mxu0 %v1448
        %1980 = vmatprep.subr.bf16.mxu0 %v1451
        %1981 = vmatpush1.bf16.msra.mxu0 %v1450
        %1982 = vmatprep.subr.bf16.mxu0 %v1453
        %1983 = vmatpush1.bf16.msra.mxu0 %v1452
        %1984 = vmatprep.subr.bf16.mxu0 %v1455
        %1985 = vmatpush1.bf16.msra.mxu0 %v1454
        %1986 = vmatprep.mubr.bf16.mxu0 %v565
        %1987 = vmatmul.mubr.bf16.gmra.mrb[0].mxu0 %v564
        %v1988 = vpop.f32.mrb[0].mxu0
        %v1989 = vadd.f32 %v1948, %v1988
        %v1990 = vpop.f32.mrb[0].mxu0
        %v1991 = vadd.f32 %v1950, %v1990
        %v1992 = vpop.f32.mrb[0].mxu0
        %v1993 = vpop.f32.mrb[0].mxu0
        %1994 = vdwg.mxu0
        %1995 = vmatprep.subr.bf16.mxu0 %v1457
        %1996 = vmatpush1.bf16.msra.mxu0 %v1456
        %1997 = vmatprep.subr.bf16.mxu0 %v1459
        %1998 = vmatpush1.bf16.msra.mxu0 %v1458
        %1999 = vmatprep.subr.bf16.mxu0 %v1461
        %2000 = vmatpush1.bf16.msra.mxu0 %v1460
        %2001 = vmatprep.subr.bf16.mxu0 %v1463
        %2002 = vmatpush1.bf16.msra.mxu0 %v1462
        %2003 = vmatprep.subr.bf16.mxu0 %v1465
        %2004 = vmatpush1.bf16.msra.mxu0 %v1464
        %2005 = vmatprep.subr.bf16.mxu0 %v1467
        %2006 = vmatpush1.bf16.msra.mxu0 %v1466
        %2007 = vmatprep.subr.bf16.mxu0 %v1469
        %2008 = vmatpush1.bf16.msra.mxu0 %v1468
        %2009 = vmatprep.subr.bf16.mxu0 %v1471
        %2010 = vmatpush1.bf16.msra.mxu0 %v1470
        %2011 = vmatprep.subr.bf16.mxu0 %v1473
        %2012 = vmatpush1.bf16.msra.mxu0 %v1472
        %2013 = vmatprep.subr.bf16.mxu0 %v1475
        %2014 = vmatpush1.bf16.msra.mxu0 %v1474
        %2015 = vmatprep.subr.bf16.mxu0 %v1477
        %2016 = vmatpush1.bf16.msra.mxu0 %v1476
        %2017 = vmatprep.subr.bf16.mxu0 %v1479
        %2018 = vmatpush1.bf16.msra.mxu0 %v1478
        %2019 = vmatprep.subr.bf16.mxu0 %v1481
        %2020 = vmatpush1.bf16.msra.mxu0 %v1480
        %2021 = vmatprep.subr.bf16.mxu0 %v1483
        %2022 = vmatpush1.bf16.msra.mxu0 %v1482
        %2023 = vmatprep.subr.bf16.mxu0 %v1485
        %2024 = vmatpush1.bf16.msra.mxu0 %v1484
        %2025 = vmatprep.subr.bf16.mxu0 %v1487
        %2026 = vmatpush1.bf16.msra.mxu0 %v1486
        %2027 = vmatprep.mubr.bf16.mxu0 %v567
        %2028 = vmatmul.mubr.bf16.gmra.mrb[0].mxu0 %v566
        %v2029 = vpop.f32.mrb[0].mxu0
        %v2030 = vadd.f32 %v1989, %v2029
        %v2031 = vpop.f32.mrb[0].mxu0
        %v2032 = vadd.f32 %v1991, %v2031
        %v2033 = vpop.f32.mrb[0].mxu0
        %v2034 = vpop.f32.mrb[0].mxu0
        %2035 = vdwg.mxu0
        %2036 = vmatprep.subr.bf16.mxu0 %v1489
        %2037 = vmatpush1.bf16.msra.mxu0 %v1488
        %2038 = vmatprep.subr.bf16.mxu0 %v1491
        %2039 = vmatpush1.bf16.msra.mxu0 %v1490
        %2040 = vmatprep.subr.bf16.mxu0 %v1493
        %2041 = vmatpush1.bf16.msra.mxu0 %v1492
        %2042 = vmatprep.subr.bf16.mxu0 %v1495
        %2043 = vmatpush1.bf16.msra.mxu0 %v1494
        %2044 = vmatprep.subr.bf16.mxu0 %v1497
        %2045 = vmatpush1.bf16.msra.mxu0 %v1496
        %2046 = vmatprep.subr.bf16.mxu0 %v1499
        %2047 = vmatpush1.bf16.msra.mxu0 %v1498
        %2048 = vmatprep.subr.bf16.mxu0 %v1501
        %2049 = vmatpush1.bf16.msra.mxu0 %v1500
        %2050 = vmatprep.subr.bf16.mxu0 %v1503
        %2051 = vmatpush1.bf16.msra.mxu0 %v1502
        %2052 = vmatprep.subr.bf16.mxu0 %v1505
        %2053 = vmatpush1.bf16.msra.mxu0 %v1504
        %2054 = vmatprep.subr.bf16.mxu0 %v1507
        %2055 = vmatpush1.bf16.msra.mxu0 %v1506
        %2056 = vmatprep.subr.bf16.mxu0 %v1509
        %2057 = vmatpush1.bf16.msra.mxu0 %v1508
        %2058 = vmatprep.subr.bf16.mxu0 %v1511
        %2059 = vmatpush1.bf16.msra.mxu0 %v1510
        %2060 = vmatprep.subr.bf16.mxu0 %v1513
        %2061 = vmatpush1.bf16.msra.mxu0 %v1512
        %2062 = vmatprep.subr.bf16.mxu0 %v1515
        %2063 = vmatpush1.bf16.msra.mxu0 %v1514
        %2064 = vmatprep.subr.bf16.mxu0 %v1517
        %2065 = vmatpush1.bf16.msra.mxu0 %v1516
        %2066 = vmatprep.subr.bf16.mxu0 %v1519
        %2067 = vmatpush1.bf16.msra.mxu0 %v1518
        %2068 = vmatprep.mubr.bf16.mxu0 %v569
        %2069 = vmatmul.mubr.bf16.gmra.mrb[0].mxu0 %v568
        %v2070 = vpop.f32.mrb[0].mxu0
        %v2071 = vadd.f32 %v2030, %v2070
        %v2072 = vpop.f32.mrb[0].mxu0
        %v2073 = vadd.f32 %v2032, %v2072
        %v2074 = vpop.f32.mrb[0].mxu0
        %v2075 = vpop.f32.mrb[0].mxu0
        %2076 = vdwg.mxu0
        %2077 = vmatprep.subr.bf16.mxu0 %v1521
        %2078 = vmatpush1.bf16.msra.mxu0 %v1520
        %2079 = vmatprep.subr.bf16.mxu0 %v1523
        %2080 = vmatpush1.bf16.msra.mxu0 %v1522
        %2081 = vmatprep.subr.bf16.mxu0 %v1525
        %2082 = vmatpush1.bf16.msra.mxu0 %v1524
        %2083 = vmatprep.subr.bf16.mxu0 %v1527
        %2084 = vmatpush1.bf16.msra.mxu0 %v1526
        %2085 = vmatprep.subr.bf16.mxu0 %v1529
        %2086 = vmatpush1.bf16.msra.mxu0 %v1528
        %2087 = vmatprep.subr.bf16.mxu0 %v1531
        %2088 = vmatpush1.bf16.msra.mxu0 %v1530
        %2089 = vmatprep.subr.bf16.mxu0 %v1533
        %2090 = vmatpush1.bf16.msra.mxu0 %v1532
        %2091 = vmatprep.subr.bf16.mxu0 %v1535
        %2092 = vmatpush1.bf16.msra.mxu0 %v1534
        %2093 = vmatprep.subr.bf16.mxu0 %v1537
        %2094 = vmatpush1.bf16.msra.mxu0 %v1536
        %2095 = vmatprep.subr.bf16.mxu0 %v1539
        %2096 = vmatpush1.bf16.msra.mxu0 %v1538
        %2097 = vmatprep.subr.bf16.mxu0 %v1541
        %2098 = vmatpush1.bf16.msra.mxu0 %v1540
        %2099 = vmatprep.subr.bf16.mxu0 %v1543
        %2100 = vmatpush1.bf16.msra.mxu0 %v1542
        %2101 = vmatprep.subr.bf16.mxu0 %v1545
        %2102 = vmatpush1.bf16.msra.mxu0 %v1544
        %2103 = vmatprep.subr.bf16.mxu0 %v1547
        %2104 = vmatpush1.bf16.msra.mxu0 %v1546
        %2105 = vmatprep.subr.bf16.mxu0 %v1549
        %2106 = vmatpush1.bf16.msra.mxu0 %v1548
        %2107 = vmatprep.subr.bf16.mxu0 %v1551
        %2108 = vmatpush1.bf16.msra.mxu0 %v1550
        %2109 = vmatprep.mubr.bf16.mxu0 %v571
        %2110 = vmatmul.mubr.bf16.gmra.mrb[0].mxu0 %v570
        %v2111 = vpop.f32.mrb[0].mxu0
        %v2112 = vadd.f32 %v2071, %v2111
        %v2113 = vpop.f32.mrb[0].mxu0
        %v2114 = vadd.f32 %v2073, %v2113
        %v2115 = vpop.f32.mrb[0].mxu0
        %v2116 = vpop.f32.mrb[0].mxu0
        %2117 = vdwg.mxu0
        %2118 = vmatprep.subr.bf16.mxu0 %v1553
        %2119 = vmatpush1.bf16.msra.mxu0 %v1552
        %2120 = vmatprep.subr.bf16.mxu0 %v1555
        %2121 = vmatpush1.bf16.msra.mxu0 %v1554
        %2122 = vmatprep.subr.bf16.mxu0 %v1557
        %2123 = vmatpush1.bf16.msra.mxu0 %v1556
        %2124 = vmatprep.subr.bf16.mxu0 %v1559
        %2125 = vmatpush1.bf16.msra.mxu0 %v1558
        %2126 = vmatprep.subr.bf16.mxu0 %v1561
        %2127 = vmatpush1.bf16.msra.mxu0 %v1560
        %2128 = vmatprep.subr.bf16.mxu0 %v1563
        %2129 = vmatpush1.bf16.msra.mxu0 %v1562
        %2130 = vmatprep.subr.bf16.mxu0 %v1565
        %2131 = vmatpush1.bf16.msra.mxu0 %v1564
        %2132 = vmatprep.subr.bf16.mxu0 %v1567
        %2133 = vmatpush1.bf16.msra.mxu0 %v1566
        %2134 = vmatprep.subr.bf16.mxu0 %v1569
        %2135 = vmatpush1.bf16.msra.mxu0 %v1568
        %2136 = vmatprep.subr.bf16.mxu0 %v1571
        %2137 = vmatpush1.bf16.msra.mxu0 %v1570
        %2138 = vmatprep.subr.bf16.mxu0 %v1573
        %2139 = vmatpush1.bf16.msra.mxu0 %v1572
        %2140 = vmatprep.subr.bf16.mxu0 %v1575
        %2141 = vmatpush1.bf16.msra.mxu0 %v1574
        %2142 = vmatprep.subr.bf16.mxu0 %v1577
        %2143 = vmatpush1.bf16.msra.mxu0 %v1576
        %2144 = vmatprep.subr.bf16.mxu0 %v1579
        %2145 = vmatpush1.bf16.msra.mxu0 %v1578
        %2146 = vmatprep.subr.bf16.mxu0 %v1581
        %2147 = vmatpush1.bf16.msra.mxu0 %v1580
        %2148 = vmatprep.subr.bf16.mxu0 %v1583
        %2149 = vmatpush1.bf16.msra.mxu0 %v1582
        %2150 = vmatprep.mubr.bf16.mxu0 %v573
        %2151 = vmatmul.mubr.bf16.gmra.mrb[0].mxu0 %v572
        %v2152 = vpop.f32.mrb[0].mxu0
        %v2153 = vadd.f32 %v2112, %v2152
        %v2154 = vpop.f32.mrb[0].mxu0
        %v2155 = vadd.f32 %v2114, %v2154
        %v2156 = vpop.f32.mrb[0].mxu0
        %v2157 = vpop.f32.mrb[0].mxu0
        %2158 = vdwg.mxu0
        %2159 = vmatprep.subr.bf16.mxu0 %v1585
        %2160 = vmatpush1.bf16.msra.mxu0 %v1584
        %2161 = vmatprep.subr.bf16.mxu0 %v1587
        %2162 = vmatpush1.bf16.msra.mxu0 %v1586
        %2163 = vmatprep.subr.bf16.mxu0 %v1589
        %2164 = vmatpush1.bf16.msra.mxu0 %v1588
        %2165 = vmatprep.subr.bf16.mxu0 %v1591
        %2166 = vmatpush1.bf16.msra.mxu0 %v1590
        %2167 = vmatprep.subr.bf16.mxu0 %v1593
        %2168 = vmatpush1.bf16.msra.mxu0 %v1592
        %2169 = vmatprep.subr.bf16.mxu0 %v1595
        %2170 = vmatpush1.bf16.msra.mxu0 %v1594
        %2171 = vmatprep.subr.bf16.mxu0 %v1597
        %2172 = vmatpush1.bf16.msra.mxu0 %v1596
        %2173 = vmatprep.subr.bf16.mxu0 %v1599
        %2174 = vmatpush1.bf16.msra.mxu0 %v1598
        %2175 = vmatprep.subr.bf16.mxu0 %v1601
        %2176 = vmatpush1.bf16.msra.mxu0 %v1600
        %2177 = vmatprep.subr.bf16.mxu0 %v1603
        %2178 = vmatpush1.bf16.msra.mxu0 %v1602
        %2179 = vmatprep.subr.bf16.mxu0 %v1605
        %2180 = vmatpush1.bf16.msra.mxu0 %v1604
        %2181 = vmatprep.subr.bf16.mxu0 %v1607
        %2182 = vmatpush1.bf16.msra.mxu0 %v1606
        %2183 = vmatprep.subr.bf16.mxu0 %v1609
        %2184 = vmatpush1.bf16.msra.mxu0 %v1608
        %2185 = vmatprep.subr.bf16.mxu0 %v1611
        %2186 = vmatpush1.bf16.msra.mxu0 %v1610
        %2187 = vmatprep.subr.bf16.mxu0 %v1613
        %2188 = vmatpush1.bf16.msra.mxu0 %v1612
        %2189 = vmatprep.subr.bf16.mxu0 %v1615
        %2190 = vmatpush1.bf16.msra.mxu0 %v1614
        %2191 = vmatprep.mubr.bf16.mxu0 %v575
        %2192 = vmatmul.mubr.bf16.gmra.mrb[0].mxu0 %v574
        %v2193 = vpop.f32.mrb[0].mxu0
        %v2194 = vadd.f32 %v2153, %v2193
        %v2195 = vpop.f32.mrb[0].mxu0
        %v2196 = vadd.f32 %v2155, %v2195
        %v2197 = vpop.f32.mrb[0].mxu0
        %v2198 = vpop.f32.mrb[0].mxu0
        %2199 = vdwg.mxu0
        %v2200 = vmax.f32 %v2194, 0.0
        %v2201 = vmax.f32 %v2196, 0.0
        %v2202 = vpack.c.bf16 %v2200, %v2200
        %v2203 = vpack.c.bf16 %v2201, %v2201
        %v2206 = vunpack.c.l.b16 %v2202
        %v2207 = vunpack.c.l.b16 %v2203
        %v2208 = vpack.c.b16 %v2207, %v2206
        %2210 = vst [vmem:[%s259] sm:$0xff] %v2208
        %p2211 = scmp.lt.s32.totalorder %s22, 3
        %s2212 = scalar_select %p2211, %s22, 3
        %p2213 = scmp.lt.s32.totalorder %s23, 0
        %s2214 = scalar_select %p2213, %s23, 0
        %s2215 = smul.addr %s2214, 2
        %s2216 = smul.addr %s2212, 2
        %s2217 = sadd.s32 %s2215, %s2216
        %s2218 = smul.addr %s2217, 4
        %s2219 = scalar_lea.vmem %s3, %s2218
        // Predicated region
        $region41: #{generator_forward.8} parent=31 // pred_check
          %p2220 = pneg %p125
        $region42: #{generator_forward.8} parent=31 // pred_check_branch
          %2222 = sbr.rel (%p2220) target = $region44
        $region43: #{generator_forward.8} parent=31 // pred_region
          _
        $region44: #{generator_forward.8} parent=31 // pred_fallthru
          _
      $region32: #{generator_forward.8} parent=5 // pred_fallthru
        _
      %p2223 = scmp.le.s32.totalorder 2, %s13
      // Predicated region
      $region45: #{generator_forward.8} parent=5 // pred_check
        %p2224 = pneg %p2223
      $region46: #{generator_forward.8} parent=5 // pred_check_branch
        %2226 = sbr.rel (%p2224) target = $region48
      $region47: #{generator_forward.8} parent=5 // pred_region
        %s2227 = ssub.s32 %s13, 2
        // Predicated region
        $region49: #{generator_forward.8} parent=47 // pred_check
          %p2228 = pneg %p131
        $region50: #{generator_forward.8} parent=47 // pred_check_branch
          %2230 = sbr.rel (%p2228) target = $region52
        $region51: #{generator_forward.8} parent=47 // pred_region
          %p2231 = scmp.lt.s32.totalorder %s24, 3
          %s2232 = scalar_select %p2231, %s24, 3
          %p2233 = scmp.lt.s32.totalorder %s25, 0
          %s2234 = scalar_select %p2233, %s25, 0
          %s2235 = smul.addr %s2234, 2
          %s2236 = smul.addr %s2232, 2
          %s2237 = sadd.s32 %s2235, %s2236
          %s2238 = smul.addr %s2237, 4
          %s2239 = scalar_lea.vmem %s3, %s2238
        $region52: #{generator_forward.8} parent=47 // pred_fallthru
          _
      $region48: #{generator_forward.8} parent=5 // pred_fallthru
        _
    $region6: #{generator_forward.8} parent=1 // loop_footer
      %s17 = sadd.s32 1, %s13
    $region7: #{generator_forward.8} parent=1 // loop_footer_branch
      %12 = sbr.rel target = $region3
    $region8: #{generator_forward.8} parent=1 // loop_exit
      _
    %2240 = vsyncpa [#allocation3], 1
    %s2241 = scalar_lea.sflag [#allocation3], 1
    %2242 = vsyncpa %s2241, 1
    %2243 = vsyncpa [#allocation5], 1

// kernel: generator_forward.9
$region0: #{generator_forward.9}
  #allocation0 [shape = 'u32[]', space=smem, size = 0x4, offset = 0x4, fixed_abs, tag = 'smem constant byte address 0x4 - core index']
  #allocation1 [shape = 'u32[144,128]{1,0:T(1,128)}', space=vmem, size = 0x12000, scoped, tag = 'internal scratch']
  %s0 = inlined_call_operand.vmem [shape: bf16[4,32,1024], index: 0, kind: input, shape index: {}]
  %s1 = inlined_call_operand.vmem [shape: bf16[4,1024,128], index: 1, kind: input, shape index: {}]
  %s2 = inlined_call_operand.vmem [shape: f32[1,128], index: 2, kind: input, shape index: {}]
  %s3 = inlined_call_operand.vmem [shape: bf16[4,32,128], index: 3, kind: output, shape index: {}]
  %s4 = sld [smem:[#allocation0]]
  $region45: #{generator_forward.9} parent=0
    _
  %s6 = ssub.s32 1, %s4
  %s7 = scalar_select 0, %s6, %s4
  loop: start=0, step=1, limit=6
  $region2: #{generator_forward.9} parent=0 // loop_pre_header
    _
  $region3: #{generator_forward.9} parent=0 // loop_header
    %s9 = sphi 0, %s13
    %p10 = scmp.ge.s32.totalorder %s9, 6
    %s16 = sphi 0, %s28
    %s17 = sphi 0, %s24
    %s18 = sphi 0, %s16
    %s19 = sphi 0, %s17
    %s20 = sphi 0, %s18
    %s21 = sphi 0, %s19
    %s33 = sphi 0, %s35
    %s36 = sphi 0, %s33
    %s37 = sphi 0, %s36
    %s53 = sphi 0, %s37
    %s59 = sphi 0, %s61
    %s62 = sphi 0, %s59
    %s63 = sphi 0, %s62
    %s79 = sphi 0, %s63
    %s83 = sphi 0, %s83
    %s85 = sphi 0, %s83
    %s86 = sphi 0, %s85
    %s100 = sphi 0, %s86
    %s108 = sphi 0, %s110
    %s111 = sphi 0, %s108
    %s112 = sphi 0, %s111
    %s128 = sphi 0, %s112
  $region4: #{generator_forward.9} parent=0 // loop_header_branch
    %12 = sbr.rel (%p10) target = $region8
  $region5: #{generator_forward.9} parent=0 // loop_body
    %s14 = ssub.s32 %s9, 1
    %s15 = ssub.s32 %s9, 2
    %s22 = sadd.s32 1, %s17
    %p23 = scmp.ge.s32.totalorder %s22, 1
    %s24 = scalar_select %p23, 0, %s22
    %s25 = sadd.s32 1, %s16
    %s26 = scalar_select %p23, %s25, %s16
    %p27 = scmp.ge.s32.totalorder %s26, 4
    %s28 = scalar_select %p27, 0, %s26
    %s29 = ssub.s32 %s16, %s28
    %s30 = ssub.s32 %s17, %s24
    %s31 = sor.u32 %s29, %s30
    %p32 = scmp.eq.s32.totalorder %s31, 0
    %s34 = sadd.s32 %s33, 1
    %s35 = scalar_select %p32, %s33, %s34
    %p38 = pneg %p32
    %p39 = scmp.eq.s32.totalorder %s9, 3
    %p40 = por %p38, %p39
    %p41 = scmp.ne.s32.totalorder %s33, %s36
    %p42 = scmp.eq.s32.totalorder %s9, 0
    %p43 = por %p41, %p42
    %p44 = scmp.ne.s32.totalorder %s33, %s36
    %p45 = scmp.eq.s32.totalorder %s14, 3
    %p46 = por %p44, %p45
    %p47 = scmp.ne.s32.totalorder %s36, %s37
    %p48 = scmp.eq.s32.totalorder %s14, 0
    %p49 = por %p47, %p48
    %p50 = scmp.ne.s32.totalorder %s36, %s37
    %p51 = scmp.eq.s32.totalorder %s15, 3
    %p52 = por %p50, %p51
    %p54 = scmp.ne.s32.totalorder %s37, %s53
    %p55 = scmp.eq.s32.totalorder %s15, 0
    %p56 = por %p54, %p55
    %s57 = ssub.s32 %s16, %s28
    %p58 = scmp.eq.s32.totalorder %s57, 0
    %s60 = sadd.s32 %s59, 1
    %s61 = scalar_select %p58, %s59, %s60
    %p64 = pneg %p58
    %p65 = scmp.eq.s32.totalorder %s9, 3
    %p66 = por %p64, %p65
    %p67 = scmp.ne.s32.totalorder %s59, %s62
    %p68 = scmp.eq.s32.totalorder %s9, 0
    %p69 = por %p67, %p68
    %p70 = scmp.ne.s32.totalorder %s59, %s62
    %p71 = scmp.eq.s32.totalorder %s14, 3
    %p72 = por %p70, %p71
    %p73 = scmp.ne.s32.totalorder %s62, %s63
    %p74 = scmp.eq.s32.totalorder %s14, 0
    %p75 = por %p73, %p74
    %p76 = scmp.ne.s32.totalorder %s62, %s63
    %p77 = scmp.eq.s32.totalorder %s15, 3
    %p78 = por %p76, %p77
    %p80 = scmp.ne.s32.totalorder %s63, %s79
    %p81 = scmp.eq.s32.totalorder %s15, 0
    %p82 = por %p80, %p81
    %s84 = sadd.s32 %s83, 1
    %p87 = scmp.eq.s32.totalorder %s9, 3
    %p88 = scmp.ne.s32.totalorder %s83, %s85
    %p89 = scmp.eq.s32.totalorder %s9, 0
    %p90 = por %p88, %p89
    %p91 = scmp.ne.s32.totalorder %s83, %s85
    %p92 = scmp.eq.s32.totalorder %s14, 3
    %p93 = por %p91, %p92
    %p94 = scmp.ne.s32.totalorder %s85, %s86
    %p95 = scmp.eq.s32.totalorder %s14, 0
    %p96 = por %p94, %p95
    %p97 = scmp.ne.s32.totalorder %s85, %s86
    %p98 = scmp.eq.s32.totalorder %s15, 3
    %p99 = por %p97, %p98
    %p101 = scmp.ne.s32.totalorder %s86, %s100
    %p102 = scmp.eq.s32.totalorder %s15, 0
    %p103 = por %p101, %p102
    %s104 = ssub.s32 %s16, %s28
    %s105 = ssub.s32 %s17, %s24
    %s106 = sor.u32 %s104, %s105
    %p107 = scmp.eq.s32.totalorder %s106, 0
    %s109 = sadd.s32 %s108, 1
    %s110 = scalar_select %p107, %s108, %s109
    %p113 = pneg %p107
    %p114 = scmp.eq.s32.totalorder %s9, 3
    %p115 = por %p113, %p114
    %p116 = scmp.ne.s32.totalorder %s108, %s111
    %p117 = scmp.eq.s32.totalorder %s9, 0
    %p118 = por %p116, %p117
    %p119 = scmp.ne.s32.totalorder %s108, %s111
    %p120 = scmp.eq.s32.totalorder %s14, 3
    %p121 = por %p119, %p120
    %p122 = scmp.ne.s32.totalorder %s111, %s112
    %p123 = scmp.eq.s32.totalorder %s14, 0
    %p124 = por %p122, %p123
    %p125 = scmp.ne.s32.totalorder %s111, %s112
    %p126 = scmp.eq.s32.totalorder %s15, 3
    %p127 = por %p125, %p126
    %p129 = scmp.ne.s32.totalorder %s112, %s128
    %p130 = scmp.eq.s32.totalorder %s15, 0
    %p131 = por %p129, %p130
    %p132 = scmp.le.s32.totalorder 1, %s9
    %p133 = scmp.lt.s32.totalorder %s9, 5
    %p134 = pnand %p132, %p133
    %p135 = pneg %p134
    // Predicated region
    $region9: #{generator_forward.9} parent=5 // pred_check
      _
    $region10: #{generator_forward.9} parent=5 // pred_check_branch
      %137 = sbr.rel (%p134) target = $region12
    $region11: #{generator_forward.9} parent=5 // pred_region
      %s138 = ssub.s32 %s9, 1
      // Predicated region
      $region13: #{generator_forward.9} parent=11 // pred_check
        %p139 = pneg %p96
      $region14: #{generator_forward.9} parent=11 // pred_check_branch
        %141 = sbr.rel (%p139) target = $region16
      $region15: #{generator_forward.9} parent=11 // pred_region
        _
      $region16: #{generator_forward.9} parent=11 // pred_fallthru
        _
    $region12: #{generator_forward.9} parent=5 // pred_fallthru
      _
    %p142 = scmp.lt.s32.totalorder %s9, 4
    // Predicated region
    $region17: #{generator_forward.9} parent=5 // pred_check
      %p143 = pneg %p142
    $region18: #{generator_forward.9} parent=5 // pred_check_branch
      %145 = sbr.rel (%p143) target = $region20
    $region19: #{generator_forward.9} parent=5 // pred_region
      // Predicated region
      $region21: #{generator_forward.9} parent=19 // pred_check
        %p146 = pneg %p43
      $region22: #{generator_forward.9} parent=19 // pred_check_branch
        %148 = sbr.rel (%p146) target = $region24
      $region23: #{generator_forward.9} parent=19 // pred_region
        %s149 = smul.u32 4, %s17
        %p150 = scmp.lt.s32.totalorder %s16, 3
        %s151 = scalar_select %p150, %s16, 3
        %p152 = scmp.lt.s32.totalorder %s149, 3
        %s153 = scalar_select %p152, %s149, 3
        %s154 = smul.addr %s153, 8
        %s155 = smul.addr %s151, 32
        %s156 = sadd.s32 %s154, %s155
        %s157 = smul.addr %s156, 4
        %s158 = scalar_lea.vmem %s0, %s157
        %s159 = smul.u32 4, %s17
      $region24: #{generator_forward.9} parent=19 // pred_fallthru
        _
      // Predicated region
      $region25: #{generator_forward.9} parent=19 // pred_check
        %p160 = pneg %p69
      $region26: #{generator_forward.9} parent=19 // pred_check_branch
        %162 = sbr.rel (%p160) target = $region28
      $region27: #{generator_forward.9} parent=19 // pred_region
        %p163 = scmp.lt.s32.totalorder %s16, 3
        %s164 = scalar_select %p163, %s16, 3
        %s165 = smul.addr %s164, 128
        %s166 = smul.addr %s165, 4
        %s167 = scalar_lea.vmem %s1, %s166
      $region28: #{generator_forward.9} parent=19 // pred_fallthru
        _
    $region20: #{generator_forward.9} parent=5 // pred_fallthru
      _
    %p168 = scmp.le.s32.totalorder 1, %s9
    %p169 = scmp.lt.s32.totalorder %s9, 5
    %p170 = pnand %p168, %p169
    %p171 = pneg %p170
    // Predicated region
    $region29: #{generator_forward.9} parent=5 // pred_check
      _
    $region30: #{generator_forward.9} parent=5 // pred_check_branch
      %173 = sbr.rel (%p170) target = $region32
    $region31: #{generator_forward.9} parent=5 // pred_region
      %s174 = ssub.s32 %s9, 1
      %s175 = smul.u32 4, %s19
      %p176 = scmp.lt.s32.totalorder %s18, 3
      %s177 = scalar_select %p176, %s18, 3
      %p178 = scmp.lt.s32.totalorder %s175, 3
      %s179 = scalar_select %p178, %s175, 3
      %s180 = smul.addr %s179, 8
      %s181 = smul.addr %s177, 32
      %s182 = sadd.s32 %s180, %s181
      %s183 = smul.addr %s182, 4
      %s184 = scalar_lea.vmem %s0, %s183
      %p185 = pneg %p49
      %p186 = pneg %p46
      %p187 = scmp.lt.s32.totalorder %s18, 3
      %s188 = scalar_select %p187, %s18, 3
      %s189 = smul.addr %s188, 128
      %s190 = smul.addr %s189, 4
      %s191 = scalar_lea.vmem %s1, %s190
      %p192 = pneg %p75
      %p193 = pneg %p72
      %p194 = pneg %p96
      %p195 = pneg %p93
      %p196 = pneg %p124
      %p197 = pneg %p121
      %s198 = smul.u32 4, %s19
      %p199 = scmp.lt.s32.totalorder %s18, 3
      %s200 = scalar_select %p199, %s18, 3
      %p201 = scmp.lt.s32.totalorder %s198, 3
      %s202 = scalar_select %p201, %s198, 3
      %s203 = smul.addr %s200, 4
      %s204 = sadd.s32 %s202, %s203
      %s205 = smul.addr %s204, 4
      %s206 = scalar_lea.vmem %s3, %s205
      %s207 = smul.u32 4, %s19
      %p208 = scmp.lt.s32.totalorder %s18, 3
      %s209 = scalar_select %p208, %s18, 3
      %p210 = scmp.lt.s32.totalorder %s207, 3
      %s211 = scalar_select %p210, %s207, 3
      %s212 = smul.addr %s211, 8
      %s213 = smul.addr %s209, 32
      %s214 = sadd.s32 %s212, %s213
      %s215 = smul.addr %s214, 4
      %s216 = scalar_lea.vmem %s0, %s215
      %s217 = smul.u32 4, %s19
      %p218 = scmp.lt.s32.totalorder %s18, 3
      %s219 = scalar_select %p218, %s18, 3
      %s220 = smul.addr %s219, 128
      %s221 = smul.addr %s220, 4
      %s222 = scalar_lea.vmem %s1, %s221
      %s223 = smul.u32 4, %s19
      %p224 = scmp.lt.s32.totalorder %s18, 3
      %s225 = scalar_select %p224, %s18, 3
      %p226 = scmp.lt.s32.totalorder %s223, 3
      %s227 = scalar_select %p226, %s223, 3
      %s228 = smul.addr %s225, 4
      %s229 = sadd.s32 %s227, %s228
      %s230 = smul.addr %s229, 4
      %s231 = scalar_lea.vmem %s3, %s230
      %s232 = smul.u32 4, %s19
      %v234 = vld [vmem:[%s216] sm:$0xff]
      %v235 = vld [vmem:[%s216 + $0x8] sm:$0xff]
      %v236 = vld [vmem:[%s216 + $0x10] sm:$0xff]
      %v237 = vld [vmem:[%s216 + $0x18] sm:$0xff]
      %v238 = vld [vmem:[%s216 + $0x20] sm:$0xff]
      %v239 = vld [vmem:[%s216 + $0x28] sm:$0xff]
      %v240 = vld [vmem:[%s216 + $0x30] sm:$0xff]
      %v241 = vld [vmem:[%s216 + $0x38] sm:$0xff]
      %v242 = vld [vmem:[%s216 + $0x40] sm:$0xff]
      %v243 = vld [vmem:[%s216 + $0x48] sm:$0xff]
      %v244 = vld [vmem:[%s216 + $0x50] sm:$0xff]
      %v245 = vld [vmem:[%s216 + $0x58] sm:$0xff]
      %v246 = vld [vmem:[%s216 + $0x60] sm:$0xff]
      %v247 = vld [vmem:[%s216 + $0x68] sm:$0xff]
      %v248 = vld [vmem:[%s216 + $0x70] sm:$0xff]
      %v249 = vld [vmem:[%s216 + $0x78] sm:$0xff]
      %v250 = vld [vmem:[%s222] sm:$0xf]
      %v251 = vld [vmem:[%s222 + $0x4] sm:$0xf]
      %v252 = vld [vmem:[%s222 + $0x8] sm:$0xf]
      %v253 = vld [vmem:[%s222 + $0xc] sm:$0xf]
      %v254 = vld [vmem:[%s222 + $0x10] sm:$0xf]
      %v255 = vld [vmem:[%s222 + $0x14] sm:$0xf]
      %v256 = vld [vmem:[%s222 + $0x18] sm:$0xf]
      %v257 = vld [vmem:[%s222 + $0x1c] sm:$0xf]
      %v258 = vld [vmem:[%s222 + $0x20] sm:$0xf]
      %v259 = vld [vmem:[%s222 + $0x24] sm:$0xf]
      %v260 = vld [vmem:[%s222 + $0x28] sm:$0xf]
      %v261 = vld [vmem:[%s222 + $0x2c] sm:$0xf]
      %v262 = vld [vmem:[%s222 + $0x30] sm:$0xf]
      %v263 = vld [vmem:[%s222 + $0x34] sm:$0xf]
      %v264 = vld [vmem:[%s222 + $0x38] sm:$0xf]
      %v265 = vld [vmem:[%s222 + $0x3c] sm:$0xf]
      %v266 = vld [vmem:[%s222 + $0x40] sm:$0xf]
      %v267 = vld [vmem:[%s222 + $0x44] sm:$0xf]
      %v268 = vld [vmem:[%s222 + $0x48] sm:$0xf]
      %v269 = vld [vmem:[%s222 + $0x4c] sm:$0xf]
      %v270 = vld [vmem:[%s222 + $0x50] sm:$0xf]
      %v271 = vld [vmem:[%s222 + $0x54] sm:$0xf]
      %v272 = vld [vmem:[%s222 + $0x58] sm:$0xf]
      %v273 = vld [vmem:[%s222 + $0x5c] sm:$0xf]
      %v274 = vld [vmem:[%s222 + $0x60] sm:$0xf]
      %v275 = vld [vmem:[%s222 + $0x64] sm:$0xf]
      %v276 = vld [vmem:[%s222 + $0x68] sm:$0xf]
      %v277 = vld [vmem:[%s222 + $0x6c] sm:$0xf]
      %v278 = vld [vmem:[%s222 + $0x70] sm:$0xf]
      %v279 = vld [vmem:[%s222 + $0x74] sm:$0xf]
      %v280 = vld [vmem:[%s222 + $0x78] sm:$0xf]
      %v281 = vld [vmem:[%s222 + $0x7c] sm:$0xf]
      %v282 = vld [vmem:[%s222 + $0x80] sm:$0xf]
      %v283 = vld [vmem:[%s222 + $0x84] sm:$0xf]
      %v284 = vld [vmem:[%s222 + $0x88] sm:$0xf]
      %v285 = vld [vmem:[%s222 + $0x8c] sm:$0xf]
      %v286 = vld [vmem:[%s222 + $0x90] sm:$0xf]
      %v287 = vld [vmem:[%s222 + $0x94] sm:$0xf]
      %v288 = vld [vmem:[%s222 + $0x98] sm:$0xf]
      %v289 = vld [vmem:[%s222 + $0x9c] sm:$0xf]
      %v290 = vld [vmem:[%s222 + $0xa0] sm:$0xf]
      %v291 = vld [vmem:[%s222 + $0xa4] sm:$0xf]
      %v292 = vld [vmem:[%s222 + $0xa8] sm:$0xf]
      %v293 = vld [vmem:[%s222 + $0xac] sm:$0xf]
      %v294 = vld [vmem:[%s222 + $0xb0] sm:$0xf]
      %v295 = vld [vmem:[%s222 + $0xb4] sm:$0xf]
      %v296 = vld [vmem:[%s222 + $0xb8] sm:$0xf]
      %v297 = vld [vmem:[%s222 + $0xbc] sm:$0xf]
      %v298 = vld [vmem:[%s222 + $0xc0] sm:$0xf]
      %v299 = vld [vmem:[%s222 + $0xc4] sm:$0xf]
      %v300 = vld [vmem:[%s222 + $0xc8] sm:$0xf]
      %v301 = vld [vmem:[%s222 + $0xcc] sm:$0xf]
      %v302 = vld [vmem:[%s222 + $0xd0] sm:$0xf]
      %v303 = vld [vmem:[%s222 + $0xd4] sm:$0xf]
      %v304 = vld [vmem:[%s222 + $0xd8] sm:$0xf]
      %v305 = vld [vmem:[%s222 + $0xdc] sm:$0xf]
      %v306 = vld [vmem:[%s222 + $0xe0] sm:$0xf]
      %v307 = vld [vmem:[%s222 + $0xe4] sm:$0xf]
      %v308 = vld [vmem:[%s222 + $0xe8] sm:$0xf]
      %v309 = vld [vmem:[%s222 + $0xec] sm:$0xf]
      %v310 = vld [vmem:[%s222 + $0xf0] sm:$0xf]
      %v311 = vld [vmem:[%s222 + $0xf4] sm:$0xf]
      %v312 = vld [vmem:[%s222 + $0xf8] sm:$0xf]
      %v313 = vld [vmem:[%s222 + $0xfc] sm:$0xf]
      %v314 = vld [vmem:[%s222 + $0x100] sm:$0xf]
      %v315 = vld [vmem:[%s222 + $0x104] sm:$0xf]
      %v316 = vld [vmem:[%s222 + $0x108] sm:$0xf]
      %v317 = vld [vmem:[%s222 + $0x10c] sm:$0xf]
      %v318 = vld [vmem:[%s222 + $0x110] sm:$0xf]
      %v319 = vld [vmem:[%s222 + $0x114] sm:$0xf]
      %v320 = vld [vmem:[%s222 + $0x118] sm:$0xf]
      %v321 = vld [vmem:[%s222 + $0x11c] sm:$0xf]
      %v322 = vld [vmem:[%s222 + $0x120] sm:$0xf]
      %v323 = vld [vmem:[%s222 + $0x124] sm:$0xf]
      %v324 = vld [vmem:[%s222 + $0x128] sm:$0xf]
      %v325 = vld [vmem:[%s222 + $0x12c] sm:$0xf]
      %v326 = vld [vmem:[%s222 + $0x130] sm:$0xf]
      %v327 = vld [vmem:[%s222 + $0x134] sm:$0xf]
      %v328 = vld [vmem:[%s222 + $0x138] sm:$0xf]
      %v329 = vld [vmem:[%s222 + $0x13c] sm:$0xf]
      %v330 = vld [vmem:[%s222 + $0x140] sm:$0xf]
      %v331 = vld [vmem:[%s222 + $0x144] sm:$0xf]
      %v332 = vld [vmem:[%s222 + $0x148] sm:$0xf]
      %v333 = vld [vmem:[%s222 + $0x14c] sm:$0xf]
      %v334 = vld [vmem:[%s222 + $0x150] sm:$0xf]
      %v335 = vld [vmem:[%s222 + $0x154] sm:$0xf]
      %v336 = vld [vmem:[%s222 + $0x158] sm:$0xf]
      %v337 = vld [vmem:[%s222 + $0x15c] sm:$0xf]
      %v338 = vld [vmem:[%s222 + $0x160] sm:$0xf]
      %v339 = vld [vmem:[%s222 + $0x164] sm:$0xf]
      %v340 = vld [vmem:[%s222 + $0x168] sm:$0xf]
      %v341 = vld [vmem:[%s222 + $0x16c] sm:$0xf]
      %v342 = vld [vmem:[%s222 + $0x170] sm:$0xf]
      %v343 = vld [vmem:[%s222 + $0x174] sm:$0xf]
      %v344 = vld [vmem:[%s222 + $0x178] sm:$0xf]
      %v345 = vld [vmem:[%s222 + $0x17c] sm:$0xf]
      %v346 = vld [vmem:[%s222 + $0x180] sm:$0xf]
      %v347 = vld [vmem:[%s222 + $0x184] sm:$0xf]
      %v348 = vld [vmem:[%s222 + $0x188] sm:$0xf]
      %v349 = vld [vmem:[%s222 + $0x18c] sm:$0xf]
      %v350 = vld [vmem:[%s222 + $0x190] sm:$0xf]
      %v351 = vld [vmem:[%s222 + $0x194] sm:$0xf]
      %v352 = vld [vmem:[%s222 + $0x198] sm:$0xf]
      %v353 = vld [vmem:[%s222 + $0x19c] sm:$0xf]
      %v354 = vld [vmem:[%s222 + $0x1a0] sm:$0xf]
      %v355 = vld [vmem:[%s222 + $0x1a4] sm:$0xf]
      %v356 = vld [vmem:[%s222 + $0x1a8] sm:$0xf]
      %v357 = vld [vmem:[%s222 + $0x1ac] sm:$0xf]
      %v358 = vld [vmem:[%s222 + $0x1b0] sm:$0xf]
      %v359 = vld [vmem:[%s222 + $0x1b4] sm:$0xf]
      %v360 = vld [vmem:[%s222 + $0x1b8] sm:$0xf]
      %v361 = vld [vmem:[%s222 + $0x1bc] sm:$0xf]
      %v362 = vld [vmem:[%s222 + $0x1c0] sm:$0xf]
      %v363 = vld [vmem:[%s222 + $0x1c4] sm:$0xf]
      %v364 = vld [vmem:[%s222 + $0x1c8] sm:$0xf]
      %v365 = vld [vmem:[%s222 + $0x1cc] sm:$0xf]
      %v366 = vld [vmem:[%s222 + $0x1d0] sm:$0xf]
      %v367 = vld [vmem:[%s222 + $0x1d4] sm:$0xf]
      %v368 = vld [vmem:[%s222 + $0x1d8] sm:$0xf]
      %v369 = vld [vmem:[%s222 + $0x1dc] sm:$0xf]
      %v370 = vld [vmem:[%s222 + $0x1e0] sm:$0xf]
      %v371 = vld [vmem:[%s222 + $0x1e4] sm:$0xf]
      %v372 = vld [vmem:[%s222 + $0x1e8] sm:$0xf]
      %v373 = vld [vmem:[%s222 + $0x1ec] sm:$0xf]
      %v374 = vld [vmem:[%s222 + $0x1f0] sm:$0xf]
      %v375 = vld [vmem:[%s222 + $0x1f4] sm:$0xf]
      %v376 = vld [vmem:[%s222 + $0x1f8] sm:$0xf]
      %v377 = vld [vmem:[%s222 + $0x1fc] sm:$0xf]
      %v378 = vld [vmem:[%s2] sm:$0x1]
      %v380 = vlaneseq
      %v381 = vshrl.u32 %v380, 7
      %v382 = vsub.s32 0, %v381
      %v383 = vrot.slane %v378, %v382
      %v401 = vunpack.c.l.b16 %v234
      %v402 = vunpack.c.h.b16 %v234
      %v403 = vunpack.c.l.b16 %v235
      %v404 = vunpack.c.h.b16 %v235
      %v405 = vunpack.c.l.b16 %v236
      %v406 = vunpack.c.h.b16 %v236
      %v407 = vunpack.c.l.b16 %v237
      %v408 = vunpack.c.h.b16 %v237
      %v409 = vunpack.c.l.b16 %v238
      %v410 = vunpack.c.h.b16 %v238
      %v411 = vunpack.c.l.b16 %v239
      %v412 = vunpack.c.h.b16 %v239
      %v413 = vunpack.c.l.b16 %v240
      %v414 = vunpack.c.h.b16 %v240
      %v415 = vunpack.c.l.b16 %v241
      %v416 = vunpack.c.h.b16 %v241
      %v417 = vunpack.c.l.b16 %v242
      %v418 = vunpack.c.h.b16 %v242
      %v419 = vunpack.c.l.b16 %v243
      %v420 = vunpack.c.h.b16 %v243
      %v421 = vunpack.c.l.b16 %v244
      %v422 = vunpack.c.h.b16 %v244
      %v423 = vunpack.c.l.b16 %v245
      %v424 = vunpack.c.h.b16 %v245
      %v425 = vunpack.c.l.b16 %v246
      %v426 = vunpack.c.h.b16 %v246
      %v427 = vunpack.c.l.b16 %v247
      %v428 = vunpack.c.h.b16 %v247
      %v429 = vunpack.c.l.b16 %v248
      %v430 = vunpack.c.h.b16 %v248
      %v431 = vunpack.c.l.b16 %v249
      %v432 = vunpack.c.h.b16 %v249
      %v433 = vpack.c.b16 %v409, %v401
      %v434 = vpack.c.b16 %v410, %v402
      %v435 = vpack.c.b16 %v411, %v403
      %v436 = vpack.c.b16 %v412, %v404
      %v437 = vpack.c.b16 %v413, %v405
      %v438 = vpack.c.b16 %v414, %v406
      %v439 = vpack.c.b16 %v415, %v407
      %v440 = vpack.c.b16 %v416, %v408
      %v441 = vpack.c.b16 %v425, %v417
      %v442 = vpack.c.b16 %v426, %v418
      %v443 = vpack.c.b16 %v427, %v419
      %v444 = vpack.c.b16 %v428, %v420
      %v445 = vpack.c.b16 %v429, %v421
      %v446 = vpack.c.b16 %v430, %v422
      %v447 = vpack.c.b16 %v431, %v423
      %v448 = vpack.c.b16 %v432, %v424
      %v593 = vunpack.c.l.b16 %v250
      %v594 = vunpack.c.l.b16 %v251
      %v595 = vunpack.c.l.b16 %v252
      %v596 = vunpack.c.l.b16 %v253
      %v597 = vunpack.c.l.b16 %v254
      %v598 = vunpack.c.l.b16 %v255
      %v599 = vunpack.c.l.b16 %v256
      %v600 = vunpack.c.l.b16 %v257
      %v601 = vunpack.c.l.b16 %v258
      %v602 = vunpack.c.l.b16 %v259
      %v603 = vunpack.c.l.b16 %v260
      %v604 = vunpack.c.l.b16 %v261
      %v605 = vunpack.c.l.b16 %v262
      %v606 = vunpack.c.l.b16 %v263
      %v607 = vunpack.c.l.b16 %v264
      %v608 = vunpack.c.l.b16 %v265
      %v609 = vunpack.c.l.b16 %v266
      %v610 = vunpack.c.l.b16 %v267
      %v611 = vunpack.c.l.b16 %v268
      %v612 = vunpack.c.l.b16 %v269
      %v613 = vunpack.c.l.b16 %v270
      %v614 = vunpack.c.l.b16 %v271
      %v615 = vunpack.c.l.b16 %v272
      %v616 = vunpack.c.l.b16 %v273
      %v617 = vunpack.c.l.b16 %v274
      %v618 = vunpack.c.l.b16 %v275
      %v619 = vunpack.c.l.b16 %v276
      %v620 = vunpack.c.l.b16 %v277
      %v621 = vunpack.c.l.b16 %v278
      %v622 = vunpack.c.l.b16 %v279
      %v623 = vunpack.c.l.b16 %v280
      %v624 = vunpack.c.l.b16 %v281
      %v625 = vunpack.c.l.b16 %v282
      %v626 = vunpack.c.l.b16 %v283
      %v627 = vunpack.c.l.b16 %v284
      %v628 = vunpack.c.l.b16 %v285
      %v629 = vunpack.c.l.b16 %v286
      %v630 = vunpack.c.l.b16 %v287
      %v631 = vunpack.c.l.b16 %v288
      %v632 = vunpack.c.l.b16 %v289
      %v633 = vunpack.c.l.b16 %v290
      %v634 = vunpack.c.l.b16 %v291
      %v635 = vunpack.c.l.b16 %v292
      %v636 = vunpack.c.l.b16 %v293
      %v637 = vunpack.c.l.b16 %v294
      %v638 = vunpack.c.l.b16 %v295
      %v639 = vunpack.c.l.b16 %v296
      %v640 = vunpack.c.l.b16 %v297
      %v641 = vunpack.c.l.b16 %v298
      %v642 = vunpack.c.l.b16 %v299
      %v643 = vunpack.c.l.b16 %v300
      %v644 = vunpack.c.l.b16 %v301
      %v645 = vunpack.c.l.b16 %v302
      %v646 = vunpack.c.l.b16 %v303
      %v647 = vunpack.c.l.b16 %v304
      %v648 = vunpack.c.l.b16 %v305
      %v649 = vunpack.c.l.b16 %v306
      %v650 = vunpack.c.l.b16 %v307
      %v651 = vunpack.c.l.b16 %v308
      %v652 = vunpack.c.l.b16 %v309
      %v653 = vunpack.c.l.b16 %v310
      %v654 = vunpack.c.l.b16 %v311
      %v655 = vunpack.c.l.b16 %v312
      %v656 = vunpack.c.l.b16 %v313
      %v657 = vunpack.c.l.b16 %v314
      %v658 = vunpack.c.l.b16 %v315
      %v659 = vunpack.c.l.b16 %v316
      %v660 = vunpack.c.l.b16 %v317
      %v661 = vunpack.c.l.b16 %v318
      %v662 = vunpack.c.l.b16 %v319
      %v663 = vunpack.c.l.b16 %v320
      %v664 = vunpack.c.l.b16 %v321
      %v665 = vunpack.c.l.b16 %v322
      %v666 = vunpack.c.l.b16 %v323
      %v667 = vunpack.c.l.b16 %v324
      %v668 = vunpack.c.l.b16 %v325
      %v669 = vunpack.c.l.b16 %v326
      %v670 = vunpack.c.l.b16 %v327
      %v671 = vunpack.c.l.b16 %v328
      %v672 = vunpack.c.l.b16 %v329
      %v673 = vunpack.c.l.b16 %v330
      %v674 = vunpack.c.l.b16 %v331
      %v675 = vunpack.c.l.b16 %v332
      %v676 = vunpack.c.l.b16 %v333
      %v677 = vunpack.c.l.b16 %v334
      %v678 = vunpack.c.l.b16 %v335
      %v679 = vunpack.c.l.b16 %v336
      %v680 = vunpack.c.l.b16 %v337
      %v681 = vunpack.c.l.b16 %v338
      %v682 = vunpack.c.l.b16 %v339
      %v683 = vunpack.c.l.b16 %v340
      %v684 = vunpack.c.l.b16 %v341
      %v685 = vunpack.c.l.b16 %v342
      %v686 = vunpack.c.l.b16 %v343
      %v687 = vunpack.c.l.b16 %v344
      %v688 = vunpack.c.l.b16 %v345
      %v689 = vunpack.c.l.b16 %v346
      %v690 = vunpack.c.l.b16 %v347
      %v691 = vunpack.c.l.b16 %v348
      %v692 = vunpack.c.l.b16 %v349
      %v693 = vunpack.c.l.b16 %v350
      %v694 = vunpack.c.l.b16 %v351
      %v695 = vunpack.c.l.b16 %v352
      %v696 = vunpack.c.l.b16 %v353
      %v697 = vunpack.c.l.b16 %v354
      %v698 = vunpack.c.l.b16 %v355
      %v699 = vunpack.c.l.b16 %v356
      %v700 = vunpack.c.l.b16 %v357
      %v701 = vunpack.c.l.b16 %v358
      %v702 = vunpack.c.l.b16 %v359
      %v703 = vunpack.c.l.b16 %v360
      %v704 = vunpack.c.l.b16 %v361
      %v705 = vunpack.c.l.b16 %v362
      %v706 = vunpack.c.l.b16 %v363
      %v707 = vunpack.c.l.b16 %v364
      %v708 = vunpack.c.l.b16 %v365
      %v709 = vunpack.c.l.b16 %v366
      %v710 = vunpack.c.l.b16 %v367
      %v711 = vunpack.c.l.b16 %v368
      %v712 = vunpack.c.l.b16 %v369
      %v713 = vunpack.c.l.b16 %v370
      %v714 = vunpack.c.l.b16 %v371
      %v715 = vunpack.c.l.b16 %v372
      %v716 = vunpack.c.l.b16 %v373
      %v717 = vunpack.c.l.b16 %v374
      %v718 = vunpack.c.l.b16 %v375
      %v719 = vunpack.c.l.b16 %v376
      %v720 = vunpack.c.l.b16 %v377
      %v721 = vpack.c.b16 %v594, %v593
      %v722 = vpack.c.b16 %v596, %v595
      %v723 = vpack.c.b16 %v598, %v597
      %v724 = vpack.c.b16 %v600, %v599
      %v725 = vpack.c.b16 %v602, %v601
      %v726 = vpack.c.b16 %v604, %v603
      %v727 = vpack.c.b16 %v606, %v605
      %v728 = vpack.c.b16 %v608, %v607
      %v729 = vpack.c.b16 %v610, %v609
      %v730 = vpack.c.b16 %v612, %v611
      %v731 = vpack.c.b16 %v614, %v613
      %v732 = vpack.c.b16 %v616, %v615
      %v733 = vpack.c.b16 %v618, %v617
      %v734 = vpack.c.b16 %v620, %v619
      %v735 = vpack.c.b16 %v622, %v621
      %v736 = vpack.c.b16 %v624, %v623
      %v737 = vpack.c.b16 %v626, %v625
      %v738 = vpack.c.b16 %v628, %v627
      %v739 = vpack.c.b16 %v630, %v629
      %v740 = vpack.c.b16 %v632, %v631
      %v741 = vpack.c.b16 %v634, %v633
      %v742 = vpack.c.b16 %v636, %v635
      %v743 = vpack.c.b16 %v638, %v637
      %v744 = vpack.c.b16 %v640, %v639
      %v745 = vpack.c.b16 %v642, %v641
      %v746 = vpack.c.b16 %v644, %v643
      %v747 = vpack.c.b16 %v646, %v645
      %v748 = vpack.c.b16 %v648, %v647
      %v749 = vpack.c.b16 %v650, %v649
      %v750 = vpack.c.b16 %v652, %v651
      %v751 = vpack.c.b16 %v654, %v653
      %v752 = vpack.c.b16 %v656, %v655
      %v753 = vpack.c.b16 %v658, %v657
      %v754 = vpack.c.b16 %v660, %v659
      %v755 = vpack.c.b16 %v662, %v661
      %v756 = vpack.c.b16 %v664, %v663
      %v757 = vpack.c.b16 %v666, %v665
      %v758 = vpack.c.b16 %v668, %v667
      %v759 = vpack.c.b16 %v670, %v669
      %v760 = vpack.c.b16 %v672, %v671
      %v761 = vpack.c.b16 %v674, %v673
      %v762 = vpack.c.b16 %v676, %v675
      %v763 = vpack.c.b16 %v678, %v677
      %v764 = vpack.c.b16 %v680, %v679
      %v765 = vpack.c.b16 %v682, %v681
      %v766 = vpack.c.b16 %v684, %v683
      %v767 = vpack.c.b16 %v686, %v685
      %v768 = vpack.c.b16 %v688, %v687
      %v769 = vpack.c.b16 %v690, %v689
      %v770 = vpack.c.b16 %v692, %v691
      %v771 = vpack.c.b16 %v694, %v693
      %v772 = vpack.c.b16 %v696, %v695
      %v773 = vpack.c.b16 %v698, %v697
      %v774 = vpack.c.b16 %v700, %v699
      %v775 = vpack.c.b16 %v702, %v701
      %v776 = vpack.c.b16 %v704, %v703
      %v777 = vpack.c.b16 %v706, %v705
      %v778 = vpack.c.b16 %v708, %v707
      %v779 = vpack.c.b16 %v710, %v709
      %v780 = vpack.c.b16 %v712, %v711
      %v781 = vpack.c.b16 %v714, %v713
      %v782 = vpack.c.b16 %v716, %v715
      %v783 = vpack.c.b16 %v718, %v717
      %v784 = vpack.c.b16 %v720, %v719
      %849 = vmatprep.subr.bf16.mxu0 0
      %850 = vmatpush1.bf16.msra.mxu0 %v721
      %851 = vmatprep.subr.bf16.mxu0 0
      %852 = vmatpush1.bf16.msra.mxu0 %v722
      %853 = vmatprep.subr.bf16.mxu0 0
      %854 = vmatpush1.bf16.msra.mxu0 %v723
      %855 = vmatprep.subr.bf16.mxu0 0
      %856 = vmatpush1.bf16.msra.mxu0 %v724
      %857 = vmatprep.subr.bf16.mxu0 0
      %858 = vmatpush1.bf16.msra.mxu0 %v725
      %859 = vmatprep.subr.bf16.mxu0 0
      %860 = vmatpush1.bf16.msra.mxu0 %v726
      %861 = vmatprep.subr.bf16.mxu0 0
      %862 = vmatpush1.bf16.msra.mxu0 %v727
      %863 = vmatprep.subr.bf16.mxu0 0
      %864 = vmatpush1.bf16.msra.mxu0 %v728
      %865 = vmatprep.subr.bf16.mxu0 0
      %866 = vmatpush1.bf16.msra.mxu0 %v729
      %867 = vmatprep.subr.bf16.mxu0 0
      %868 = vmatpush1.bf16.msra.mxu0 %v730
      %869 = vmatprep.subr.bf16.mxu0 0
      %870 = vmatpush1.bf16.msra.mxu0 %v731
      %871 = vmatprep.subr.bf16.mxu0 0
      %872 = vmatpush1.bf16.msra.mxu0 %v732
      %873 = vmatprep.subr.bf16.mxu0 0
      %874 = vmatpush1.bf16.msra.mxu0 %v733
      %875 = vmatprep.subr.bf16.mxu0 0
      %876 = vmatpush1.bf16.msra.mxu0 %v734
      %877 = vmatprep.subr.bf16.mxu0 0
      %878 = vmatpush1.bf16.msra.mxu0 %v735
      %879 = vmatprep.subr.bf16.mxu0 0
      %880 = vmatpush1.bf16.msra.mxu0 %v736
      %881 = vmatprep.mubr.bf16.mxu0 %v434
      %882 = vmatmul.mubr.bf16.gmra.mrb[0].mxu0 %v433
      %v883 = vpop.f32.mrb[0].mxu0
      %v884 = vadd.f32 %v383, %v883
      %v885 = vpop.f32.mrb[0].mxu0
      %v886 = vpop.f32.mrb[0].mxu0
      %v887 = vadd.f32 %v383, %v886
      %v888 = vpop.f32.mrb[0].mxu0
      %889 = vmatprep.mubr.bf16.mxu0 %v442
      %890 = vmatmul.mubr.bf16.gmra.mrb[0].mxu0 %v441
      %v891 = vpop.f32.mrb[0].mxu0
      %v892 = vadd.f32 %v383, %v891
      %v893 = vpop.f32.mrb[0].mxu0
      %v894 = vpop.f32.mrb[0].mxu0
      %v895 = vadd.f32 %v383, %v894
      %v896 = vpop.f32.mrb[0].mxu0
      %897 = vdwg.mxu0
      %898 = vmatprep.subr.bf16.mxu0 0
      %899 = vmatpush1.bf16.msra.mxu0 %v737
      %900 = vmatprep.subr.bf16.mxu0 0
      %901 = vmatpush1.bf16.msra.mxu0 %v738
      %902 = vmatprep.subr.bf16.mxu0 0
      %903 = vmatpush1.bf16.msra.mxu0 %v739
      %904 = vmatprep.subr.bf16.mxu0 0
      %905 = vmatpush1.bf16.msra.mxu0 %v740
      %906 = vmatprep.subr.bf16.mxu0 0
      %907 = vmatpush1.bf16.msra.mxu0 %v741
      %908 = vmatprep.subr.bf16.mxu0 0
      %909 = vmatpush1.bf16.msra.mxu0 %v742
      %910 = vmatprep.subr.bf16.mxu0 0
      %911 = vmatpush1.bf16.msra.mxu0 %v743
      %912 = vmatprep.subr.bf16.mxu0 0
      %913 = vmatpush1.bf16.msra.mxu0 %v744
      %914 = vmatprep.subr.bf16.mxu0 0
      %915 = vmatpush1.bf16.msra.mxu0 %v745
      %916 = vmatprep.subr.bf16.mxu0 0
      %917 = vmatpush1.bf16.msra.mxu0 %v746
      %918 = vmatprep.subr.bf16.mxu0 0
      %919 = vmatpush1.bf16.msra.mxu0 %v747
      %920 = vmatprep.subr.bf16.mxu0 0
      %921 = vmatpush1.bf16.msra.mxu0 %v748
      %922 = vmatprep.subr.bf16.mxu0 0
      %923 = vmatpush1.bf16.msra.mxu0 %v749
      %924 = vmatprep.subr.bf16.mxu0 0
      %925 = vmatpush1.bf16.msra.mxu0 %v750
      %926 = vmatprep.subr.bf16.mxu0 0
      %927 = vmatpush1.bf16.msra.mxu0 %v751
      %928 = vmatprep.subr.bf16.mxu0 0
      %929 = vmatpush1.bf16.msra.mxu0 %v752
      %930 = vmatprep.mubr.bf16.mxu0 %v436
      %931 = vmatmul.mubr.bf16.gmra.mrb[0].mxu0 %v435
      %v932 = vpop.f32.mrb[0].mxu0
      %v933 = vadd.f32 %v884, %v932
      %v934 = vpop.f32.mrb[0].mxu0
      %v935 = vpop.f32.mrb[0].mxu0
      %v936 = vadd.f32 %v887, %v935
      %v937 = vpop.f32.mrb[0].mxu0
      %938 = vmatprep.mubr.bf16.mxu0 %v444
      %939 = vmatmul.mubr.bf16.gmra.mrb[0].mxu0 %v443
      %v940 = vpop.f32.mrb[0].mxu0
      %v941 = vadd.f32 %v892, %v940
      %v942 = vpop.f32.mrb[0].mxu0
      %v943 = vpop.f32.mrb[0].mxu0
      %v944 = vadd.f32 %v895, %v943
      %v945 = vpop.f32.mrb[0].mxu0
      %946 = vdwg.mxu0
      %947 = vmatprep.subr.bf16.mxu0 0
      %948 = vmatpush1.bf16.msra.mxu0 %v753
      %949 = vmatprep.subr.bf16.mxu0 0
      %950 = vmatpush1.bf16.msra.mxu0 %v754
      %951 = vmatprep.subr.bf16.mxu0 0
      %952 = vmatpush1.bf16.msra.mxu0 %v755
      %953 = vmatprep.subr.bf16.mxu0 0
      %954 = vmatpush1.bf16.msra.mxu0 %v756
      %955 = vmatprep.subr.bf16.mxu0 0
      %956 = vmatpush1.bf16.msra.mxu0 %v757
      %957 = vmatprep.subr.bf16.mxu0 0
      %958 = vmatpush1.bf16.msra.mxu0 %v758
      %959 = vmatprep.subr.bf16.mxu0 0
      %960 = vmatpush1.bf16.msra.mxu0 %v759
      %961 = vmatprep.subr.bf16.mxu0 0
      %962 = vmatpush1.bf16.msra.mxu0 %v760
      %963 = vmatprep.subr.bf16.mxu0 0
      %964 = vmatpush1.bf16.msra.mxu0 %v761
      %965 = vmatprep.subr.bf16.mxu0 0
      %966 = vmatpush1.bf16.msra.mxu0 %v762
      %967 = vmatprep.subr.bf16.mxu0 0
      %968 = vmatpush1.bf16.msra.mxu0 %v763
      %969 = vmatprep.subr.bf16.mxu0 0
      %970 = vmatpush1.bf16.msra.mxu0 %v764
      %971 = vmatprep.subr.bf16.mxu0 0
      %972 = vmatpush1.bf16.msra.mxu0 %v765
      %973 = vmatprep.subr.bf16.mxu0 0
      %974 = vmatpush1.bf16.msra.mxu0 %v766
      %975 = vmatprep.subr.bf16.mxu0 0
      %976 = vmatpush1.bf16.msra.mxu0 %v767
      %977 = vmatprep.subr.bf16.mxu0 0
      %978 = vmatpush1.bf16.msra.mxu0 %v768
      %979 = vmatprep.mubr.bf16.mxu0 %v438
      %980 = vmatmul.mubr.bf16.gmra.mrb[0].mxu0 %v437
      %v981 = vpop.f32.mrb[0].mxu0
      %v982 = vadd.f32 %v933, %v981
      %v983 = vpop.f32.mrb[0].mxu0
      %v984 = vpop.f32.mrb[0].mxu0
      %v985 = vadd.f32 %v936, %v984
      %v986 = vpop.f32.mrb[0].mxu0
      %987 = vmatprep.mubr.bf16.mxu0 %v446
      %988 = vmatmul.mubr.bf16.gmra.mrb[0].mxu0 %v445
      %v989 = vpop.f32.mrb[0].mxu0
      %v990 = vadd.f32 %v941, %v989
      %v991 = vpop.f32.mrb[0].mxu0
      %v992 = vpop.f32.mrb[0].mxu0
      %v993 = vadd.f32 %v944, %v992
      %v994 = vpop.f32.mrb[0].mxu0
      %995 = vdwg.mxu0
      %996 = vmatprep.subr.bf16.mxu0 0
      %997 = vmatpush1.bf16.msra.mxu0 %v769
      %998 = vmatprep.subr.bf16.mxu0 0
      %999 = vmatpush1.bf16.msra.mxu0 %v770
      %1000 = vmatprep.subr.bf16.mxu0 0
      %1001 = vmatpush1.bf16.msra.mxu0 %v771
      %1002 = vmatprep.subr.bf16.mxu0 0
      %1003 = vmatpush1.bf16.msra.mxu0 %v772
      %1004 = vmatprep.subr.bf16.mxu0 0
      %1005 = vmatpush1.bf16.msra.mxu0 %v773
      %1006 = vmatprep.subr.bf16.mxu0 0
      %1007 = vmatpush1.bf16.msra.mxu0 %v774
      %1008 = vmatprep.subr.bf16.mxu0 0
      %1009 = vmatpush1.bf16.msra.mxu0 %v775
      %1010 = vmatprep.subr.bf16.mxu0 0
      %1011 = vmatpush1.bf16.msra.mxu0 %v776
      %1012 = vmatprep.subr.bf16.mxu0 0
      %1013 = vmatpush1.bf16.msra.mxu0 %v777
      %1014 = vmatprep.subr.bf16.mxu0 0
      %1015 = vmatpush1.bf16.msra.mxu0 %v778
      %1016 = vmatprep.subr.bf16.mxu0 0
      %1017 = vmatpush1.bf16.msra.mxu0 %v779
      %1018 = vmatprep.subr.bf16.mxu0 0
      %1019 = vmatpush1.bf16.msra.mxu0 %v780
      %1020 = vmatprep.subr.bf16.mxu0 0
      %1021 = vmatpush1.bf16.msra.mxu0 %v781
      %1022 = vmatprep.subr.bf16.mxu0 0
      %1023 = vmatpush1.bf16.msra.mxu0 %v782
      %1024 = vmatprep.subr.bf16.mxu0 0
      %1025 = vmatpush1.bf16.msra.mxu0 %v783
      %1026 = vmatprep.subr.bf16.mxu0 0
      %1027 = vmatpush1.bf16.msra.mxu0 %v784
      %1028 = vmatprep.mubr.bf16.mxu0 %v440
      %1029 = vmatmul.mubr.bf16.gmra.mrb[0].mxu0 %v439
      %v1030 = vpop.f32.mrb[0].mxu0
      %v1031 = vadd.f32 %v982, %v1030
      %v1032 = vpop.f32.mrb[0].mxu0
      %v1033 = vpop.f32.mrb[0].mxu0
      %v1034 = vadd.f32 %v985, %v1033
      %v1035 = vpop.f32.mrb[0].mxu0
      %1036 = vmatprep.mubr.bf16.mxu0 %v448
      %1037 = vmatmul.mubr.bf16.gmra.mrb[0].mxu0 %v447
      %v1038 = vpop.f32.mrb[0].mxu0
      %v1039 = vadd.f32 %v990, %v1038
      %v1040 = vpop.f32.mrb[0].mxu0
      %v1041 = vpop.f32.mrb[0].mxu0
      %v1042 = vadd.f32 %v993, %v1041
      %v1043 = vpop.f32.mrb[0].mxu0
      %1044 = vdwg.mxu0
      %v1045 = vmax.f32 %v1031, 0.0
      %v1046 = vmax.f32 %v1034, 0.0
      %v1047 = vmax.f32 %v1039, 0.0
      %v1048 = vmax.f32 %v1042, 0.0
      %v1049 = vpack.c.bf16 %v1046, %v1045
      %v1050 = vpack.c.bf16 %v1048, %v1047
      %v1053 = vunpack.c.l.b16 %v1049
      %v1054 = vunpack.c.h.b16 %v1049
      %v1055 = vunpack.c.l.b16 %v1050
      %v1056 = vunpack.c.h.b16 %v1050
      %v1057 = vpack.c.b16 %v1053, %v1053
      %v1058 = vpack.c.b16 %v1054, %v1054
      %v1059 = vpack.c.b16 %v1055, %v1055
      %v1060 = vpack.c.b16 %v1056, %v1056
      %1065 = vst [vmem:[%s231] sm:$0xf] %v1057
      %1066 = vst [vmem:[%s231 + $0x4] sm:$0xf] %v1058
      %1067 = vst [vmem:[%s231 + $0x8] sm:$0xf] %v1059
      %1068 = vst [vmem:[%s231 + $0xc] sm:$0xf] %v1060
      %s1069 = smul.u32 4, %s19
      %p1070 = scmp.lt.s32.totalorder %s18, 3
      %s1071 = scalar_select %p1070, %s18, 3
      %p1072 = scmp.lt.s32.totalorder %s1069, 3
      %s1073 = scalar_select %p1072, %s1069, 3
      %s1074 = smul.addr %s1071, 4
      %s1075 = sadd.s32 %s1073, %s1074
      %s1076 = smul.addr %s1075, 4
      %s1077 = scalar_lea.vmem %s3, %s1076
      // Predicated region
      $region33: #{generator_forward.9} parent=31 // pred_check
        %p1078 = pneg %p121
      $region34: #{generator_forward.9} parent=31 // pred_check_branch
        %1080 = sbr.rel (%p1078) target = $region36
      $region35: #{generator_forward.9} parent=31 // pred_region
        %s1081 = smul.u32 4, %s19
      $region36: #{generator_forward.9} parent=31 // pred_fallthru
        _
    $region32: #{generator_forward.9} parent=5 // pred_fallthru
      _
    %p1082 = scmp.le.s32.totalorder 2, %s9
    // Predicated region
    $region37: #{generator_forward.9} parent=5 // pred_check
      %p1083 = pneg %p1082
    $region38: #{generator_forward.9} parent=5 // pred_check_branch
      %1085 = sbr.rel (%p1083) target = $region40
    $region39: #{generator_forward.9} parent=5 // pred_region
      %s1086 = ssub.s32 %s9, 2
      // Predicated region
      $region41: #{generator_forward.9} parent=39 // pred_check
        %p1087 = pneg %p127
      $region42: #{generator_forward.9} parent=39 // pred_check_branch
        %1089 = sbr.rel (%p1087) target = $region44
      $region43: #{generator_forward.9} parent=39 // pred_region
        %s1090 = smul.u32 4, %s21
        %p1091 = scmp.lt.s32.totalorder %s20, 3
        %s1092 = scalar_select %p1091, %s20, 3
        %p1093 = scmp.lt.s32.totalorder %s1090, 3
        %s1094 = scalar_select %p1093, %s1090, 3
        %s1095 = smul.addr %s1092, 4
        %s1096 = sadd.s32 %s1094, %s1095
        %s1097 = smul.addr %s1096, 4
        %s1098 = scalar_lea.vmem %s3, %s1097
      $region44: #{generator_forward.9} parent=39 // pred_fallthru
        _
    $region40: #{generator_forward.9} parent=5 // pred_fallthru
      _
  $region6: #{generator_forward.9} parent=0 // loop_footer
    %s13 = sadd.s32 1, %s9
  $region7: #{generator_forward.9} parent=0 // loop_footer_branch
    %8 = sbr.rel target = $region3
  $region8: #{generator_forward.9} parent=0 // loop_exit
    _

// kernel: generator_forward.10
$region0: #{generator_forward.10}
  #allocation0 [shape = 'u32[]', space=smem, size = 0x4, offset = 0x4, fixed_abs, tag = 'smem constant byte address 0x4 - core index']
  #allocation1 [shape = 'u32[144,128]{1,0:T(1,128)}', space=vmem, size = 0x12000, scoped, tag = 'internal scratch']
  %s0 = inlined_call_operand.vmem [shape: bf16[4,128,512], index: 0, kind: input, shape index: {}]
  %s1 = inlined_call_operand.vmem [shape: bf16[4,512,64], index: 1, kind: input, shape index: {}]
  %s2 = inlined_call_operand.vmem [shape: f32[1,64], index: 2, kind: input, shape index: {}]
  %s3 = inlined_call_operand.vmem [shape: bf16[4,128,64], index: 3, kind: output, shape index: {}]
  %s4 = sld [smem:[#allocation0]]
  $region45: #{generator_forward.10} parent=0
    _
  %s6 = ssub.s32 1, %s4
  %s7 = scalar_select 0, %s6, %s4
  loop: start=0, step=1, limit=6
  $region2: #{generator_forward.10} parent=0 // loop_pre_header
    _
  $region3: #{generator_forward.10} parent=0 // loop_header
    %s9 = sphi 0, %s13
    %p10 = scmp.ge.s32.totalorder %s9, 6
    %s16 = sphi 0, %s28
    %s17 = sphi 0, %s24
    %s18 = sphi 0, %s16
    %s19 = sphi 0, %s17
    %s20 = sphi 0, %s18
    %s21 = sphi 0, %s19
    %s33 = sphi 0, %s35
    %s36 = sphi 0, %s33
    %s37 = sphi 0, %s36
    %s53 = sphi 0, %s37
    %s59 = sphi 0, %s61
    %s62 = sphi 0, %s59
    %s63 = sphi 0, %s62
    %s79 = sphi 0, %s63
    %s83 = sphi 0, %s83
    %s85 = sphi 0, %s83
    %s86 = sphi 0, %s85
    %s100 = sphi 0, %s86
    %s108 = sphi 0, %s110
    %s111 = sphi 0, %s108
    %s112 = sphi 0, %s111
    %s128 = sphi 0, %s112
  $region4: #{generator_forward.10} parent=0 // loop_header_branch
    %12 = sbr.rel (%p10) target = $region8
  $region5: #{generator_forward.10} parent=0 // loop_body
    %s14 = ssub.s32 %s9, 1
    %s15 = ssub.s32 %s9, 2
    %s22 = sadd.s32 1, %s17
    %p23 = scmp.ge.s32.totalorder %s22, 1
    %s24 = scalar_select %p23, 0, %s22
    %s25 = sadd.s32 1, %s16
    %s26 = scalar_select %p23, %s25, %s16
    %p27 = scmp.ge.s32.totalorder %s26, 4
    %s28 = scalar_select %p27, 0, %s26
    %s29 = ssub.s32 %s16, %s28
    %s30 = ssub.s32 %s17, %s24
    %s31 = sor.u32 %s29, %s30
    %p32 = scmp.eq.s32.totalorder %s31, 0
    %s34 = sadd.s32 %s33, 1
    %s35 = scalar_select %p32, %s33, %s34
    %p38 = pneg %p32
    %p39 = scmp.eq.s32.totalorder %s9, 3
    %p40 = por %p38, %p39
    %p41 = scmp.ne.s32.totalorder %s33, %s36
    %p42 = scmp.eq.s32.totalorder %s9, 0
    %p43 = por %p41, %p42
    %p44 = scmp.ne.s32.totalorder %s33, %s36
    %p45 = scmp.eq.s32.totalorder %s14, 3
    %p46 = por %p44, %p45
    %p47 = scmp.ne.s32.totalorder %s36, %s37
    %p48 = scmp.eq.s32.totalorder %s14, 0
    %p49 = por %p47, %p48
    %p50 = scmp.ne.s32.totalorder %s36, %s37
    %p51 = scmp.eq.s32.totalorder %s15, 3
    %p52 = por %p50, %p51
    %p54 = scmp.ne.s32.totalorder %s37, %s53
    %p55 = scmp.eq.s32.totalorder %s15, 0
    %p56 = por %p54, %p55
    %s57 = ssub.s32 %s16, %s28
    %p58 = scmp.eq.s32.totalorder %s57, 0
    %s60 = sadd.s32 %s59, 1
    %s61 = scalar_select %p58, %s59, %s60
    %p64 = pneg %p58
    %p65 = scmp.eq.s32.totalorder %s9, 3
    %p66 = por %p64, %p65
    %p67 = scmp.ne.s32.totalorder %s59, %s62
    %p68 = scmp.eq.s32.totalorder %s9, 0
    %p69 = por %p67, %p68
    %p70 = scmp.ne.s32.totalorder %s59, %s62
    %p71 = scmp.eq.s32.totalorder %s14, 3
    %p72 = por %p70, %p71
    %p73 = scmp.ne.s32.totalorder %s62, %s63
    %p74 = scmp.eq.s32.totalorder %s14, 0
    %p75 = por %p73, %p74
    %p76 = scmp.ne.s32.totalorder %s62, %s63
    %p77 = scmp.eq.s32.totalorder %s15, 3
    %p78 = por %p76, %p77
    %p80 = scmp.ne.s32.totalorder %s63, %s79
    %p81 = scmp.eq.s32.totalorder %s15, 0
    %p82 = por %p80, %p81
    %s84 = sadd.s32 %s83, 1
    %p87 = scmp.eq.s32.totalorder %s9, 3
    %p88 = scmp.ne.s32.totalorder %s83, %s85
    %p89 = scmp.eq.s32.totalorder %s9, 0
    %p90 = por %p88, %p89
    %p91 = scmp.ne.s32.totalorder %s83, %s85
    %p92 = scmp.eq.s32.totalorder %s14, 3
    %p93 = por %p91, %p92
    %p94 = scmp.ne.s32.totalorder %s85, %s86
    %p95 = scmp.eq.s32.totalorder %s14, 0
    %p96 = por %p94, %p95
    %p97 = scmp.ne.s32.totalorder %s85, %s86
    %p98 = scmp.eq.s32.totalorder %s15, 3
    %p99 = por %p97, %p98
    %p101 = scmp.ne.s32.totalorder %s86, %s100
    %p102 = scmp.eq.s32.totalorder %s15, 0
    %p103 = por %p101, %p102
    %s104 = ssub.s32 %s16, %s28
    %s105 = ssub.s32 %s17, %s24
    %s106 = sor.u32 %s104, %s105
    %p107 = scmp.eq.s32.totalorder %s106, 0
    %s109 = sadd.s32 %s108, 1
    %s110 = scalar_select %p107, %s108, %s109
    %p113 = pneg %p107
    %p114 = scmp.eq.s32.totalorder %s9, 3
    %p115 = por %p113, %p114
    %p116 = scmp.ne.s32.totalorder %s108, %s111
    %p117 = scmp.eq.s32.totalorder %s9, 0
    %p118 = por %p116, %p117
    %p119 = scmp.ne.s32.totalorder %s108, %s111
    %p120 = scmp.eq.s32.totalorder %s14, 3
    %p121 = por %p119, %p120
    %p122 = scmp.ne.s32.totalorder %s111, %s112
    %p123 = scmp.eq.s32.totalorder %s14, 0
    %p124 = por %p122, %p123
    %p125 = scmp.ne.s32.totalorder %s111, %s112
    %p126 = scmp.eq.s32.totalorder %s15, 3
    %p127 = por %p125, %p126
    %p129 = scmp.ne.s32.totalorder %s112, %s128
    %p130 = scmp.eq.s32.totalorder %s15, 0
    %p131 = por %p129, %p130
    %p132 = scmp.le.s32.totalorder 1, %s9
    %p133 = scmp.lt.s32.totalorder %s9, 5
    %p134 = pnand %p132, %p133
    %p135 = pneg %p134
    // Predicated region
    $region9: #{generator_forward.10} parent=5 // pred_check
      _
    $region10: #{generator_forward.10} parent=5 // pred_check_branch
      %137 = sbr.rel (%p134) target = $region12
    $region11: #{generator_forward.10} parent=5 // pred_region
      %s138 = ssub.s32 %s9, 1
      // Predicated region
      $region13: #{generator_forward.10} parent=11 // pred_check
        %p139 = pneg %p96
      $region14: #{generator_forward.10} parent=11 // pred_check_branch
        %141 = sbr.rel (%p139) target = $region16
      $region15: #{generator_forward.10} parent=11 // pred_region
        _
      $region16: #{generator_forward.10} parent=11 // pred_fallthru
        _
    $region12: #{generator_forward.10} parent=5 // pred_fallthru
      _
    %p142 = scmp.lt.s32.totalorder %s9, 4
    // Predicated region
    $region17: #{generator_forward.10} parent=5 // pred_check
      %p143 = pneg %p142
    $region18: #{generator_forward.10} parent=5 // pred_check_branch
      %145 = sbr.rel (%p143) target = $region20
    $region19: #{generator_forward.10} parent=5 // pred_region
      // Predicated region
      $region21: #{generator_forward.10} parent=19 // pred_check
        %p146 = pneg %p43
      $region22: #{generator_forward.10} parent=19 // pred_check_branch
        %148 = sbr.rel (%p146) target = $region24
      $region23: #{generator_forward.10} parent=19 // pred_region
        %s149 = smul.u32 16, %s17
        %p150 = scmp.lt.s32.totalorder %s16, 3
        %s151 = scalar_select %p150, %s16, 3
        %p152 = scmp.lt.s32.totalorder %s149, 15
        %s153 = scalar_select %p152, %s149, 15
        %s154 = smul.addr %s153, 4
        %s155 = smul.addr %s151, 64
        %s156 = sadd.s32 %s154, %s155
        %s157 = smul.addr %s156, 4
        %s158 = scalar_lea.vmem %s0, %s157
        %s159 = smul.u32 16, %s17
      $region24: #{generator_forward.10} parent=19 // pred_fallthru
        _
      // Predicated region
      $region25: #{generator_forward.10} parent=19 // pred_check
        %p160 = pneg %p69
      $region26: #{generator_forward.10} parent=19 // pred_check_branch
        %162 = sbr.rel (%p160) target = $region28
      $region27: #{generator_forward.10} parent=19 // pred_region
        %p163 = scmp.lt.s32.totalorder %s16, 3
        %s164 = scalar_select %p163, %s16, 3
        %s165 = smul.addr %s164, 64
        %s166 = smul.addr %s165, 4
        %s167 = scalar_lea.vmem %s1, %s166
      $region28: #{generator_forward.10} parent=19 // pred_fallthru
        _
    $region20: #{generator_forward.10} parent=5 // pred_fallthru
      _
    %p168 = scmp.le.s32.totalorder 1, %s9
    %p169 = scmp.lt.s32.totalorder %s9, 5
    %p170 = pnand %p168, %p169
    %p171 = pneg %p170
    // Predicated region
    $region29: #{generator_forward.10} parent=5 // pred_check
      _
    $region30: #{generator_forward.10} parent=5 // pred_check_branch
      %173 = sbr.rel (%p170) target = $region32
    $region31: #{generator_forward.10} parent=5 // pred_region
      %s174 = ssub.s32 %s9, 1
      %s175 = smul.u32 16, %s19
      %p176 = scmp.lt.s32.totalorder %s18, 3
      %s177 = scalar_select %p176, %s18, 3
      %p178 = scmp.lt.s32.totalorder %s175, 15
      %s179 = scalar_select %p178, %s175, 15
      %s180 = smul.addr %s179, 4
      %s181 = smul.addr %s177, 64
      %s182 = sadd.s32 %s180, %s181
      %s183 = smul.addr %s182, 4
      %s184 = scalar_lea.vmem %s0, %s183
      %p185 = pneg %p49
      %p186 = pneg %p46
      %p187 = scmp.lt.s32.totalorder %s18, 3
      %s188 = scalar_select %p187, %s18, 3
      %s189 = smul.addr %s188, 64
      %s190 = smul.addr %s189, 4
      %s191 = scalar_lea.vmem %s1, %s190
      %p192 = pneg %p75
      %p193 = pneg %p72
      %p194 = pneg %p96
      %p195 = pneg %p93
      %p196 = pneg %p124
      %p197 = pneg %p121
      %s198 = smul.u32 16, %s19
      %p199 = scmp.lt.s32.totalorder %s18, 3
      %s200 = scalar_select %p199, %s18, 3
      %p201 = scmp.lt.s32.totalorder %s198, 15
      %s202 = scalar_select %p201, %s198, 15
      %s203 = smul.addr %s200, 16
      %s204 = sadd.s32 %s202, %s203
      %s205 = smul.addr %s204, 4
      %s206 = scalar_lea.vmem %s3, %s205
      %s207 = smul.u32 16, %s19
      %p208 = scmp.lt.s32.totalorder %s18, 3
      %s209 = scalar_select %p208, %s18, 3
      %p210 = scmp.lt.s32.totalorder %s207, 15
      %s211 = scalar_select %p210, %s207, 15
      %s212 = smul.addr %s211, 4
      %s213 = smul.addr %s209, 64
      %s214 = sadd.s32 %s212, %s213
      %s215 = smul.addr %s214, 4
      %s216 = scalar_lea.vmem %s0, %s215
      %s217 = smul.u32 16, %s19
      %p218 = scmp.lt.s32.totalorder %s18, 3
      %s219 = scalar_select %p218, %s18, 3
      %s220 = smul.addr %s219, 64
      %s221 = smul.addr %s220, 4
      %s222 = scalar_lea.vmem %s1, %s221
      %s223 = smul.u32 16, %s19
      %p224 = scmp.lt.s32.totalorder %s18, 3
      %s225 = scalar_select %p224, %s18, 3
      %p226 = scmp.lt.s32.totalorder %s223, 15
      %s227 = scalar_select %p226, %s223, 15
      %s228 = smul.addr %s225, 16
      %s229 = sadd.s32 %s227, %s228
      %s230 = smul.addr %s229, 4
      %s231 = scalar_lea.vmem %s3, %s230
      %s232 = smul.u32 16, %s19
      %v234 = vld [vmem:[%s216] sm:$0xff]
      %v235 = vld [vmem:[%s216 + $0x8] sm:$0xff]
      %v236 = vld [vmem:[%s216 + $0x10] sm:$0xff]
      %v237 = vld [vmem:[%s216 + $0x18] sm:$0xff]
      %v238 = vld [vmem:[%s216 + $0x20] sm:$0xff]
      %v239 = vld [vmem:[%s216 + $0x28] sm:$0xff]
      %v240 = vld [vmem:[%s216 + $0x30] sm:$0xff]
      %v241 = vld [vmem:[%s216 + $0x38] sm:$0xff]
      %v242 = vld [vmem:[%s216 + $0x40] sm:$0xff]
      %v243 = vld [vmem:[%s216 + $0x48] sm:$0xff]
      %v244 = vld [vmem:[%s216 + $0x50] sm:$0xff]
      %v245 = vld [vmem:[%s216 + $0x58] sm:$0xff]
      %v246 = vld [vmem:[%s216 + $0x60] sm:$0xff]
      %v247 = vld [vmem:[%s216 + $0x68] sm:$0xff]
      %v248 = vld [vmem:[%s216 + $0x70] sm:$0xff]
      %v249 = vld [vmem:[%s216 + $0x78] sm:$0xff]
      %v250 = vld [vmem:[%s216 + $0x80] sm:$0xff]
      %v251 = vld [vmem:[%s216 + $0x88] sm:$0xff]
      %v252 = vld [vmem:[%s216 + $0x90] sm:$0xff]
      %v253 = vld [vmem:[%s216 + $0x98] sm:$0xff]
      %v254 = vld [vmem:[%s216 + $0xa0] sm:$0xff]
      %v255 = vld [vmem:[%s216 + $0xa8] sm:$0xff]
      %v256 = vld [vmem:[%s216 + $0xb0] sm:$0xff]
      %v257 = vld [vmem:[%s216 + $0xb8] sm:$0xff]
      %v258 = vld [vmem:[%s216 + $0xc0] sm:$0xff]
      %v259 = vld [vmem:[%s216 + $0xc8] sm:$0xff]
      %v260 = vld [vmem:[%s216 + $0xd0] sm:$0xff]
      %v261 = vld [vmem:[%s216 + $0xd8] sm:$0xff]
      %v262 = vld [vmem:[%s216 + $0xe0] sm:$0xff]
      %v263 = vld [vmem:[%s216 + $0xe8] sm:$0xff]
      %v264 = vld [vmem:[%s216 + $0xf0] sm:$0xff]
      %v265 = vld [vmem:[%s216 + $0xf8] sm:$0xff]
      %v266 = vld [vmem:[%s222] sm:$0xf]
      %v267 = vld [vmem:[%s222 + $0x4] sm:$0xf]
      %v268 = vld [vmem:[%s222 + $0x8] sm:$0xf]
      %v269 = vld [vmem:[%s222 + $0xc] sm:$0xf]
      %v270 = vld [vmem:[%s222 + $0x10] sm:$0xf]
      %v271 = vld [vmem:[%s222 + $0x14] sm:$0xf]
      %v272 = vld [vmem:[%s222 + $0x18] sm:$0xf]
      %v273 = vld [vmem:[%s222 + $0x1c] sm:$0xf]
      %v274 = vld [vmem:[%s222 + $0x20] sm:$0xf]
      %v275 = vld [vmem:[%s222 + $0x24] sm:$0xf]
      %v276 = vld [vmem:[%s222 + $0x28] sm:$0xf]
      %v277 = vld [vmem:[%s222 + $0x2c] sm:$0xf]
      %v278 = vld [vmem:[%s222 + $0x30] sm:$0xf]
      %v279 = vld [vmem:[%s222 + $0x34] sm:$0xf]
      %v280 = vld [vmem:[%s222 + $0x38] sm:$0xf]
      %v281 = vld [vmem:[%s222 + $0x3c] sm:$0xf]
      %v282 = vld [vmem:[%s222 + $0x40] sm:$0xf]
      %v283 = vld [vmem:[%s222 + $0x44] sm:$0xf]
      %v284 = vld [vmem:[%s222 + $0x48] sm:$0xf]
      %v285 = vld [vmem:[%s222 + $0x4c] sm:$0xf]
      %v286 = vld [vmem:[%s222 + $0x50] sm:$0xf]
      %v287 = vld [vmem:[%s222 + $0x54] sm:$0xf]
      %v288 = vld [vmem:[%s222 + $0x58] sm:$0xf]
      %v289 = vld [vmem:[%s222 + $0x5c] sm:$0xf]
      %v290 = vld [vmem:[%s222 + $0x60] sm:$0xf]
      %v291 = vld [vmem:[%s222 + $0x64] sm:$0xf]
      %v292 = vld [vmem:[%s222 + $0x68] sm:$0xf]
      %v293 = vld [vmem:[%s222 + $0x6c] sm:$0xf]
      %v294 = vld [vmem:[%s222 + $0x70] sm:$0xf]
      %v295 = vld [vmem:[%s222 + $0x74] sm:$0xf]
      %v296 = vld [vmem:[%s222 + $0x78] sm:$0xf]
      %v297 = vld [vmem:[%s222 + $0x7c] sm:$0xf]
      %v298 = vld [vmem:[%s222 + $0x80] sm:$0xf]
      %v299 = vld [vmem:[%s222 + $0x84] sm:$0xf]
      %v300 = vld [vmem:[%s222 + $0x88] sm:$0xf]
      %v301 = vld [vmem:[%s222 + $0x8c] sm:$0xf]
      %v302 = vld [vmem:[%s222 + $0x90] sm:$0xf]
      %v303 = vld [vmem:[%s222 + $0x94] sm:$0xf]
      %v304 = vld [vmem:[%s222 + $0x98] sm:$0xf]
      %v305 = vld [vmem:[%s222 + $0x9c] sm:$0xf]
      %v306 = vld [vmem:[%s222 + $0xa0] sm:$0xf]
      %v307 = vld [vmem:[%s222 + $0xa4] sm:$0xf]
      %v308 = vld [vmem:[%s222 + $0xa8] sm:$0xf]
      %v309 = vld [vmem:[%s222 + $0xac] sm:$0xf]
      %v310 = vld [vmem:[%s222 + $0xb0] sm:$0xf]
      %v311 = vld [vmem:[%s222 + $0xb4] sm:$0xf]
      %v312 = vld [vmem:[%s222 + $0xb8] sm:$0xf]
      %v313 = vld [vmem:[%s222 + $0xbc] sm:$0xf]
      %v314 = vld [vmem:[%s222 + $0xc0] sm:$0xf]
      %v315 = vld [vmem:[%s222 + $0xc4] sm:$0xf]
      %v316 = vld [vmem:[%s222 + $0xc8] sm:$0xf]
      %v317 = vld [vmem:[%s222 + $0xcc] sm:$0xf]
      %v318 = vld [vmem:[%s222 + $0xd0] sm:$0xf]
      %v319 = vld [vmem:[%s222 + $0xd4] sm:$0xf]
      %v320 = vld [vmem:[%s222 + $0xd8] sm:$0xf]
      %v321 = vld [vmem:[%s222 + $0xdc] sm:$0xf]
      %v322 = vld [vmem:[%s222 + $0xe0] sm:$0xf]
      %v323 = vld [vmem:[%s222 + $0xe4] sm:$0xf]
      %v324 = vld [vmem:[%s222 + $0xe8] sm:$0xf]
      %v325 = vld [vmem:[%s222 + $0xec] sm:$0xf]
      %v326 = vld [vmem:[%s222 + $0xf0] sm:$0xf]
      %v327 = vld [vmem:[%s222 + $0xf4] sm:$0xf]
      %v328 = vld [vmem:[%s222 + $0xf8] sm:$0xf]
      %v329 = vld [vmem:[%s222 + $0xfc] sm:$0xf]
      %v330 = vld [vmem:[%s2] sm:$0x1]
      %v332 = vlaneseq
      %v333 = vshrl.u32 %v332, 7
      %v334 = vsub.s32 0, %v333
      %v335 = vrot.slane %v330, %v334
      %v369 = vunpack.c.l.b16 %v234
      %v370 = vunpack.c.h.b16 %v234
      %v371 = vunpack.c.l.b16 %v235
      %v372 = vunpack.c.h.b16 %v235
      %v373 = vunpack.c.l.b16 %v236
      %v374 = vunpack.c.h.b16 %v236
      %v375 = vunpack.c.l.b16 %v237
      %v376 = vunpack.c.h.b16 %v237
      %v377 = vunpack.c.l.b16 %v238
      %v378 = vunpack.c.h.b16 %v238
      %v379 = vunpack.c.l.b16 %v239
      %v380 = vunpack.c.h.b16 %v239
      %v381 = vunpack.c.l.b16 %v240
      %v382 = vunpack.c.h.b16 %v240
      %v383 = vunpack.c.l.b16 %v241
      %v384 = vunpack.c.h.b16 %v241
      %v385 = vunpack.c.l.b16 %v242
      %v386 = vunpack.c.h.b16 %v242
      %v387 = vunpack.c.l.b16 %v243
      %v388 = vunpack.c.h.b16 %v243
      %v389 = vunpack.c.l.b16 %v244
      %v390 = vunpack.c.h.b16 %v244
      %v391 = vunpack.c.l.b16 %v245
      %v392 = vunpack.c.h.b16 %v245
      %v393 = vunpack.c.l.b16 %v246
      %v394 = vunpack.c.h.b16 %v246
      %v395 = vunpack.c.l.b16 %v247
      %v396 = vunpack.c.h.b16 %v247
      %v397 = vunpack.c.l.b16 %v248
      %v398 = vunpack.c.h.b16 %v248
      %v399 = vunpack.c.l.b16 %v249
      %v400 = vunpack.c.h.b16 %v249
      %v401 = vunpack.c.l.b16 %v250
      %v402 = vunpack.c.h.b16 %v250
      %v403 = vunpack.c.l.b16 %v251
      %v404 = vunpack.c.h.b16 %v251
      %v405 = vunpack.c.l.b16 %v252
      %v406 = vunpack.c.h.b16 %v252
      %v407 = vunpack.c.l.b16 %v253
      %v408 = vunpack.c.h.b16 %v253
      %v409 = vunpack.c.l.b16 %v254
      %v410 = vunpack.c.h.b16 %v254
      %v411 = vunpack.c.l.b16 %v255
      %v412 = vunpack.c.h.b16 %v255
      %v413 = vunpack.c.l.b16 %v256
      %v414 = vunpack.c.h.b16 %v256
      %v415 = vunpack.c.l.b16 %v257
      %v416 = vunpack.c.h.b16 %v257
      %v417 = vunpack.c.l.b16 %v258
      %v418 = vunpack.c.h.b16 %v258
      %v419 = vunpack.c.l.b16 %v259
      %v420 = vunpack.c.h.b16 %v259
      %v421 = vunpack.c.l.b16 %v260
      %v422 = vunpack.c.h.b16 %v260
      %v423 = vunpack.c.l.b16 %v261
      %v424 = vunpack.c.h.b16 %v261
      %v425 = vunpack.c.l.b16 %v262
      %v426 = vunpack.c.h.b16 %v262
      %v427 = vunpack.c.l.b16 %v263
      %v428 = vunpack.c.h.b16 %v263
      %v429 = vunpack.c.l.b16 %v264
      %v430 = vunpack.c.h.b16 %v264
      %v431 = vunpack.c.l.b16 %v265
      %v432 = vunpack.c.h.b16 %v265
      %v433 = vpack.c.b16 %v373, %v369
      %v434 = vpack.c.b16 %v374, %v370
      %v435 = vpack.c.b16 %v375, %v371
      %v436 = vpack.c.b16 %v376, %v372
      %v437 = vpack.c.b16 %v381, %v377
      %v438 = vpack.c.b16 %v382, %v378
      %v439 = vpack.c.b16 %v383, %v379
      %v440 = vpack.c.b16 %v384, %v380
      %v441 = vpack.c.b16 %v389, %v385
      %v442 = vpack.c.b16 %v390, %v386
      %v443 = vpack.c.b16 %v391, %v387
      %v444 = vpack.c.b16 %v392, %v388
      %v445 = vpack.c.b16 %v397, %v393
      %v446 = vpack.c.b16 %v398, %v394
      %v447 = vpack.c.b16 %v399, %v395
      %v448 = vpack.c.b16 %v400, %v396
      %v449 = vpack.c.b16 %v405, %v401
      %v450 = vpack.c.b16 %v406, %v402
      %v451 = vpack.c.b16 %v407, %v403
      %v452 = vpack.c.b16 %v408, %v404
      %v453 = vpack.c.b16 %v413, %v409
      %v454 = vpack.c.b16 %v414, %v410
      %v455 = vpack.c.b16 %v415, %v411
      %v456 = vpack.c.b16 %v416, %v412
      %v457 = vpack.c.b16 %v421, %v417
      %v458 = vpack.c.b16 %v422, %v418
      %v459 = vpack.c.b16 %v423, %v419
      %v460 = vpack.c.b16 %v424, %v420
      %v461 = vpack.c.b16 %v429, %v425
      %v462 = vpack.c.b16 %v430, %v426
      %v463 = vpack.c.b16 %v431, %v427
      %v464 = vpack.c.b16 %v432, %v428
      %v561 = vunpack.c.l.b16 %v266
      %v562 = vunpack.c.l.b16 %v267
      %v563 = vunpack.c.l.b16 %v268
      %v564 = vunpack.c.l.b16 %v269
      %v565 = vunpack.c.l.b16 %v270
      %v566 = vunpack.c.l.b16 %v271
      %v567 = vunpack.c.l.b16 %v272
      %v568 = vunpack.c.l.b16 %v273
      %v569 = vunpack.c.l.b16 %v274
      %v570 = vunpack.c.l.b16 %v275
      %v571 = vunpack.c.l.b16 %v276
      %v572 = vunpack.c.l.b16 %v277
      %v573 = vunpack.c.l.b16 %v278
      %v574 = vunpack.c.l.b16 %v279
      %v575 = vunpack.c.l.b16 %v280
      %v576 = vunpack.c.l.b16 %v281
      %v577 = vunpack.c.l.b16 %v282
      %v578 = vunpack.c.l.b16 %v283
      %v579 = vunpack.c.l.b16 %v284
      %v580 = vunpack.c.l.b16 %v285
      %v581 = vunpack.c.l.b16 %v286
      %v582 = vunpack.c.l.b16 %v287
      %v583 = vunpack.c.l.b16 %v288
      %v584 = vunpack.c.l.b16 %v289
      %v585 = vunpack.c.l.b16 %v290
      %v586 = vunpack.c.l.b16 %v291
      %v587 = vunpack.c.l.b16 %v292
      %v588 = vunpack.c.l.b16 %v293
      %v589 = vunpack.c.l.b16 %v294
      %v590 = vunpack.c.l.b16 %v295
      %v591 = vunpack.c.l.b16 %v296
      %v592 = vunpack.c.l.b16 %v297
      %v593 = vunpack.c.l.b16 %v298
      %v594 = vunpack.c.l.b16 %v299
      %v595 = vunpack.c.l.b16 %v300
      %v596 = vunpack.c.l.b16 %v301
      %v597 = vunpack.c.l.b16 %v302
      %v598 = vunpack.c.l.b16 %v303
      %v599 = vunpack.c.l.b16 %v304
      %v600 = vunpack.c.l.b16 %v305
      %v601 = vunpack.c.l.b16 %v306
      %v602 = vunpack.c.l.b16 %v307
      %v603 = vunpack.c.l.b16 %v308
      %v604 = vunpack.c.l.b16 %v309
      %v605 = vunpack.c.l.b16 %v310
      %v606 = vunpack.c.l.b16 %v311
      %v607 = vunpack.c.l.b16 %v312
      %v608 = vunpack.c.l.b16 %v313
      %v609 = vunpack.c.l.b16 %v314
      %v610 = vunpack.c.l.b16 %v315
      %v611 = vunpack.c.l.b16 %v316
      %v612 = vunpack.c.l.b16 %v317
      %v613 = vunpack.c.l.b16 %v318
      %v614 = vunpack.c.l.b16 %v319
      %v615 = vunpack.c.l.b16 %v320
      %v616 = vunpack.c.l.b16 %v321
      %v617 = vunpack.c.l.b16 %v322
      %v618 = vunpack.c.l.b16 %v323
      %v619 = vunpack.c.l.b16 %v324
      %v620 = vunpack.c.l.b16 %v325
      %v621 = vunpack.c.l.b16 %v326
      %v622 = vunpack.c.l.b16 %v327
      %v623 = vunpack.c.l.b16 %v328
      %v624 = vunpack.c.l.b16 %v329
      %v625 = vpack.c.b16 %v562, %v561
      %v626 = vpack.c.b16 %v564, %v563
      %v627 = vpack.c.b16 %v566, %v565
      %v628 = vpack.c.b16 %v568, %v567
      %v629 = vpack.c.b16 %v570, %v569
      %v630 = vpack.c.b16 %v572, %v571
      %v631 = vpack.c.b16 %v574, %v573
      %v632 = vpack.c.b16 %v576, %v575
      %v633 = vpack.c.b16 %v578, %v577
      %v634 = vpack.c.b16 %v580, %v579
      %v635 = vpack.c.b16 %v582, %v581
      %v636 = vpack.c.b16 %v584, %v583
      %v637 = vpack.c.b16 %v586, %v585
      %v638 = vpack.c.b16 %v588, %v587
      %v639 = vpack.c.b16 %v590, %v589
      %v640 = vpack.c.b16 %v592, %v591
      %v641 = vpack.c.b16 %v594, %v593
      %v642 = vpack.c.b16 %v596, %v595
      %v643 = vpack.c.b16 %v598, %v597
      %v644 = vpack.c.b16 %v600, %v599
      %v645 = vpack.c.b16 %v602, %v601
      %v646 = vpack.c.b16 %v604, %v603
      %v647 = vpack.c.b16 %v606, %v605
      %v648 = vpack.c.b16 %v608, %v607
      %v649 = vpack.c.b16 %v610, %v609
      %v650 = vpack.c.b16 %v612, %v611
      %v651 = vpack.c.b16 %v614, %v613
      %v652 = vpack.c.b16 %v616, %v615
      %v653 = vpack.c.b16 %v618, %v617
      %v654 = vpack.c.b16 %v620, %v619
      %v655 = vpack.c.b16 %v622, %v621
      %v656 = vpack.c.b16 %v624, %v623
      %689 = vmatprep.subr.bf16.mxu0 0
      %690 = vmatpush1.bf16.msra.mxu0 %v625
      %691 = vmatprep.subr.bf16.mxu0 0
      %692 = vmatpush1.bf16.msra.mxu0 %v626
      %693 = vmatprep.subr.bf16.mxu0 0
      %694 = vmatpush1.bf16.msra.mxu0 %v627
      %695 = vmatprep.subr.bf16.mxu0 0
      %696 = vmatpush1.bf16.msra.mxu0 %v628
      %697 = vmatprep.subr.bf16.mxu0 0
      %698 = vmatpush1.bf16.msra.mxu0 %v629
      %699 = vmatprep.subr.bf16.mxu0 0
      %700 = vmatpush1.bf16.msra.mxu0 %v630
      %701 = vmatprep.subr.bf16.mxu0 0
      %702 = vmatpush1.bf16.msra.mxu0 %v631
      %703 = vmatprep.subr.bf16.mxu0 0
      %704 = vmatpush1.bf16.msra.mxu0 %v632
      %705 = vmatprep.subr.bf16.mxu0 0
      %706 = vmatpush1.bf16.msra.mxu0 %v633
      %707 = vmatprep.subr.bf16.mxu0 0
      %708 = vmatpush1.bf16.msra.mxu0 %v634
      %709 = vmatprep.subr.bf16.mxu0 0
      %710 = vmatpush1.bf16.msra.mxu0 %v635
      %711 = vmatprep.subr.bf16.mxu0 0
      %712 = vmatpush1.bf16.msra.mxu0 %v636
      %713 = vmatprep.subr.bf16.mxu0 0
      %714 = vmatpush1.bf16.msra.mxu0 %v637
      %715 = vmatprep.subr.bf16.mxu0 0
      %716 = vmatpush1.bf16.msra.mxu0 %v638
      %717 = vmatprep.subr.bf16.mxu0 0
      %718 = vmatpush1.bf16.msra.mxu0 %v639
      %719 = vmatprep.subr.bf16.mxu0 0
      %720 = vmatpush1.bf16.msra.mxu0 %v640
      %721 = vmatprep.mubr.bf16.mxu0 %v434
      %722 = vmatmul.mubr.bf16.gmra.mrb[0].mxu0 %v433
      %v723 = vpop.f32.mrb[0].mxu0
      %v724 = vadd.f32 %v335, %v723
      %v725 = vpop.f32.mrb[0].mxu0
      %v726 = vpop.f32.mrb[0].mxu0
      %v727 = vadd.f32 %v335, %v726
      %v728 = vpop.f32.mrb[0].mxu0
      %729 = vmatprep.mubr.bf16.mxu0 %v438
      %730 = vmatmul.mubr.bf16.gmra.mrb[0].mxu0 %v437
      %v731 = vpop.f32.mrb[0].mxu0
      %v732 = vadd.f32 %v335, %v731
      %v733 = vpop.f32.mrb[0].mxu0
      %v734 = vpop.f32.mrb[0].mxu0
      %v735 = vadd.f32 %v335, %v734
      %v736 = vpop.f32.mrb[0].mxu0
      %737 = vmatprep.mubr.bf16.mxu0 %v442
      %738 = vmatmul.mubr.bf16.gmra.mrb[0].mxu0 %v441
      %v739 = vpop.f32.mrb[0].mxu0
      %v740 = vadd.f32 %v335, %v739
      %v741 = vpop.f32.mrb[0].mxu0
      %v742 = vpop.f32.mrb[0].mxu0
      %v743 = vadd.f32 %v335, %v742
      %v744 = vpop.f32.mrb[0].mxu0
      %745 = vmatprep.mubr.bf16.mxu0 %v446
      %746 = vmatmul.mubr.bf16.gmra.mrb[0].mxu0 %v445
      %v747 = vpop.f32.mrb[0].mxu0
      %v748 = vadd.f32 %v335, %v747
      %v749 = vpop.f32.mrb[0].mxu0
      %v750 = vpop.f32.mrb[0].mxu0
      %v751 = vadd.f32 %v335, %v750
      %v752 = vpop.f32.mrb[0].mxu0
      %753 = vmatprep.mubr.bf16.mxu0 %v450
      %754 = vmatmul.mubr.bf16.gmra.mrb[0].mxu0 %v449
      %v755 = vpop.f32.mrb[0].mxu0
      %v756 = vadd.f32 %v335, %v755
      %v757 = vpop.f32.mrb[0].mxu0
      %v758 = vpop.f32.mrb[0].mxu0
      %v759 = vadd.f32 %v335, %v758
      %v760 = vpop.f32.mrb[0].mxu0
      %761 = vmatprep.mubr.bf16.mxu0 %v454
      %762 = vmatmul.mubr.bf16.gmra.mrb[0].mxu0 %v453
      %v763 = vpop.f32.mrb[0].mxu0
      %v764 = vadd.f32 %v335, %v763
      %v765 = vpop.f32.mrb[0].mxu0
      %v766 = vpop.f32.mrb[0].mxu0
      %v767 = vadd.f32 %v335, %v766
      %v768 = vpop.f32.mrb[0].mxu0
      %769 = vmatprep.mubr.bf16.mxu0 %v458
      %770 = vmatmul.mubr.bf16.gmra.mrb[0].mxu0 %v457
      %v771 = vpop.f32.mrb[0].mxu0
      %v772 = vadd.f32 %v335, %v771
      %v773 = vpop.f32.mrb[0].mxu0
      %v774 = vpop.f32.mrb[0].mxu0
      %v775 = vadd.f32 %v335, %v774
      %v776 = vpop.f32.mrb[0].mxu0
      %777 = vmatprep.mubr.bf16.mxu0 %v462
      %778 = vmatmul.mubr.bf16.gmra.mrb[0].mxu0 %v461
      %v779 = vpop.f32.mrb[0].mxu0
      %v780 = vadd.f32 %v335, %v779
      %v781 = vpop.f32.mrb[0].mxu0
      %v782 = vpop.f32.mrb[0].mxu0
      %v783 = vadd.f32 %v335, %v782
      %v784 = vpop.f32.mrb[0].mxu0
      %785 = vdwg.mxu0
      %786 = vmatprep.subr.bf16.mxu0 0
      %787 = vmatpush1.bf16.msra.mxu0 %v641
      %788 = vmatprep.subr.bf16.mxu0 0
      %789 = vmatpush1.bf16.msra.mxu0 %v642
      %790 = vmatprep.subr.bf16.mxu0 0
      %791 = vmatpush1.bf16.msra.mxu0 %v643
      %792 = vmatprep.subr.bf16.mxu0 0
      %793 = vmatpush1.bf16.msra.mxu0 %v644
      %794 = vmatprep.subr.bf16.mxu0 0
      %795 = vmatpush1.bf16.msra.mxu0 %v645
      %796 = vmatprep.subr.bf16.mxu0 0
      %797 = vmatpush1.bf16.msra.mxu0 %v646
      %798 = vmatprep.subr.bf16.mxu0 0
      %799 = vmatpush1.bf16.msra.mxu0 %v647
      %800 = vmatprep.subr.bf16.mxu0 0
      %801 = vmatpush1.bf16.msra.mxu0 %v648
      %802 = vmatprep.subr.bf16.mxu0 0
      %803 = vmatpush1.bf16.msra.mxu0 %v649
      %804 = vmatprep.subr.bf16.mxu0 0
      %805 = vmatpush1.bf16.msra.mxu0 %v650
      %806 = vmatprep.subr.bf16.mxu0 0
      %807 = vmatpush1.bf16.msra.mxu0 %v651
      %808 = vmatprep.subr.bf16.mxu0 0
      %809 = vmatpush1.bf16.msra.mxu0 %v652
      %810 = vmatprep.subr.bf16.mxu0 0
      %811 = vmatpush1.bf16.msra.mxu0 %v653
      %812 = vmatprep.subr.bf16.mxu0 0
      %813 = vmatpush1.bf16.msra.mxu0 %v654
      %814 = vmatprep.subr.bf16.mxu0 0
      %815 = vmatpush1.bf16.msra.mxu0 %v655
      %816 = vmatprep.subr.bf16.mxu0 0
      %817 = vmatpush1.bf16.msra.mxu0 %v656
      %818 = vmatprep.mubr.bf16.mxu0 %v436
      %819 = vmatmul.mubr.bf16.gmra.mrb[0].mxu0 %v435
      %v820 = vpop.f32.mrb[0].mxu0
      %v821 = vadd.f32 %v724, %v820
      %v822 = vpop.f32.mrb[0].mxu0
      %v823 = vpop.f32.mrb[0].mxu0
      %v824 = vadd.f32 %v727, %v823
      %v825 = vpop.f32.mrb[0].mxu0
      %826 = vmatprep.mubr.bf16.mxu0 %v440
      %827 = vmatmul.mubr.bf16.gmra.mrb[0].mxu0 %v439
      %v828 = vpop.f32.mrb[0].mxu0
      %v829 = vadd.f32 %v732, %v828
      %v830 = vpop.f32.mrb[0].mxu0
      %v831 = vpop.f32.mrb[0].mxu0
      %v832 = vadd.f32 %v735, %v831
      %v833 = vpop.f32.mrb[0].mxu0
      %834 = vmatprep.mubr.bf16.mxu0 %v444
      %835 = vmatmul.mubr.bf16.gmra.mrb[0].mxu0 %v443
      %v836 = vpop.f32.mrb[0].mxu0
      %v837 = vadd.f32 %v740, %v836
      %v838 = vpop.f32.mrb[0].mxu0
      %v839 = vpop.f32.mrb[0].mxu0
      %v840 = vadd.f32 %v743, %v839
      %v841 = vpop.f32.mrb[0].mxu0
      %842 = vmatprep.mubr.bf16.mxu0 %v448
      %843 = vmatmul.mubr.bf16.gmra.mrb[0].mxu0 %v447
      %v844 = vpop.f32.mrb[0].mxu0
      %v845 = vadd.f32 %v748, %v844
      %v846 = vpop.f32.mrb[0].mxu0
      %v847 = vpop.f32.mrb[0].mxu0
      %v848 = vadd.f32 %v751, %v847
      %v849 = vpop.f32.mrb[0].mxu0
      %850 = vmatprep.mubr.bf16.mxu0 %v452
      %851 = vmatmul.mubr.bf16.gmra.mrb[0].mxu0 %v451
      %v852 = vpop.f32.mrb[0].mxu0
      %v853 = vadd.f32 %v756, %v852
      %v854 = vpop.f32.mrb[0].mxu0
      %v855 = vpop.f32.mrb[0].mxu0
      %v856 = vadd.f32 %v759, %v855
      %v857 = vpop.f32.mrb[0].mxu0
      %858 = vmatprep.mubr.bf16.mxu0 %v456
      %859 = vmatmul.mubr.bf16.gmra.mrb[0].mxu0 %v455
      %v860 = vpop.f32.mrb[0].mxu0
      %v861 = vadd.f32 %v764, %v860
      %v862 = vpop.f32.mrb[0].mxu0
      %v863 = vpop.f32.mrb[0].mxu0
      %v864 = vadd.f32 %v767, %v863
      %v865 = vpop.f32.mrb[0].mxu0
      %866 = vmatprep.mubr.bf16.mxu0 %v460
      %867 = vmatmul.mubr.bf16.gmra.mrb[0].mxu0 %v459
      %v868 = vpop.f32.mrb[0].mxu0
      %v869 = vadd.f32 %v772, %v868
      %v870 = vpop.f32.mrb[0].mxu0
      %v871 = vpop.f32.mrb[0].mxu0
      %v872 = vadd.f32 %v775, %v871
      %v873 = vpop.f32.mrb[0].mxu0
      %874 = vmatprep.mubr.bf16.mxu0 %v464
      %875 = vmatmul.mubr.bf16.gmra.mrb[0].mxu0 %v463
      %v876 = vpop.f32.mrb[0].mxu0
      %v877 = vadd.f32 %v780, %v876
      %v878 = vpop.f32.mrb[0].mxu0
      %v879 = vpop.f32.mrb[0].mxu0
      %v880 = vadd.f32 %v783, %v879
      %v881 = vpop.f32.mrb[0].mxu0
      %882 = vdwg.mxu0
      %v883 = vmax.f32 %v821, 0.0
      %v884 = vmax.f32 %v824, 0.0
      %v885 = vmax.f32 %v829, 0.0
      %v886 = vmax.f32 %v832, 0.0
      %v887 = vmax.f32 %v837, 0.0
      %v888 = vmax.f32 %v840, 0.0
      %v889 = vmax.f32 %v845, 0.0
      %v890 = vmax.f32 %v848, 0.0
      %v891 = vmax.f32 %v853, 0.0
      %v892 = vmax.f32 %v856, 0.0
      %v893 = vmax.f32 %v861, 0.0
      %v894 = vmax.f32 %v864, 0.0
      %v895 = vmax.f32 %v869, 0.0
      %v896 = vmax.f32 %v872, 0.0
      %v897 = vmax.f32 %v877, 0.0
      %v898 = vmax.f32 %v880, 0.0
      %v899 = vpack.c.bf16 %v884, %v883
      %v900 = vpack.c.bf16 %v886, %v885
      %v901 = vpack.c.bf16 %v888, %v887
      %v902 = vpack.c.bf16 %v890, %v889
      %v903 = vpack.c.bf16 %v892, %v891
      %v904 = vpack.c.bf16 %v894, %v893
      %v905 = vpack.c.bf16 %v896, %v895
      %v906 = vpack.c.bf16 %v898, %v897
      %v915 = vunpack.c.l.b16 %v899
      %v916 = vunpack.c.h.b16 %v899
      %v917 = vunpack.c.l.b16 %v900
      %v918 = vunpack.c.h.b16 %v900
      %v919 = vunpack.c.l.b16 %v901
      %v920 = vunpack.c.h.b16 %v901
      %v921 = vunpack.c.l.b16 %v902
      %v922 = vunpack.c.h.b16 %v902
      %v923 = vunpack.c.l.b16 %v903
      %v924 = vunpack.c.h.b16 %v903
      %v925 = vunpack.c.l.b16 %v904
      %v926 = vunpack.c.h.b16 %v904
      %v927 = vunpack.c.l.b16 %v905
      %v928 = vunpack.c.h.b16 %v905
      %v929 = vunpack.c.l.b16 %v906
      %v930 = vunpack.c.h.b16 %v906
      %v931 = vpack.c.b16 %v915, %v915
      %v932 = vpack.c.b16 %v916, %v916
      %v933 = vpack.c.b16 %v917, %v917
      %v934 = vpack.c.b16 %v918, %v918
      %v935 = vpack.c.b16 %v919, %v919
      %v936 = vpack.c.b16 %v920, %v920
      %v937 = vpack.c.b16 %v921, %v921
      %v938 = vpack.c.b16 %v922, %v922
      %v939 = vpack.c.b16 %v923, %v923
      %v940 = vpack.c.b16 %v924, %v924
      %v941 = vpack.c.b16 %v925, %v925
      %v942 = vpack.c.b16 %v926, %v926
      %v943 = vpack.c.b16 %v927, %v927
      %v944 = vpack.c.b16 %v928, %v928
      %v945 = vpack.c.b16 %v929, %v929
      %v946 = vpack.c.b16 %v930, %v930
      %vm963 = vcmask 519168
      %964 = vst.msk [vmem:[%s231] sm:$0xf] %vm963, %v931
      %965 = vst.msk [vmem:[%s231 + $0x4] sm:$0xf] %vm963, %v932
      %966 = vst.msk [vmem:[%s231 + $0x8] sm:$0xf] %vm963, %v933
      %967 = vst.msk [vmem:[%s231 + $0xc] sm:$0xf] %vm963, %v934
      %968 = vst.msk [vmem:[%s231 + $0x10] sm:$0xf] %vm963, %v935
      %969 = vst.msk [vmem:[%s231 + $0x14] sm:$0xf] %vm963, %v936
      %970 = vst.msk [vmem:[%s231 + $0x18] sm:$0xf] %vm963, %v937
      %971 = vst.msk [vmem:[%s231 + $0x1c] sm:$0xf] %vm963, %v938
      %972 = vst.msk [vmem:[%s231 + $0x20] sm:$0xf] %vm963, %v939
      %973 = vst.msk [vmem:[%s231 + $0x24] sm:$0xf] %vm963, %v940
      %974 = vst.msk [vmem:[%s231 + $0x28] sm:$0xf] %vm963, %v941
      %975 = vst.msk [vmem:[%s231 + $0x2c] sm:$0xf] %vm963, %v942
      %976 = vst.msk [vmem:[%s231 + $0x30] sm:$0xf] %vm963, %v943
      %977 = vst.msk [vmem:[%s231 + $0x34] sm:$0xf] %vm963, %v944
      %978 = vst.msk [vmem:[%s231 + $0x38] sm:$0xf] %vm963, %v945
      %979 = vst.msk [vmem:[%s231 + $0x3c] sm:$0xf] %vm963, %v946
      %s980 = smul.u32 16, %s19
      %p981 = scmp.lt.s32.totalorder %s18, 3
      %s982 = scalar_select %p981, %s18, 3
      %p983 = scmp.lt.s32.totalorder %s980, 15
      %s984 = scalar_select %p983, %s980, 15
      %s985 = smul.addr %s982, 16
      %s986 = sadd.s32 %s984, %s985
      %s987 = smul.addr %s986, 4
      %s988 = scalar_lea.vmem %s3, %s987
      // Predicated region
      $region33: #{generator_forward.10} parent=31 // pred_check
        %p989 = pneg %p121
      $region34: #{generator_forward.10} parent=31 // pred_check_branch
        %991 = sbr.rel (%p989) target = $region36
      $region35: #{generator_forward.10} parent=31 // pred_region
        %s992 = smul.u32 16, %s19
      $region36: #{generator_forward.10} parent=31 // pred_fallthru
        _
    $region32: #{generator_forward.10} parent=5 // pred_fallthru
      _
    %p993 = scmp.le.s32.totalorder 2, %s9
    // Predicated region
    $region37: #{generator_forward.10} parent=5 // pred_check
      %p994 = pneg %p993
    $region38: #{generator_forward.10} parent=5 // pred_check_branch
      %996 = sbr.rel (%p994) target = $region40
    $region39: #{generator_forward.10} parent=5 // pred_region
      %s997 = ssub.s32 %s9, 2
      // Predicated region
      $region41: #{generator_forward.10} parent=39 // pred_check
        %p998 = pneg %p127
      $region42: #{generator_forward.10} parent=39 // pred_check_branch
        %1000 = sbr.rel (%p998) target = $region44
      $region43: #{generator_forward.10} parent=39 // pred_region
        %s1001 = smul.u32 16, %s21
        %p1002 = scmp.lt.s32.totalorder %s20, 3
        %s1003 = scalar_select %p1002, %s20, 3
        %p1004 = scmp.lt.s32.totalorder %s1001, 15
        %s1005 = scalar_select %p1004, %s1001, 15
        %s1006 = smul.addr %s1003, 16
        %s1007 = sadd.s32 %s1005, %s1006
        %s1008 = smul.addr %s1007, 4
        %s1009 = scalar_lea.vmem %s3, %s1008
      $region44: #{generator_forward.10} parent=39 // pred_fallthru
        _
    $region40: #{generator_forward.10} parent=5 // pred_fallthru
      _
  $region6: #{generator_forward.10} parent=0 // loop_footer
    %s13 = sadd.s32 1, %s9
  $region7: #{generator_forward.10} parent=0 // loop_footer_branch
    %8 = sbr.rel target = $region3
  $region8: #{generator_forward.10} parent=0 // loop_exit
    _

// kernel: squeeze.1
$region0: #{squeeze.1}
  %s0 = inlined_call_operand.vmem [shape: f32[4,512], index: 0, kind: input, shape index: {}]
  %s1 = inlined_call_operand.vmem [shape: f32[2,2,2,16,16,1], index: 1, kind: output, shape index: {}]
  $region1: #{squeeze.1} parent=0
    #allocation0 [shape = 'u8[16384]{0}', space=vmem, size = 0x4000, scoped, tag = 'scoped mem for input reshape']
    %s3 = sshllo.u32 0, 4
    %s4 = smul.addr 4, 3
    %s5 = scalar_lea.vmem %s0, %s4
    %v6 = vld [vmem:[%s5] sm:%s3]
    %s7 = scalar_lea.vmem [#allocation0], 24
    %8 = vst [vmem:[%s7] sm:%s3] %v6
    %s9 = smul.addr 4, 2
    %s10 = scalar_lea.vmem %s0, %s9
    %v11 = vld [vmem:[%s10] sm:%s3]
    %s12 = scalar_lea.vmem [#allocation0], 16
    %13 = vst [vmem:[%s12] sm:%s3] %v11
    %s14 = scalar_lea.vmem %s0, 4
    %v15 = vld [vmem:[%s14] sm:%s3]
    %s16 = scalar_lea.vmem [#allocation0], 8
    %17 = vst [vmem:[%s16] sm:%s3] %v15
    %v18 = vld [vmem:[%s0] sm:%s3]
    %19 = vst [vmem:[#allocation0] sm:%s3] %v18
    %v20 = vld [vmem:[#allocation0] sm:$0xf]
    %vm21 = vcmask 130048
    %22 = vst.msk [vmem:[%s1] sm:$0x1] %vm21, %v20
    %s23 = scalar_lea.vmem %s1, 31
    %24 = vst.msk [vmem:[%s23] sm:$0x2] %vm21, %v20
    %s25 = scalar_lea.vmem %s1, 62
    %26 = vst.msk [vmem:[%s25] sm:$0x4] %vm21, %v20
    %s27 = scalar_lea.vmem %s1, 93
    %28 = vst.msk [vmem:[%s27] sm:$0x8] %vm21, %v20
    %s29 = scalar_lea.vmem [#allocation0], 8
    %v30 = vld [vmem:[%s29] sm:$0xf]
    %vm31 = vcmask 130048
    %s32 = scalar_lea.vmem %s1, 8
    %33 = vst.msk [vmem:[%s32] sm:$0x1] %vm31, %v30
    %s34 = scalar_lea.vmem %s1, 39
    %35 = vst.msk [vmem:[%s34] sm:$0x2] %vm31, %v30
    %s36 = scalar_lea.vmem %s1, 70
    %37 = vst.msk [vmem:[%s36] sm:$0x4] %vm31, %v30
    %s38 = scalar_lea.vmem %s1, 101
    %39 = vst.msk [vmem:[%s38] sm:$0x8] %vm31, %v30
    %s40 = scalar_lea.vmem [#allocation0], 16
    %v41 = vld [vmem:[%s40] sm:$0xf]
    %vm42 = vcmask 130048
    %s43 = scalar_lea.vmem %s1, 16
    %44 = vst.msk [vmem:[%s43] sm:$0x1] %vm42, %v41
    %s45 = scalar_lea.vmem %s1, 47
    %46 = vst.msk [vmem:[%s45] sm:$0x2] %vm42, %v41
    %s47 = scalar_lea.vmem %s1, 78
    %48 = vst.msk [vmem:[%s47] sm:$0x4] %vm42, %v41
    %s49 = scalar_lea.vmem %s1, 109
    %50 = vst.msk [vmem:[%s49] sm:$0x8] %vm42, %v41
    %s51 = scalar_lea.vmem [#allocation0], 24
    %v52 = vld [vmem:[%s51] sm:$0xf]
    %vm53 = vcmask 130048
    %s54 = scalar_lea.vmem %s1, 24
    %55 = vst.msk [vmem:[%s54] sm:$0x1] %vm53, %v52
    %s56 = scalar_lea.vmem %s1, 55
    %57 = vst.msk [vmem:[%s56] sm:$0x2] %vm53, %v52
    %s58 = scalar_lea.vmem %s1, 86
    %59 = vst.msk [vmem:[%s58] sm:$0x4] %vm53, %v52
    %s60 = scalar_lea.vmem %s1, 117
    %61 = vst.msk [vmem:[%s60] sm:$0x8] %vm53, %v52
    %v62 = vld [vmem:[#allocation0] ss:$8 sm:$0xf]
    %s63 = scalar_lea.vmem [#allocation0], 4294967265
    %v64 = vld [vmem:[%s63] ss:$8 sm:$0xf0]
    %vm65 = vcmask 1047556
    %v66 = vsel %vm65, %v64, %v62
    %67 = vrot.lane.b32.xlu0 %v66, 112
    %v68 = vpop.permute.xlu0 %67
    %vm69 = vcmask 130048
    %s70 = scalar_lea.vmem %s1, 1
    %71 = vst.msk [vmem:[%s70] ss:$8 sm:$0xf] %vm69, %v68
    %s72 = scalar_lea.vmem %s1, 1
    %73 = vst.msk [vmem:[%s72] ss:$8 sm:$0xf0] %vm69, %v68
    %s74 = scalar_lea.vmem [#allocation0], 2
    %v75 = vld [vmem:[%s74] ss:$8 sm:$0xf]
    %s76 = scalar_lea.vmem [#allocation0], 4294967267
    %v77 = vld [vmem:[%s76] ss:$8 sm:$0xf0]
    %vm78 = vcmask 1047556
    %v79 = vsel %vm78, %v77, %v75
    %80 = vrot.lane.b32.xlu0 %v79, 112
    %v81 = vpop.permute.xlu0 %80
    %vm82 = vcmask 130048
    %s83 = scalar_lea.vmem %s1, 65
    %84 = vst.msk [vmem:[%s83] ss:$8 sm:$0xf] %vm82, %v81
    %s85 = scalar_lea.vmem %s1, 65
    %86 = vst.msk [vmem:[%s85] ss:$8 sm:$0xf0] %vm82, %v81
    %v87 = vld [vmem:[#allocation0] ss:$8 sm:$0xf]
    %s88 = scalar_lea.vmem [#allocation0], 4294967265
    %v89 = vld [vmem:[%s88] ss:$8 sm:$0xf0]
    %vm90 = vcmask 1047556
    %v91 = vsel %vm90, %v89, %v87
    %92 = vrot.lane.b32.xlu0 %v91, 96
    %v93 = vpop.permute.xlu0 %92
    %vm94 = vcmask 130048
    %s95 = scalar_lea.vmem %s1, 2
    %96 = vst.msk [vmem:[%s95] ss:$8 sm:$0xf] %vm94, %v93
    %s97 = scalar_lea.vmem %s1, 2
    %98 = vst.msk [vmem:[%s97] ss:$8 sm:$0xf0] %vm94, %v93
    %s99 = scalar_lea.vmem [#allocation0], 2
    %v100 = vld [vmem:[%s99] ss:$8 sm:$0xf]
    %s101 = scalar_lea.vmem [#allocation0], 4294967267
    %v102 = vld [vmem:[%s101] ss:$8 sm:$0xf0]
    %vm103 = vcmask 1047556
    %v104 = vsel %vm103, %v102, %v100
    %105 = vrot.lane.b32.xlu0 %v104, 96
    %v106 = vpop.permute.xlu0 %105
    %vm107 = vcmask 130048
    %s108 = scalar_lea.vmem %s1, 66
    %109 = vst.msk [vmem:[%s108] ss:$8 sm:$0xf] %vm107, %v106
    %s110 = scalar_lea.vmem %s1, 66
    %111 = vst.msk [vmem:[%s110] ss:$8 sm:$0xf0] %vm107, %v106
    %v112 = vld [vmem:[#allocation0] ss:$8 sm:$0xf]
    %s113 = scalar_lea.vmem [#allocation0], 4294967265
    %v114 = vld [vmem:[%s113] ss:$8 sm:$0xf0]
    %vm115 = vcmask 1047556
    %v116 = vsel %vm115, %v114, %v112
    %117 = vrot.lane.b32.xlu0 %v116, 80
    %v118 = vpop.permute.xlu0 %117
    %vm119 = vcmask 130048
    %s120 = scalar_lea.vmem %s1, 3
    %121 = vst.msk [vmem:[%s120] ss:$8 sm:$0xf] %vm119, %v118
    %s122 = scalar_lea.vmem %s1, 3
    %123 = vst.msk [vmem:[%s122] ss:$8 sm:$0xf0] %vm119, %v118
    %s124 = scalar_lea.vmem [#allocation0], 2
    %v125 = vld [vmem:[%s124] ss:$8 sm:$0xf]
    %s126 = scalar_lea.vmem [#allocation0], 4294967267
    %v127 = vld [vmem:[%s126] ss:$8 sm:$0xf0]
    %vm128 = vcmask 1047556
    %v129 = vsel %vm128, %v127, %v125
    %130 = vrot.lane.b32.xlu0 %v129, 80
    %v131 = vpop.permute.xlu0 %130
    %vm132 = vcmask 130048
    %s133 = scalar_lea.vmem %s1, 67
    %134 = vst.msk [vmem:[%s133] ss:$8 sm:$0xf] %vm132, %v131
    %s135 = scalar_lea.vmem %s1, 67
    %136 = vst.msk [vmem:[%s135] ss:$8 sm:$0xf0] %vm132, %v131
    %v137 = vld [vmem:[#allocation0] ss:$8 sm:$0xf]
    %s138 = scalar_lea.vmem [#allocation0], 4294967265
    %v139 = vld [vmem:[%s138] ss:$8 sm:$0xf0]
    %vm140 = vcmask 1047556
    %v141 = vsel %vm140, %v139, %v137
    %142 = vrot.lane.b32.xlu0 %v141, 64
    %v143 = vpop.permute.xlu0 %142
    %vm144 = vcmask 130048
    %s145 = scalar_lea.vmem %s1, 4
    %146 = vst.msk [vmem:[%s145] ss:$8 sm:$0xf] %vm144, %v143
    %s147 = scalar_lea.vmem %s1, 4
    %148 = vst.msk [vmem:[%s147] ss:$8 sm:$0xf0] %vm144, %v143
    %s149 = scalar_lea.vmem [#allocation0], 2
    %v150 = vld [vmem:[%s149] ss:$8 sm:$0xf]
    %s151 = scalar_lea.vmem [#allocation0], 4294967267
    %v152 = vld [vmem:[%s151] ss:$8 sm:$0xf0]
    %vm153 = vcmask 1047556
    %v154 = vsel %vm153, %v152, %v150
    %155 = vrot.lane.b32.xlu0 %v154, 64
    %v156 = vpop.permute.xlu0 %155
    %vm157 = vcmask 130048
    %s158 = scalar_lea.vmem %s1, 68
    %159 = vst.msk [vmem:[%s158] ss:$8 sm:$0xf] %vm157, %v156
    %s160 = scalar_lea.vmem %s1, 68
    %161 = vst.msk [vmem:[%s160] ss:$8 sm:$0xf0] %vm157, %v156
    %v162 = vld [vmem:[#allocation0] ss:$8 sm:$0xf]
    %s163 = scalar_lea.vmem [#allocation0], 4294967265
    %v164 = vld [vmem:[%s163] ss:$8 sm:$0xf0]
    %vm165 = vcmask 1047556
    %v166 = vsel %vm165, %v164, %v162
    %167 = vrot.lane.b32.xlu0 %v166, 48
    %v168 = vpop.permute.xlu0 %167
    %vm169 = vcmask 130048
    %s170 = scalar_lea.vmem %s1, 5
    %171 = vst.msk [vmem:[%s170] ss:$8 sm:$0xf] %vm169, %v168
    %s172 = scalar_lea.vmem %s1, 5
    %173 = vst.msk [vmem:[%s172] ss:$8 sm:$0xf0] %vm169, %v168
    %s174 = scalar_lea.vmem [#allocation0], 2
    %v175 = vld [vmem:[%s174] ss:$8 sm:$0xf]
    %s176 = scalar_lea.vmem [#allocation0], 4294967267
    %v177 = vld [vmem:[%s176] ss:$8 sm:$0xf0]
    %vm178 = vcmask 1047556
    %v179 = vsel %vm178, %v177, %v175
    %180 = vrot.lane.b32.xlu0 %v179, 48
    %v181 = vpop.permute.xlu0 %180
    %vm182 = vcmask 130048
    %s183 = scalar_lea.vmem %s1, 69
    %184 = vst.msk [vmem:[%s183] ss:$8 sm:$0xf] %vm182, %v181
    %s185 = scalar_lea.vmem %s1, 69
    %186 = vst.msk [vmem:[%s185] ss:$8 sm:$0xf0] %vm182, %v181
    %v187 = vld [vmem:[#allocation0] ss:$8 sm:$0xf]
    %s188 = scalar_lea.vmem [#allocation0], 4294967265
    %v189 = vld [vmem:[%s188] ss:$8 sm:$0xf0]
    %vm190 = vcmask 1047556
    %v191 = vsel %vm190, %v189, %v187
    %192 = vrot.lane.b32.xlu0 %v191, 32
    %v193 = vpop.permute.xlu0 %192
    %vm194 = vcmask 130048
    %s195 = scalar_lea.vmem %s1, 6
    %196 = vst.msk [vmem:[%s195] ss:$8 sm:$0xf] %vm194, %v193
    %s197 = scalar_lea.vmem %s1, 6
    %198 = vst.msk [vmem:[%s197] ss:$8 sm:$0xf0] %vm194, %v193
    %s199 = scalar_lea.vmem [#allocation0], 2
    %v200 = vld [vmem:[%s199] ss:$8 sm:$0xf]
    %s201 = scalar_lea.vmem [#allocation0], 4294967267
    %v202 = vld [vmem:[%s201] ss:$8 sm:$0xf0]
    %vm203 = vcmask 1047556
    %v204 = vsel %vm203, %v202, %v200
    %205 = vrot.lane.b32.xlu0 %v204, 32
    %v206 = vpop.permute.xlu0 %205
    %vm207 = vcmask 130048
    %s208 = scalar_lea.vmem %s1, 70
    %209 = vst.msk [vmem:[%s208] ss:$8 sm:$0xf] %vm207, %v206
    %s210 = scalar_lea.vmem %s1, 70
    %211 = vst.msk [vmem:[%s210] ss:$8 sm:$0xf0] %vm207, %v206
    %v212 = vld [vmem:[#allocation0] ss:$8 sm:$0xf]
    %s213 = scalar_lea.vmem [#allocation0], 4294967265
    %v214 = vld [vmem:[%s213] ss:$8 sm:$0xf0]
    %vm215 = vcmask 1047556
    %v216 = vsel %vm215, %v214, %v212
    %217 = vrot.lane.b32.xlu0 %v216, 16
    %v218 = vpop.permute.xlu0 %217
    %vm219 = vcmask 130048
    %s220 = scalar_lea.vmem %s1, 7
    %221 = vst.msk [vmem:[%s220] ss:$8 sm:$0xf] %vm219, %v218
    %s222 = scalar_lea.vmem %s1, 7
    %223 = vst.msk [vmem:[%s222] ss:$8 sm:$0xf0] %vm219, %v218
    %s224 = scalar_lea.vmem [#allocation0], 2
    %v225 = vld [vmem:[%s224] ss:$8 sm:$0xf]
    %s226 = scalar_lea.vmem [#allocation0], 4294967267
    %v227 = vld [vmem:[%s226] ss:$8 sm:$0xf0]
    %vm228 = vcmask 1047556
    %v229 = vsel %vm228, %v227, %v225
    %230 = vrot.lane.b32.xlu0 %v229, 16
    %v231 = vpop.permute.xlu0 %230
    %vm232 = vcmask 130048
    %s233 = scalar_lea.vmem %s1, 71
    %234 = vst.msk [vmem:[%s233] ss:$8 sm:$0xf] %vm232, %v231
    %s235 = scalar_lea.vmem %s1, 71
    %236 = vst.msk [vmem:[%s235] ss:$8 sm:$0xf0] %vm232, %v231

// kernel: generator_forward.11
$region0: #{generator_forward.11}
  #allocation0 [shape = 'u32[]', space=smem, size = 0x4, offset = 0x4, fixed_abs, tag = 'smem constant byte address 0x4 - core index']
  #allocation1 [shape = 'u32[144,128]{1,0:T(1,128)}', space=vmem, size = 0x12000, scoped, tag = 'internal scratch']
  %s0 = inlined_call_operand.vmem [shape: bf16[4,256,512], index: 0, kind: input, shape index: {}]
  %s1 = inlined_call_operand.vmem [shape: bf16[4,256,1], index: 1, kind: input, shape index: {}]
  %s2 = inlined_call_operand.vmem [shape: f32[4,1,512], index: 2, kind: output, shape index: {}]
  %s3 = sld [smem:[#allocation0]]
  $region41: #{generator_forward.11} parent=0
    _
  %s5 = ssub.s32 1, %s3
  %s6 = scalar_select 0, %s5, %s3
  loop: start=0, step=1, limit=6
  $region2: #{generator_forward.11} parent=0 // loop_pre_header
    _
  $region3: #{generator_forward.11} parent=0 // loop_header
    %s8 = sphi 0, %s12
    %p9 = scmp.ge.s32.totalorder %s8, 6
    %s15 = sphi 0, %s27
    %s16 = sphi 0, %s23
    %s17 = sphi 0, %s15
    %s18 = sphi 0, %s16
    %s19 = sphi 0, %s17
    %s20 = sphi 0, %s18
    %s32 = sphi 0, %s34
    %s35 = sphi 0, %s32
    %s36 = sphi 0, %s35
    %s52 = sphi 0, %s36
    %s58 = sphi 0, %s60
    %s61 = sphi 0, %s58
    %s62 = sphi 0, %s61
    %s78 = sphi 0, %s62
    %s86 = sphi 0, %s88
    %s89 = sphi 0, %s86
    %s90 = sphi 0, %s89
    %s106 = sphi 0, %s90
  $region4: #{generator_forward.11} parent=0 // loop_header_branch
    %11 = sbr.rel (%p9) target = $region8
  $region5: #{generator_forward.11} parent=0 // loop_body
    %s13 = ssub.s32 %s8, 1
    %s14 = ssub.s32 %s8, 2
    %s21 = sadd.s32 1, %s16
    %p22 = scmp.ge.s32.totalorder %s21, 1
    %s23 = scalar_select %p22, 0, %s21
    %s24 = sadd.s32 1, %s15
    %s25 = scalar_select %p22, %s24, %s15
    %p26 = scmp.ge.s32.totalorder %s25, 4
    %s27 = scalar_select %p26, 0, %s25
    %s28 = ssub.s32 %s15, %s27
    %s29 = ssub.s32 %s16, %s23
    %s30 = sor.u32 %s28, %s29
    %p31 = scmp.eq.s32.totalorder %s30, 0
    %s33 = sadd.s32 %s32, 1
    %s34 = scalar_select %p31, %s32, %s33
    %p37 = pneg %p31
    %p38 = scmp.eq.s32.totalorder %s8, 3
    %p39 = por %p37, %p38
    %p40 = scmp.ne.s32.totalorder %s32, %s35
    %p41 = scmp.eq.s32.totalorder %s8, 0
    %p42 = por %p40, %p41
    %p43 = scmp.ne.s32.totalorder %s32, %s35
    %p44 = scmp.eq.s32.totalorder %s13, 3
    %p45 = por %p43, %p44
    %p46 = scmp.ne.s32.totalorder %s35, %s36
    %p47 = scmp.eq.s32.totalorder %s13, 0
    %p48 = por %p46, %p47
    %p49 = scmp.ne.s32.totalorder %s35, %s36
    %p50 = scmp.eq.s32.totalorder %s14, 3
    %p51 = por %p49, %p50
    %p53 = scmp.ne.s32.totalorder %s36, %s52
    %p54 = scmp.eq.s32.totalorder %s14, 0
    %p55 = por %p53, %p54
    %s56 = ssub.s32 %s15, %s27
    %p57 = scmp.eq.s32.totalorder %s56, 0
    %s59 = sadd.s32 %s58, 1
    %s60 = scalar_select %p57, %s58, %s59
    %p63 = pneg %p57
    %p64 = scmp.eq.s32.totalorder %s8, 3
    %p65 = por %p63, %p64
    %p66 = scmp.ne.s32.totalorder %s58, %s61
    %p67 = scmp.eq.s32.totalorder %s8, 0
    %p68 = por %p66, %p67
    %p69 = scmp.ne.s32.totalorder %s58, %s61
    %p70 = scmp.eq.s32.totalorder %s13, 3
    %p71 = por %p69, %p70
    %p72 = scmp.ne.s32.totalorder %s61, %s62
    %p73 = scmp.eq.s32.totalorder %s13, 0
    %p74 = por %p72, %p73
    %p75 = scmp.ne.s32.totalorder %s61, %s62
    %p76 = scmp.eq.s32.totalorder %s14, 3
    %p77 = por %p75, %p76
    %p79 = scmp.ne.s32.totalorder %s62, %s78
    %p80 = scmp.eq.s32.totalorder %s14, 0
    %p81 = por %p79, %p80
    %s82 = ssub.s32 %s15, %s27
    %s83 = ssub.s32 %s16, %s23
    %s84 = sor.u32 %s82, %s83
    %p85 = scmp.eq.s32.totalorder %s84, 0
    %s87 = sadd.s32 %s86, 1
    %s88 = scalar_select %p85, %s86, %s87
    %p91 = pneg %p85
    %p92 = scmp.eq.s32.totalorder %s8, 3
    %p93 = por %p91, %p92
    %p94 = scmp.ne.s32.totalorder %s86, %s89
    %p95 = scmp.eq.s32.totalorder %s8, 0
    %p96 = por %p94, %p95
    %p97 = scmp.ne.s32.totalorder %s86, %s89
    %p98 = scmp.eq.s32.totalorder %s13, 3
    %p99 = por %p97, %p98
    %p100 = scmp.ne.s32.totalorder %s89, %s90
    %p101 = scmp.eq.s32.totalorder %s13, 0
    %p102 = por %p100, %p101
    %p103 = scmp.ne.s32.totalorder %s89, %s90
    %p104 = scmp.eq.s32.totalorder %s14, 3
    %p105 = por %p103, %p104
    %p107 = scmp.ne.s32.totalorder %s90, %s106
    %p108 = scmp.eq.s32.totalorder %s14, 0
    %p109 = por %p107, %p108
    %p110 = scmp.le.s32.totalorder 1, %s8
    %p111 = scmp.lt.s32.totalorder %s8, 5
    %p112 = pnand %p110, %p111
    %p113 = pneg %p112
    // Predicated region
    $region9: #{generator_forward.11} parent=5 // pred_check
      _
    $region10: #{generator_forward.11} parent=5 // pred_check_branch
      %115 = sbr.rel (%p112) target = $region12
    $region11: #{generator_forward.11} parent=5 // pred_region
      %s116 = ssub.s32 %s8, 1
    $region12: #{generator_forward.11} parent=5 // pred_fallthru
      _
    %p117 = scmp.lt.s32.totalorder %s8, 4
    // Predicated region
    $region13: #{generator_forward.11} parent=5 // pred_check
      %p118 = pneg %p117
    $region14: #{generator_forward.11} parent=5 // pred_check_branch
      %120 = sbr.rel (%p118) target = $region16
    $region15: #{generator_forward.11} parent=5 // pred_region
      // Predicated region
      $region17: #{generator_forward.11} parent=15 // pred_check
        %p121 = pneg %p42
      $region18: #{generator_forward.11} parent=15 // pred_check_branch
        %123 = sbr.rel (%p121) target = $region20
      $region19: #{generator_forward.11} parent=15 // pred_region
        %s124 = smul.u32 4, %s16
        %p125 = scmp.lt.s32.totalorder %s15, 3
        %s126 = scalar_select %p125, %s15, 3
        %p127 = scmp.lt.s32.totalorder %s124, 3
        %s128 = scalar_select %p127, %s124, 3
        %s129 = smul.addr %s126, 128
        %s130 = sadd.s32 %s128, %s129
        %s131 = smul.addr %s130, 4
        %s132 = scalar_lea.vmem %s0, %s131
        %s133 = smul.u32 4, %s16
      $region20: #{generator_forward.11} parent=15 // pred_fallthru
        _
      // Predicated region
      $region21: #{generator_forward.11} parent=15 // pred_check
        %p134 = pneg %p68
      $region22: #{generator_forward.11} parent=15 // pred_check_branch
        %136 = sbr.rel (%p134) target = $region24
      $region23: #{generator_forward.11} parent=15 // pred_region
        %p137 = scmp.lt.s32.totalorder %s15, 3
        %s138 = scalar_select %p137, %s15, 3
        %s139 = smul.addr %s138, 32
        %s140 = smul.addr %s139, 4
        %s141 = scalar_lea.vmem %s1, %s140
      $region24: #{generator_forward.11} parent=15 // pred_fallthru
        _
    $region16: #{generator_forward.11} parent=5 // pred_fallthru
      _
    %p142 = scmp.le.s32.totalorder 1, %s8
    %p143 = scmp.lt.s32.totalorder %s8, 5
    %p144 = pnand %p142, %p143
    %p145 = pneg %p144
    // Predicated region
    $region25: #{generator_forward.11} parent=5 // pred_check
      _
    $region26: #{generator_forward.11} parent=5 // pred_check_branch
      %147 = sbr.rel (%p144) target = $region28
    $region27: #{generator_forward.11} parent=5 // pred_region
      %s148 = ssub.s32 %s8, 1
      %s149 = smul.u32 4, %s18
      %p150 = scmp.lt.s32.totalorder %s17, 3
      %s151 = scalar_select %p150, %s17, 3
      %p152 = scmp.lt.s32.totalorder %s149, 3
      %s153 = scalar_select %p152, %s149, 3
      %s154 = smul.addr %s151, 128
      %s155 = sadd.s32 %s153, %s154
      %s156 = smul.addr %s155, 4
      %s157 = scalar_lea.vmem %s0, %s156
      %p158 = pneg %p48
      %p159 = pneg %p45
      %p160 = scmp.lt.s32.totalorder %s17, 3
      %s161 = scalar_select %p160, %s17, 3
      %s162 = smul.addr %s161, 32
      %s163 = smul.addr %s162, 4
      %s164 = scalar_lea.vmem %s1, %s163
      %p165 = pneg %p74
      %p166 = pneg %p71
      %p167 = pneg %p102
      %p168 = pneg %p99
      %s169 = smul.u32 4, %s18
      %p170 = scmp.lt.s32.totalorder %s17, 3
      %s171 = scalar_select %p170, %s17, 3
      %p172 = scmp.lt.s32.totalorder %s169, 3
      %s173 = scalar_select %p172, %s169, 3
      %s174 = smul.addr %s171, 4
      %s175 = sadd.s32 %s173, %s174
      %s176 = scalar_lea.vmem %s2, %s175
      %s177 = smul.u32 4, %s18
      %p178 = scmp.lt.s32.totalorder %s17, 3
      %s179 = scalar_select %p178, %s17, 3
      %p180 = scmp.lt.s32.totalorder %s177, 3
      %s181 = scalar_select %p180, %s177, 3
      %s182 = smul.addr %s179, 128
      %s183 = sadd.s32 %s181, %s182
      %s184 = smul.addr %s183, 4
      %s185 = scalar_lea.vmem %s0, %s184
      %s186 = smul.u32 4, %s18
      %p187 = scmp.lt.s32.totalorder %s17, 3
      %s188 = scalar_select %p187, %s17, 3
      %s189 = smul.addr %s188, 32
      %s190 = smul.addr %s189, 4
      %s191 = scalar_lea.vmem %s1, %s190
      %s192 = smul.u32 4, %s18
      %p193 = scmp.lt.s32.totalorder %s17, 3
      %s194 = scalar_select %p193, %s17, 3
      %p195 = scmp.lt.s32.totalorder %s192, 3
      %s196 = scalar_select %p195, %s192, 3
      %s197 = smul.addr %s194, 4
      %s198 = sadd.s32 %s196, %s197
      %s199 = scalar_lea.vmem %s2, %s198
      %s200 = smul.u32 4, %s18
      %v201 = vld [vmem:[%s185] sm:$0xff]
      %v202 = vld [vmem:[%s185 + $0x8] sm:$0xff]
      %v203 = vld [vmem:[%s185 + $0x10] sm:$0xff]
      %v204 = vld [vmem:[%s185 + $0x18] sm:$0xff]
      %v205 = vld [vmem:[%s185 + $0x20] sm:$0xff]
      %v206 = vld [vmem:[%s185 + $0x28] sm:$0xff]
      %v207 = vld [vmem:[%s185 + $0x30] sm:$0xff]
      %v208 = vld [vmem:[%s185 + $0x38] sm:$0xff]
      %v209 = vld [vmem:[%s185 + $0x40] sm:$0xff]
      %v210 = vld [vmem:[%s185 + $0x48] sm:$0xff]
      %v211 = vld [vmem:[%s185 + $0x50] sm:$0xff]
      %v212 = vld [vmem:[%s185 + $0x58] sm:$0xff]
      %v213 = vld [vmem:[%s185 + $0x60] sm:$0xff]
      %v214 = vld [vmem:[%s185 + $0x68] sm:$0xff]
      %v215 = vld [vmem:[%s185 + $0x70] sm:$0xff]
      %v216 = vld [vmem:[%s185 + $0x78] sm:$0xff]
      %v217 = vld [vmem:[%s185 + $0x80] sm:$0xff]
      %v218 = vld [vmem:[%s185 + $0x88] sm:$0xff]
      %v219 = vld [vmem:[%s185 + $0x90] sm:$0xff]
      %v220 = vld [vmem:[%s185 + $0x98] sm:$0xff]
      %v221 = vld [vmem:[%s185 + $0xa0] sm:$0xff]
      %v222 = vld [vmem:[%s185 + $0xa8] sm:$0xff]
      %v223 = vld [vmem:[%s185 + $0xb0] sm:$0xff]
      %v224 = vld [vmem:[%s185 + $0xb8] sm:$0xff]
      %v225 = vld [vmem:[%s185 + $0xc0] sm:$0xff]
      %v226 = vld [vmem:[%s185 + $0xc8] sm:$0xff]
      %v227 = vld [vmem:[%s185 + $0xd0] sm:$0xff]
      %v228 = vld [vmem:[%s185 + $0xd8] sm:$0xff]
      %v229 = vld [vmem:[%s185 + $0xe0] sm:$0xff]
      %v230 = vld [vmem:[%s185 + $0xe8] sm:$0xff]
      %v231 = vld [vmem:[%s185 + $0xf0] sm:$0xff]
      %v232 = vld [vmem:[%s185 + $0xf8] sm:$0xff]
      %v233 = vld [vmem:[%s185 + $0x100] sm:$0xff]
      %v234 = vld [vmem:[%s185 + $0x108] sm:$0xff]
      %v235 = vld [vmem:[%s185 + $0x110] sm:$0xff]
      %v236 = vld [vmem:[%s185 + $0x118] sm:$0xff]
      %v237 = vld [vmem:[%s185 + $0x120] sm:$0xff]
      %v238 = vld [vmem:[%s185 + $0x128] sm:$0xff]
      %v239 = vld [vmem:[%s185 + $0x130] sm:$0xff]
      %v240 = vld [vmem:[%s185 + $0x138] sm:$0xff]
      %v241 = vld [vmem:[%s185 + $0x140] sm:$0xff]
      %v242 = vld [vmem:[%s185 + $0x148] sm:$0xff]
      %v243 = vld [vmem:[%s185 + $0x150] sm:$0xff]
      %v244 = vld [vmem:[%s185 + $0x158] sm:$0xff]
      %v245 = vld [vmem:[%s185 + $0x160] sm:$0xff]
      %v246 = vld [vmem:[%s185 + $0x168] sm:$0xff]
      %v247 = vld [vmem:[%s185 + $0x170] sm:$0xff]
      %v248 = vld [vmem:[%s185 + $0x178] sm:$0xff]
      %v249 = vld [vmem:[%s185 + $0x180] sm:$0xff]
      %v250 = vld [vmem:[%s185 + $0x188] sm:$0xff]
      %v251 = vld [vmem:[%s185 + $0x190] sm:$0xff]
      %v252 = vld [vmem:[%s185 + $0x198] sm:$0xff]
      %v253 = vld [vmem:[%s185 + $0x1a0] sm:$0xff]
      %v254 = vld [vmem:[%s185 + $0x1a8] sm:$0xff]
      %v255 = vld [vmem:[%s185 + $0x1b0] sm:$0xff]
      %v256 = vld [vmem:[%s185 + $0x1b8] sm:$0xff]
      %v257 = vld [vmem:[%s185 + $0x1c0] sm:$0xff]
      %v258 = vld [vmem:[%s185 + $0x1c8] sm:$0xff]
      %v259 = vld [vmem:[%s185 + $0x1d0] sm:$0xff]
      %v260 = vld [vmem:[%s185 + $0x1d8] sm:$0xff]
      %v261 = vld [vmem:[%s185 + $0x1e0] sm:$0xff]
      %v262 = vld [vmem:[%s185 + $0x1e8] sm:$0xff]
      %v263 = vld [vmem:[%s185 + $0x1f0] sm:$0xff]
      %v264 = vld [vmem:[%s185 + $0x1f8] sm:$0xff]
      %v265 = vunpack.c.l.bf16 %v201
      %v266 = vunpack.c.h.bf16 %v201
      %v267 = vunpack.c.l.bf16 %v202
      %v268 = vunpack.c.h.bf16 %v202
      %v269 = vunpack.c.l.bf16 %v203
      %v270 = vunpack.c.h.bf16 %v203
      %v271 = vunpack.c.l.bf16 %v204
      %v272 = vunpack.c.h.bf16 %v204
      %v273 = vunpack.c.l.bf16 %v205
      %v274 = vunpack.c.h.bf16 %v205
      %v275 = vunpack.c.l.bf16 %v206
      %v276 = vunpack.c.h.bf16 %v206
      %v277 = vunpack.c.l.bf16 %v207
      %v278 = vunpack.c.h.bf16 %v207
      %v279 = vunpack.c.l.bf16 %v208
      %v280 = vunpack.c.h.bf16 %v208
      %v281 = vunpack.c.l.bf16 %v209
      %v282 = vunpack.c.h.bf16 %v209
      %v283 = vunpack.c.l.bf16 %v210
      %v284 = vunpack.c.h.bf16 %v210
      %v285 = vunpack.c.l.bf16 %v211
      %v286 = vunpack.c.h.bf16 %v211
      %v287 = vunpack.c.l.bf16 %v212
      %v288 = vunpack.c.h.bf16 %v212
      %v289 = vunpack.c.l.bf16 %v213
      %v290 = vunpack.c.h.bf16 %v213
      %v291 = vunpack.c.l.bf16 %v214
      %v292 = vunpack.c.h.bf16 %v214
      %v293 = vunpack.c.l.bf16 %v215
      %v294 = vunpack.c.h.bf16 %v215
      %v295 = vunpack.c.l.bf16 %v216
      %v296 = vunpack.c.h.bf16 %v216
      %v297 = vunpack.c.l.bf16 %v217
      %v298 = vunpack.c.h.bf16 %v217
      %v299 = vunpack.c.l.bf16 %v218
      %v300 = vunpack.c.h.bf16 %v218
      %v301 = vunpack.c.l.bf16 %v219
      %v302 = vunpack.c.h.bf16 %v219
      %v303 = vunpack.c.l.bf16 %v220
      %v304 = vunpack.c.h.bf16 %v220
      %v305 = vunpack.c.l.bf16 %v221
      %v306 = vunpack.c.h.bf16 %v221
      %v307 = vunpack.c.l.bf16 %v222
      %v308 = vunpack.c.h.bf16 %v222
      %v309 = vunpack.c.l.bf16 %v223
      %v310 = vunpack.c.h.bf16 %v223
      %v311 = vunpack.c.l.bf16 %v224
      %v312 = vunpack.c.h.bf16 %v224
      %v313 = vunpack.c.l.bf16 %v225
      %v314 = vunpack.c.h.bf16 %v225
      %v315 = vunpack.c.l.bf16 %v226
      %v316 = vunpack.c.h.bf16 %v226
      %v317 = vunpack.c.l.bf16 %v227
      %v318 = vunpack.c.h.bf16 %v227
      %v319 = vunpack.c.l.bf16 %v228
      %v320 = vunpack.c.h.bf16 %v228
      %v321 = vunpack.c.l.bf16 %v229
      %v322 = vunpack.c.h.bf16 %v229
      %v323 = vunpack.c.l.bf16 %v230
      %v324 = vunpack.c.h.bf16 %v230
      %v325 = vunpack.c.l.bf16 %v231
      %v326 = vunpack.c.h.bf16 %v231
      %v327 = vunpack.c.l.bf16 %v232
      %v328 = vunpack.c.h.bf16 %v232
      %v329 = vunpack.c.l.bf16 %v233
      %v330 = vunpack.c.h.bf16 %v233
      %v331 = vunpack.c.l.bf16 %v234
      %v332 = vunpack.c.h.bf16 %v234
      %v333 = vunpack.c.l.bf16 %v235
      %v334 = vunpack.c.h.bf16 %v235
      %v335 = vunpack.c.l.bf16 %v236
      %v336 = vunpack.c.h.bf16 %v236
      %v337 = vunpack.c.l.bf16 %v237
      %v338 = vunpack.c.h.bf16 %v237
      %v339 = vunpack.c.l.bf16 %v238
      %v340 = vunpack.c.h.bf16 %v238
      %v341 = vunpack.c.l.bf16 %v239
      %v342 = vunpack.c.h.bf16 %v239
      %v343 = vunpack.c.l.bf16 %v240
      %v344 = vunpack.c.h.bf16 %v240
      %v345 = vunpack.c.l.bf16 %v241
      %v346 = vunpack.c.h.bf16 %v241
      %v347 = vunpack.c.l.bf16 %v242
      %v348 = vunpack.c.h.bf16 %v242
      %v349 = vunpack.c.l.bf16 %v243
      %v350 = vunpack.c.h.bf16 %v243
      %v351 = vunpack.c.l.bf16 %v244
      %v352 = vunpack.c.h.bf16 %v244
      %v353 = vunpack.c.l.bf16 %v245
      %v354 = vunpack.c.h.bf16 %v245
      %v355 = vunpack.c.l.bf16 %v246
      %v356 = vunpack.c.h.bf16 %v246
      %v357 = vunpack.c.l.bf16 %v247
      %v358 = vunpack.c.h.bf16 %v247
      %v359 = vunpack.c.l.bf16 %v248
      %v360 = vunpack.c.h.bf16 %v248
      %v361 = vunpack.c.l.bf16 %v249
      %v362 = vunpack.c.h.bf16 %v249
      %v363 = vunpack.c.l.bf16 %v250
      %v364 = vunpack.c.h.bf16 %v250
      %v365 = vunpack.c.l.bf16 %v251
      %v366 = vunpack.c.h.bf16 %v251
      %v367 = vunpack.c.l.bf16 %v252
      %v368 = vunpack.c.h.bf16 %v252
      %v369 = vunpack.c.l.bf16 %v253
      %v370 = vunpack.c.h.bf16 %v253
      %v371 = vunpack.c.l.bf16 %v254
      %v372 = vunpack.c.h.bf16 %v254
      %v373 = vunpack.c.l.bf16 %v255
      %v374 = vunpack.c.h.bf16 %v255
      %v375 = vunpack.c.l.bf16 %v256
      %v376 = vunpack.c.h.bf16 %v256
      %v377 = vunpack.c.l.bf16 %v257
      %v378 = vunpack.c.h.bf16 %v257
      %v379 = vunpack.c.l.bf16 %v258
      %v380 = vunpack.c.h.bf16 %v258
      %v381 = vunpack.c.l.bf16 %v259
      %v382 = vunpack.c.h.bf16 %v259
      %v383 = vunpack.c.l.bf16 %v260
      %v384 = vunpack.c.h.bf16 %v260
      %v385 = vunpack.c.l.bf16 %v261
      %v386 = vunpack.c.h.bf16 %v261
      %v387 = vunpack.c.l.bf16 %v262
      %v388 = vunpack.c.h.bf16 %v262
      %v389 = vunpack.c.l.bf16 %v263
      %v390 = vunpack.c.h.bf16 %v263
      %v391 = vunpack.c.l.bf16 %v264
      %v392 = vunpack.c.h.bf16 %v264
      %v393 = vld [vmem:[%s191] sm:$0xf]
      %v394 = vld [vmem:[%s191 + $0x4] sm:$0xf]
      %v395 = vld [vmem:[%s191 + $0x8] sm:$0xf]
      %v396 = vld [vmem:[%s191 + $0xc] sm:$0xf]
      %v397 = vld [vmem:[%s191 + $0x10] sm:$0xf]
      %v398 = vld [vmem:[%s191 + $0x14] sm:$0xf]
      %v399 = vld [vmem:[%s191 + $0x18] sm:$0xf]
      %v400 = vld [vmem:[%s191 + $0x1c] sm:$0xf]
      %v401 = vld [vmem:[%s191 + $0x20] sm:$0xf]
      %v402 = vld [vmem:[%s191 + $0x24] sm:$0xf]
      %v403 = vld [vmem:[%s191 + $0x28] sm:$0xf]
      %v404 = vld [vmem:[%s191 + $0x2c] sm:$0xf]
      %v405 = vld [vmem:[%s191 + $0x30] sm:$0xf]
      %v406 = vld [vmem:[%s191 + $0x34] sm:$0xf]
      %v407 = vld [vmem:[%s191 + $0x38] sm:$0xf]
      %v408 = vld [vmem:[%s191 + $0x3c] sm:$0xf]
      %v409 = vld [vmem:[%s191 + $0x40] sm:$0xf]
      %v410 = vld [vmem:[%s191 + $0x44] sm:$0xf]
      %v411 = vld [vmem:[%s191 + $0x48] sm:$0xf]
      %v412 = vld [vmem:[%s191 + $0x4c] sm:$0xf]
      %v413 = vld [vmem:[%s191 + $0x50] sm:$0xf]
      %v414 = vld [vmem:[%s191 + $0x54] sm:$0xf]
      %v415 = vld [vmem:[%s191 + $0x58] sm:$0xf]
      %v416 = vld [vmem:[%s191 + $0x5c] sm:$0xf]
      %v417 = vld [vmem:[%s191 + $0x60] sm:$0xf]
      %v418 = vld [vmem:[%s191 + $0x64] sm:$0xf]
      %v419 = vld [vmem:[%s191 + $0x68] sm:$0xf]
      %v420 = vld [vmem:[%s191 + $0x6c] sm:$0xf]
      %v421 = vld [vmem:[%s191 + $0x70] sm:$0xf]
      %v422 = vld [vmem:[%s191 + $0x74] sm:$0xf]
      %v423 = vld [vmem:[%s191 + $0x78] sm:$0xf]
      %v424 = vld [vmem:[%s191 + $0x7c] sm:$0xf]
      %v425 = vunpack.c.l.bf16 %v393
      %v426 = vunpack.c.l.bf16 %v394
      %v427 = vunpack.c.l.bf16 %v395
      %v428 = vunpack.c.l.bf16 %v396
      %v429 = vunpack.c.l.bf16 %v397
      %v430 = vunpack.c.l.bf16 %v398
      %v431 = vunpack.c.l.bf16 %v399
      %v432 = vunpack.c.l.bf16 %v400
      %v433 = vunpack.c.l.bf16 %v401
      %v434 = vunpack.c.l.bf16 %v402
      %v435 = vunpack.c.l.bf16 %v403
      %v436 = vunpack.c.l.bf16 %v404
      %v437 = vunpack.c.l.bf16 %v405
      %v438 = vunpack.c.l.bf16 %v406
      %v439 = vunpack.c.l.bf16 %v407
      %v440 = vunpack.c.l.bf16 %v408
      %v441 = vunpack.c.l.bf16 %v409
      %v442 = vunpack.c.l.bf16 %v410
      %v443 = vunpack.c.l.bf16 %v411
      %v444 = vunpack.c.l.bf16 %v412
      %v445 = vunpack.c.l.bf16 %v413
      %v446 = vunpack.c.l.bf16 %v414
      %v447 = vunpack.c.l.bf16 %v415
      %v448 = vunpack.c.l.bf16 %v416
      %v449 = vunpack.c.l.bf16 %v417
      %v450 = vunpack.c.l.bf16 %v418
      %v451 = vunpack.c.l.bf16 %v419
      %v452 = vunpack.c.l.bf16 %v420
      %v453 = vunpack.c.l.bf16 %v421
      %v454 = vunpack.c.l.bf16 %v422
      %v455 = vunpack.c.l.bf16 %v423
      %v456 = vunpack.c.l.bf16 %v424
      %458 = vset.pattern.permute.xlu0 0
      %459 = vperm.xlu0 %458, %v425
      %v460 = vpop.permute.xlu0 %459
      %463 = vset.pattern.permute.xlu0 0
      %464 = vperm.xlu0 %463, %v426
      %v465 = vpop.permute.xlu0 %464
      %468 = vset.pattern.permute.xlu0 0
      %469 = vperm.xlu0 %468, %v427
      %v470 = vpop.permute.xlu0 %469
      %473 = vset.pattern.permute.xlu0 0
      %474 = vperm.xlu0 %473, %v428
      %v475 = vpop.permute.xlu0 %474
      %478 = vset.pattern.permute.xlu0 0
      %479 = vperm.xlu0 %478, %v429
      %v480 = vpop.permute.xlu0 %479
      %483 = vset.pattern.permute.xlu0 0
      %484 = vperm.xlu0 %483, %v430
      %v485 = vpop.permute.xlu0 %484
      %488 = vset.pattern.permute.xlu0 0
      %489 = vperm.xlu0 %488, %v431
      %v490 = vpop.permute.xlu0 %489
      %493 = vset.pattern.permute.xlu0 0
      %494 = vperm.xlu0 %493, %v432
      %v495 = vpop.permute.xlu0 %494
      %498 = vset.pattern.permute.xlu0 0
      %499 = vperm.xlu0 %498, %v433
      %v500 = vpop.permute.xlu0 %499
      %503 = vset.pattern.permute.xlu0 0
      %504 = vperm.xlu0 %503, %v434
      %v505 = vpop.permute.xlu0 %504
      %508 = vset.pattern.permute.xlu0 0
      %509 = vperm.xlu0 %508, %v435
      %v510 = vpop.permute.xlu0 %509
      %513 = vset.pattern.permute.xlu0 0
      %514 = vperm.xlu0 %513, %v436
      %v515 = vpop.permute.xlu0 %514
      %518 = vset.pattern.permute.xlu0 0
      %519 = vperm.xlu0 %518, %v437
      %v520 = vpop.permute.xlu0 %519
      %523 = vset.pattern.permute.xlu0 0
      %524 = vperm.xlu0 %523, %v438
      %v525 = vpop.permute.xlu0 %524
      %528 = vset.pattern.permute.xlu0 0
      %529 = vperm.xlu0 %528, %v439
      %v530 = vpop.permute.xlu0 %529
      %533 = vset.pattern.permute.xlu0 0
      %534 = vperm.xlu0 %533, %v440
      %v535 = vpop.permute.xlu0 %534
      %538 = vset.pattern.permute.xlu0 0
      %539 = vperm.xlu0 %538, %v441
      %v540 = vpop.permute.xlu0 %539
      %543 = vset.pattern.permute.xlu0 0
      %544 = vperm.xlu0 %543, %v442
      %v545 = vpop.permute.xlu0 %544
      %548 = vset.pattern.permute.xlu0 0
      %549 = vperm.xlu0 %548, %v443
      %v550 = vpop.permute.xlu0 %549
      %553 = vset.pattern.permute.xlu0 0
      %554 = vperm.xlu0 %553, %v444
      %v555 = vpop.permute.xlu0 %554
      %558 = vset.pattern.permute.xlu0 0
      %559 = vperm.xlu0 %558, %v445
      %v560 = vpop.permute.xlu0 %559
      %563 = vset.pattern.permute.xlu0 0
      %564 = vperm.xlu0 %563, %v446
      %v565 = vpop.permute.xlu0 %564
      %568 = vset.pattern.permute.xlu0 0
      %569 = vperm.xlu0 %568, %v447
      %v570 = vpop.permute.xlu0 %569
      %573 = vset.pattern.permute.xlu0 0
      %574 = vperm.xlu0 %573, %v448
      %v575 = vpop.permute.xlu0 %574
      %578 = vset.pattern.permute.xlu0 0
      %579 = vperm.xlu0 %578, %v449
      %v580 = vpop.permute.xlu0 %579
      %583 = vset.pattern.permute.xlu0 0
      %584 = vperm.xlu0 %583, %v450
      %v585 = vpop.permute.xlu0 %584
      %588 = vset.pattern.permute.xlu0 0
      %589 = vperm.xlu0 %588, %v451
      %v590 = vpop.permute.xlu0 %589
      %593 = vset.pattern.permute.xlu0 0
      %594 = vperm.xlu0 %593, %v452
      %v595 = vpop.permute.xlu0 %594
      %598 = vset.pattern.permute.xlu0 0
      %599 = vperm.xlu0 %598, %v453
      %v600 = vpop.permute.xlu0 %599
      %603 = vset.pattern.permute.xlu0 0
      %604 = vperm.xlu0 %603, %v454
      %v605 = vpop.permute.xlu0 %604
      %608 = vset.pattern.permute.xlu0 0
      %609 = vperm.xlu0 %608, %v455
      %v610 = vpop.permute.xlu0 %609
      %613 = vset.pattern.permute.xlu0 0
      %614 = vperm.xlu0 %613, %v456
      %v615 = vpop.permute.xlu0 %614
      %v617 = vmul.f32 %v265, %v460
      %v618 = vmul.f32 %v266, %v460
      %v619 = vmul.f32 %v267, %v460
      %v620 = vmul.f32 %v268, %v460
      %v621 = vmul.f32 %v269, %v465
      %v622 = vmul.f32 %v270, %v465
      %v623 = vmul.f32 %v271, %v465
      %v624 = vmul.f32 %v272, %v465
      %v625 = vmul.f32 %v273, %v470
      %v626 = vmul.f32 %v274, %v470
      %v627 = vmul.f32 %v275, %v470
      %v628 = vmul.f32 %v276, %v470
      %v629 = vmul.f32 %v277, %v475
      %v630 = vmul.f32 %v278, %v475
      %v631 = vmul.f32 %v279, %v475
      %v632 = vmul.f32 %v280, %v475
      %v633 = vmul.f32 %v281, %v480
      %v634 = vmul.f32 %v282, %v480
      %v635 = vmul.f32 %v283, %v480
      %v636 = vmul.f32 %v284, %v480
      %v637 = vmul.f32 %v285, %v485
      %v638 = vmul.f32 %v286, %v485
      %v639 = vmul.f32 %v287, %v485
      %v640 = vmul.f32 %v288, %v485
      %v641 = vmul.f32 %v289, %v490
      %v642 = vmul.f32 %v290, %v490
      %v643 = vmul.f32 %v291, %v490
      %v644 = vmul.f32 %v292, %v490
      %v645 = vmul.f32 %v293, %v495
      %v646 = vmul.f32 %v294, %v495
      %v647 = vmul.f32 %v295, %v495
      %v648 = vmul.f32 %v296, %v495
      %v649 = vmul.f32 %v297, %v500
      %v650 = vmul.f32 %v298, %v500
      %v651 = vmul.f32 %v299, %v500
      %v652 = vmul.f32 %v300, %v500
      %v653 = vmul.f32 %v301, %v505
      %v654 = vmul.f32 %v302, %v505
      %v655 = vmul.f32 %v303, %v505
      %v656 = vmul.f32 %v304, %v505
      %v657 = vmul.f32 %v305, %v510
      %v658 = vmul.f32 %v306, %v510
      %v659 = vmul.f32 %v307, %v510
      %v660 = vmul.f32 %v308, %v510
      %v661 = vmul.f32 %v309, %v515
      %v662 = vmul.f32 %v310, %v515
      %v663 = vmul.f32 %v311, %v515
      %v664 = vmul.f32 %v312, %v515
      %v665 = vmul.f32 %v313, %v520
      %v666 = vmul.f32 %v314, %v520
      %v667 = vmul.f32 %v315, %v520
      %v668 = vmul.f32 %v316, %v520
      %v669 = vmul.f32 %v317, %v525
      %v670 = vmul.f32 %v318, %v525
      %v671 = vmul.f32 %v319, %v525
      %v672 = vmul.f32 %v320, %v525
      %v673 = vmul.f32 %v321, %v530
      %v674 = vmul.f32 %v322, %v530
      %v675 = vmul.f32 %v323, %v530
      %v676 = vmul.f32 %v324, %v530
      %v677 = vmul.f32 %v325, %v535
      %v678 = vmul.f32 %v326, %v535
      %v679 = vmul.f32 %v327, %v535
      %v680 = vmul.f32 %v328, %v535
      %v681 = vmul.f32 %v329, %v540
      %v682 = vmul.f32 %v330, %v540
      %v683 = vmul.f32 %v331, %v540
      %v684 = vmul.f32 %v332, %v540
      %v685 = vmul.f32 %v333, %v545
      %v686 = vmul.f32 %v334, %v545
      %v687 = vmul.f32 %v335, %v545
      %v688 = vmul.f32 %v336, %v545
      %v689 = vmul.f32 %v337, %v550
      %v690 = vmul.f32 %v338, %v550
      %v691 = vmul.f32 %v339, %v550
      %v692 = vmul.f32 %v340, %v550
      %v693 = vmul.f32 %v341, %v555
      %v694 = vmul.f32 %v342, %v555
      %v695 = vmul.f32 %v343, %v555
      %v696 = vmul.f32 %v344, %v555
      %v697 = vmul.f32 %v345, %v560
      %v698 = vmul.f32 %v346, %v560
      %v699 = vmul.f32 %v347, %v560
      %v700 = vmul.f32 %v348, %v560
      %v701 = vmul.f32 %v349, %v565
      %v702 = vmul.f32 %v350, %v565
      %v703 = vmul.f32 %v351, %v565
      %v704 = vmul.f32 %v352, %v565
      %v705 = vmul.f32 %v353, %v570
      %v706 = vmul.f32 %v354, %v570
      %v707 = vmul.f32 %v355, %v570
      %v708 = vmul.f32 %v356, %v570
      %v709 = vmul.f32 %v357, %v575
      %v710 = vmul.f32 %v358, %v575
      %v711 = vmul.f32 %v359, %v575
      %v712 = vmul.f32 %v360, %v575
      %v713 = vmul.f32 %v361, %v580
      %v714 = vmul.f32 %v362, %v580
      %v715 = vmul.f32 %v363, %v580
      %v716 = vmul.f32 %v364, %v580
      %v717 = vmul.f32 %v365, %v585
      %v718 = vmul.f32 %v366, %v585
      %v719 = vmul.f32 %v367, %v585
      %v720 = vmul.f32 %v368, %v585
      %v721 = vmul.f32 %v369, %v590
      %v722 = vmul.f32 %v370, %v590
      %v723 = vmul.f32 %v371, %v590
      %v724 = vmul.f32 %v372, %v590
      %v725 = vmul.f32 %v373, %v595
      %v726 = vmul.f32 %v374, %v595
      %v727 = vmul.f32 %v375, %v595
      %v728 = vmul.f32 %v376, %v595
      %v729 = vmul.f32 %v377, %v600
      %v730 = vmul.f32 %v378, %v600
      %v731 = vmul.f32 %v379, %v600
      %v732 = vmul.f32 %v380, %v600
      %v733 = vmul.f32 %v381, %v605
      %v734 = vmul.f32 %v382, %v605
      %v735 = vmul.f32 %v383, %v605
      %v736 = vmul.f32 %v384, %v605
      %v737 = vmul.f32 %v385, %v610
      %v738 = vmul.f32 %v386, %v610
      %v739 = vmul.f32 %v387, %v610
      %v740 = vmul.f32 %v388, %v610
      %v741 = vmul.f32 %v389, %v615
      %v742 = vmul.f32 %v390, %v615
      %v743 = vmul.f32 %v391, %v615
      %v744 = vmul.f32 %v392, %v615
      %v745 = vadd.f32 %v617, %v621
      %v746 = vadd.f32 %v745, %v625
      %v747 = vadd.f32 %v746, %v629
      %v748 = vadd.f32 %v747, %v633
      %v749 = vadd.f32 %v748, %v637
      %v750 = vadd.f32 %v749, %v641
      %v751 = vadd.f32 %v750, %v645
      %v752 = vadd.f32 %v751, %v649
      %v753 = vadd.f32 %v752, %v653
      %v754 = vadd.f32 %v753, %v657
      %v755 = vadd.f32 %v754, %v661
      %v756 = vadd.f32 %v755, %v665
      %v757 = vadd.f32 %v756, %v669
      %v758 = vadd.f32 %v757, %v673
      %v759 = vadd.f32 %v758, %v677
      %v760 = vadd.f32 %v759, %v681
      %v761 = vadd.f32 %v760, %v685
      %v762 = vadd.f32 %v761, %v689
      %v763 = vadd.f32 %v762, %v693
      %v764 = vadd.f32 %v763, %v697
      %v765 = vadd.f32 %v764, %v701
      %v766 = vadd.f32 %v765, %v705
      %v767 = vadd.f32 %v766, %v709
      %v768 = vadd.f32 %v767, %v713
      %v769 = vadd.f32 %v768, %v717
      %v770 = vadd.f32 %v769, %v721
      %v771 = vadd.f32 %v770, %v725
      %v772 = vadd.f32 %v771, %v729
      %v773 = vadd.f32 %v772, %v733
      %v774 = vadd.f32 %v773, %v737
      %v775 = vadd.f32 %v774, %v741
      %v776 = vrot.slane %v775, 4
      %v777 = vadd.f32 %v775, %v776
      %v778 = vrot.slane %v777, 2
      %v779 = vadd.f32 %v777, %v778
      %v780 = vrot.slane %v779, 1
      %v781 = vadd.f32 %v779, %v780
      %v782 = vadd.f32 %v618, %v622
      %v783 = vadd.f32 %v782, %v626
      %v784 = vadd.f32 %v783, %v630
      %v785 = vadd.f32 %v784, %v634
      %v786 = vadd.f32 %v785, %v638
      %v787 = vadd.f32 %v786, %v642
      %v788 = vadd.f32 %v787, %v646
      %v789 = vadd.f32 %v788, %v650
      %v790 = vadd.f32 %v789, %v654
      %v791 = vadd.f32 %v790, %v658
      %v792 = vadd.f32 %v791, %v662
      %v793 = vadd.f32 %v792, %v666
      %v794 = vadd.f32 %v793, %v670
      %v795 = vadd.f32 %v794, %v674
      %v796 = vadd.f32 %v795, %v678
      %v797 = vadd.f32 %v796, %v682
      %v798 = vadd.f32 %v797, %v686
      %v799 = vadd.f32 %v798, %v690
      %v800 = vadd.f32 %v799, %v694
      %v801 = vadd.f32 %v800, %v698
      %v802 = vadd.f32 %v801, %v702
      %v803 = vadd.f32 %v802, %v706
      %v804 = vadd.f32 %v803, %v710
      %v805 = vadd.f32 %v804, %v714
      %v806 = vadd.f32 %v805, %v718
      %v807 = vadd.f32 %v806, %v722
      %v808 = vadd.f32 %v807, %v726
      %v809 = vadd.f32 %v808, %v730
      %v810 = vadd.f32 %v809, %v734
      %v811 = vadd.f32 %v810, %v738
      %v812 = vadd.f32 %v811, %v742
      %v813 = vrot.slane %v812, 4
      %v814 = vadd.f32 %v812, %v813
      %v815 = vrot.slane %v814, 2
      %v816 = vadd.f32 %v814, %v815
      %v817 = vrot.slane %v816, 1
      %v818 = vadd.f32 %v816, %v817
      %v819 = vadd.f32 %v619, %v623
      %v820 = vadd.f32 %v819, %v627
      %v821 = vadd.f32 %v820, %v631
      %v822 = vadd.f32 %v821, %v635
      %v823 = vadd.f32 %v822, %v639
      %v824 = vadd.f32 %v823, %v643
      %v825 = vadd.f32 %v824, %v647
      %v826 = vadd.f32 %v825, %v651
      %v827 = vadd.f32 %v826, %v655
      %v828 = vadd.f32 %v827, %v659
      %v829 = vadd.f32 %v828, %v663
      %v830 = vadd.f32 %v829, %v667
      %v831 = vadd.f32 %v830, %v671
      %v832 = vadd.f32 %v831, %v675
      %v833 = vadd.f32 %v832, %v679
      %v834 = vadd.f32 %v833, %v683
      %v835 = vadd.f32 %v834, %v687
      %v836 = vadd.f32 %v835, %v691
      %v837 = vadd.f32 %v836, %v695
      %v838 = vadd.f32 %v837, %v699
      %v839 = vadd.f32 %v838, %v703
      %v840 = vadd.f32 %v839, %v707
      %v841 = vadd.f32 %v840, %v711
      %v842 = vadd.f32 %v841, %v715
      %v843 = vadd.f32 %v842, %v719
      %v844 = vadd.f32 %v843, %v723
      %v845 = vadd.f32 %v844, %v727
      %v846 = vadd.f32 %v845, %v731
      %v847 = vadd.f32 %v846, %v735
      %v848 = vadd.f32 %v847, %v739
      %v849 = vadd.f32 %v848, %v743
      %v850 = vrot.slane %v849, 4
      %v851 = vadd.f32 %v849, %v850
      %v852 = vrot.slane %v851, 2
      %v853 = vadd.f32 %v851, %v852
      %v854 = vrot.slane %v853, 1
      %v855 = vadd.f32 %v853, %v854
      %v856 = vadd.f32 %v620, %v624
      %v857 = vadd.f32 %v856, %v628
      %v858 = vadd.f32 %v857, %v632
      %v859 = vadd.f32 %v858, %v636
      %v860 = vadd.f32 %v859, %v640
      %v861 = vadd.f32 %v860, %v644
      %v862 = vadd.f32 %v861, %v648
      %v863 = vadd.f32 %v862, %v652
      %v864 = vadd.f32 %v863, %v656
      %v865 = vadd.f32 %v864, %v660
      %v866 = vadd.f32 %v865, %v664
      %v867 = vadd.f32 %v866, %v668
      %v868 = vadd.f32 %v867, %v672
      %v869 = vadd.f32 %v868, %v676
      %v870 = vadd.f32 %v869, %v680
      %v871 = vadd.f32 %v870, %v684
      %v872 = vadd.f32 %v871, %v688
      %v873 = vadd.f32 %v872, %v692
      %v874 = vadd.f32 %v873, %v696
      %v875 = vadd.f32 %v874, %v700
      %v876 = vadd.f32 %v875, %v704
      %v877 = vadd.f32 %v876, %v708
      %v878 = vadd.f32 %v877, %v712
      %v879 = vadd.f32 %v878, %v716
      %v880 = vadd.f32 %v879, %v720
      %v881 = vadd.f32 %v880, %v724
      %v882 = vadd.f32 %v881, %v728
      %v883 = vadd.f32 %v882, %v732
      %v884 = vadd.f32 %v883, %v736
      %v885 = vadd.f32 %v884, %v740
      %v886 = vadd.f32 %v885, %v744
      %v887 = vrot.slane %v886, 4
      %v888 = vadd.f32 %v886, %v887
      %v889 = vrot.slane %v888, 2
      %v890 = vadd.f32 %v888, %v889
      %v891 = vrot.slane %v890, 1
      %v892 = vadd.f32 %v890, %v891
      %v893 = vtanh.pop %v781
      %v894 = vtanh.pop %v818
      %v895 = vtanh.pop %v855
      %v896 = vtanh.pop %v892
      %v901 = vcombine.low %v893, %v894
      %v902 = vcombine.low %v895, %v896
      %v904 = vunpack.c.l.s4 1966171168
      %v905 = vunpack.c.0.s8 %v904
      %v906 = vlaneseq
      %v907 = vshrl.u32 %v906, 7
      %v908 = vsub.s32 %v905, %v907
      %v909 = vrot.slane %v901, %v908
      %v911 = vunpack.c.l.s4 1966171168
      %v912 = vunpack.c.0.s8 %v911
      %v913 = vlaneseq
      %v914 = vshrl.u32 %v913, 7
      %v915 = vsub.s32 %v912, %v914
      %v916 = vrot.slane %v902, %v915
      %v917 = vcombine.low %v909, %v916
      %v919 = vunpack.c.l.s4 1966171168
      %v920 = vunpack.c.0.s8 %v919
      %v921 = vlaneseq
      %v922 = vshrl.u32 %v921, 7
      %v923 = vsub.s32 %v920, %v922
      %v924 = vrot.slane %v917, %v923
      %v926 = vlaneseq
      %vm927 = vcmp.ge.s32.totalorder %v926, 0
      %vm928 = vcmp.lt.s32.totalorder %v926, 512
      %vm929 = vmand %vm927, %vm928
      %930 = vst.msk [vmem:[%s199] sm:$0xf] %vm929, %v924
      %s931 = smul.u32 4, %s18
      %p932 = scmp.lt.s32.totalorder %s17, 3
      %s933 = scalar_select %p932, %s17, 3
      %p934 = scmp.lt.s32.totalorder %s931, 3
      %s935 = scalar_select %p934, %s931, 3
      %s936 = smul.addr %s933, 4
      %s937 = sadd.s32 %s935, %s936
      %s938 = scalar_lea.vmem %s2, %s937
      // Predicated region
      $region29: #{generator_forward.11} parent=27 // pred_check
        %p939 = pneg %p99
      $region30: #{generator_forward.11} parent=27 // pred_check_branch
        %941 = sbr.rel (%p939) target = $region32
      $region31: #{generator_forward.11} parent=27 // pred_region
        %s942 = smul.u32 4, %s18
      $region32: #{generator_forward.11} parent=27 // pred_fallthru
        _
    $region28: #{generator_forward.11} parent=5 // pred_fallthru
      _
    %p943 = scmp.le.s32.totalorder 2, %s8
    // Predicated region
    $region33: #{generator_forward.11} parent=5 // pred_check
      %p944 = pneg %p943
    $region34: #{generator_forward.11} parent=5 // pred_check_branch
      %946 = sbr.rel (%p944) target = $region36
    $region35: #{generator_forward.11} parent=5 // pred_region
      %s947 = ssub.s32 %s8, 2
      // Predicated region
      $region37: #{generator_forward.11} parent=35 // pred_check
        %p948 = pneg %p105
      $region38: #{generator_forward.11} parent=35 // pred_check_branch
        %950 = sbr.rel (%p948) target = $region40
      $region39: #{generator_forward.11} parent=35 // pred_region
        %s951 = smul.u32 4, %s20
        %p952 = scmp.lt.s32.totalorder %s19, 3
        %s953 = scalar_select %p952, %s19, 3
        %p954 = scmp.lt.s32.totalorder %s951, 3
        %s955 = scalar_select %p954, %s951, 3
        %s956 = smul.addr %s953, 4
        %s957 = sadd.s32 %s955, %s956
        %s958 = scalar_lea.vmem %s2, %s957
      $region40: #{generator_forward.11} parent=35 // pred_fallthru
        _
    $region36: #{generator_forward.11} parent=5 // pred_fallthru
      _
  $region6: #{generator_forward.11} parent=0 // loop_footer
    %s12 = sadd.s32 1, %s8
  $region7: #{generator_forward.11} parent=0 // loop_footer_branch
    %7 = sbr.rel target = $region3
  $region8: #{generator_forward.11} parent=0 // loop_exit
    _

</llo_original>
